<compile_context>
chip_gen: v5e
topology: v5e:2x2
jax: 0.10.0
libtpu: 0.0.40
codegen_flags: <defaults>
</compile_context>

<pallas_src>
import functools

import jax
import jax.numpy as jnp
from jax.experimental import pallas as pl
from jax.experimental.pallas import tpu as pltpu

EPS = 1e-5


def _vmem_limit_bytes():
    # Generation-dependent scoped-VMEM budget: ~3/4 of physical, capped at
    # 96 MiB (v5e/v6e: 128 MiB physical -> 96 MiB; v7x: 64 MiB -> 48 MiB).
    try:
        cap = pltpu.get_tpu_info().vmem_capacity_bytes
        return int(min(cap * 3 // 4, 96 * 1024 * 1024))
    except Exception:
        return 32 * 1024 * 1024


_VMEM_LIMIT = _vmem_limit_bytes()


def _pick_images_per_step(n, hw, target_rows=512):
    """Pack several images per conv grid step when H*W is small."""
    nb = max(1, min(n, target_rows // max(hw, 1)))
    while n % nb:
        nb -= 1
    return nb


def _pick_row_tile(total, target=2048):
    """Largest row tile <= target dividing `total`, keeping the second-minor
    block dim a multiple of 16 (or 8); falls back to the full extent."""
    if total <= target:
        return total
    for step in (16, 8):
        t = (target // step) * step
        while t >= step:
            if total % t == 0:
                return t
            t -= step
    return total


def _lane_pack_factor(rows, c):
    """Pack factor p so the elementwise pass sees a (rows/p, p*c) slab with a
    128-lane-dense last dim when c < 128 (free wrapper-side reshape)."""
    if c >= 128 or 128 % c != 0:
        return 1
    p = 128 // c
    while p > 1 and rows % p != 0:
        p //= 2
    return p


# --------------------------------------------------------------------------
# Kernel A/B: (optional fused BN+ReLU) -> 3x3 conv as 3 K-fused MXU matmuls
#             over a shifted bf16 slab + per-image single-pass BN stats.
# --------------------------------------------------------------------------
def _conv_kernel(src_ref, w_ref, scale_ref, shift_ref, y_ref, stats_ref,
                 acc_ref, *, H, W, fuse_bn_relu):
    # src_ref   : (NB, H*W, Cin)   input slab(s); fp32 (kernel A) or bf16 (B)
    # w_ref     : (3, 3*Cin, Cout) bf16 weights; w_ref[ky] rows ordered (kx,ci)
    # scale/shift: (1, Cin)        fp32 folded BN affine (used iff fuse_bn_relu)
    # y_ref     : (NB, H*W, Cout)  bf16 raw conv output
    # stats_ref : (NB, 2, Cout)    fp32 [sum(y); sum(y*y)] per image
    # acc_ref   : (H*W, Cout)      fp32 scratch accumulator
    HW = H * W
    nb, _, cin = src_ref.shape

    # w-boundary masks in flat (row = h*W + w) layout, hoisted out of the loop.
    w_col = jax.lax.broadcasted_iota(jnp.int32, (HW, 1), 0) % W
    not_w_first = w_col != 0
    not_w_last = w_col != (W - 1)
    zrow = jnp.zeros((1, cin), jnp.bfloat16)

    for b in range(nb):                                   # static unroll
        x = src_ref[b]                                     # (HW, Cin)
        if fuse_bn_relu:
            # bn + relu fused into this conv's input path (fp32 on VPU).
            x = jnp.maximum(
                x.astype(jnp.float32) * scale_ref[...] + shift_ref[...], 0.0)
        xb = x.astype(jnp.bfloat16)

        # Horizontal (dx) taps: two shifted bf16 copies masked at the w
        # boundaries; one (HW, 3*Cin) slab replaces the old fp32 im2col.
        x_left = jnp.concatenate([zrow, xb[:HW - 1, :]], axis=0)   # in(w-1)
        x_right = jnp.concatenate([xb[1:, :], zrow], axis=0)       # in(w+1)
        x_left = jnp.where(not_w_first, x_left, jnp.bfloat16(0))
        x_right = jnp.where(not_w_last, x_right, jnp.bfloat16(0))
        xc = jnp.concatenate([x_left, xb, x_right], axis=-1)       # (HW, 3Cin)

        # Vertical (dy) taps: 3 K-fused MXU matmuls accumulated at row
        # offsets 0 / -W / +W (h boundary handled by the slice ranges).
        acc_ref[...] = jnp.dot(xc, w_ref[1],
                               preferred_element_type=jnp.float32)
        acc_ref[pl.ds(W, HW - W), :] += jnp.dot(
            xc[:HW - W, :], w_ref[0], preferred_element_type=jnp.float32)
        acc_ref[pl.ds(0, HW - W), :] += jnp.dot(
            xc[W:, :], w_ref[2], preferred_element_type=jnp.float32)

        y = acc_ref[...]
        y_ref[b] = y.astype(y_ref.dtype)                   # bf16 activation
        # Single-pass BN partial stats (fp32, taken before the bf16 cast).
        ssum = jnp.sum(y, axis=0, keepdims=True)
        ssq = jnp.sum(y * y, axis=0, keepdims=True)
        stats_ref[b] = jnp.concatenate([ssum, ssq], axis=0)


def _conv3x3_bn_stats(src, w, scale, shift, *, H, W, fuse_bn_relu):
    N, HW, Cin = src.shape
    Cout = w.shape[-1]
    NB = _pick_images_per_step(N, HW)
    kernel = functools.partial(_conv_kernel, H=H, W=W,
                               fuse_bn_relu=fuse_bn_relu)
    return pl.pallas_call(
        kernel,
        out_shape=(jax.ShapeDtypeStruct((N, HW, Cout), jnp.bfloat16),
                   jax.ShapeDtypeStruct((N, 2, Cout), jnp.float32)),
        grid_spec=pltpu.PrefetchScalarGridSpec(
            num_scalar_prefetch=0,
            grid=(N // NB,),
            in_specs=[
                pl.BlockSpec((NB, HW, Cin), lambda n: (n, 0, 0)),
                pl.BlockSpec((3, 3 * Cin, Cout), lambda n: (0, 0, 0)),
                pl.BlockSpec((1, Cin), lambda n: (0, 0)),
                pl.BlockSpec((1, Cin), lambda n: (0, 0)),
            ],
            out_specs=[
                pl.BlockSpec((NB, HW, Cout), lambda n: (n, 0, 0)),
                pl.BlockSpec((NB, 2, Cout), lambda n: (n, 0, 0)),
            ],
            scratch_shapes=[pltpu.VMEM((HW, Cout), jnp.float32)],
        ),
        compiler_params=pltpu.CompilerParams(
            dimension_semantics=("parallel",),
            vmem_limit_bytes=_VMEM_LIMIT,
        ),
    )(src, w, scale, shift)


# --------------------------------------------------------------------------
# Kernel C: bn2 + residual add + relu on a flat, lane-packed view.
# --------------------------------------------------------------------------
def _bn_add_relu_kernel(y_ref, xid_ref, scale_ref, shift_ref, out_ref):
    y = y_ref[...].astype(jnp.float32) * scale_ref[...] + shift_ref[...]
    out_ref[...] = jnp.maximum(y + xid_ref[...], 0.0).astype(out_ref.dtype)


def _bn_add_relu(y_flat, x_flat, scale, shift):
    R, C = y_flat.shape
    TM = _pick_row_tile(R)
    return pl.pallas_call(
        _bn_add_relu_kernel,
        out_shape=jax.ShapeDtypeStruct((R, C), jnp.float32),
        grid_spec=pltpu.PrefetchScalarGridSpec(
            num_scalar_prefetch=0,
            grid=(R // TM,),
            in_specs=[
                pl.BlockSpec((TM, C), lambda i: (i, 0)),
                pl.BlockSpec((TM, C), lambda i: (i, 0)),
                pl.BlockSpec((1, C), lambda i: (0, 0)),
                pl.BlockSpec((1, C), lambda i: (0, 0)),
            ],
            out_specs=pl.BlockSpec((TM, C), lambda i: (i, 0)),
        ),
        compiler_params=pltpu.CompilerParams(
            dimension_semantics=("parallel",),
            vmem_limit_bytes=_VMEM_LIMIT,
        ),
    )(y_flat, x_flat, scale, shift)


# --------------------------------------------------------------------------
# Wrapper
# --------------------------------------------------------------------------
def _bn_scale_shift(stats, gamma, beta, count):
    # Reduce per-image partials -> training-mode batch stats (biased var),
    # fold into a per-channel affine (scale, shift).  fp32 throughout.
    s = jnp.sum(stats[:, 0, :], axis=0)
    sq = jnp.sum(stats[:, 1, :], axis=0)
    mean = s / count
    var = jnp.maximum(sq / count - mean * mean, 0.0)
    scale = gamma * jax.lax.rsqrt(var + EPS)
    shift = beta - mean * scale
    return scale.reshape(1, -1), shift.reshape(1, -1)


def basic_block_forward(x_nchw, params):
    """x_nchw: (N, C, H, W) float32 — PyTorch layout at the boundary."""
    x = jnp.transpose(x_nchw, (0, 2, 3, 1))                  # -> NHWC
    N, H, W, Cin = x.shape
    Cout = params["w1"].shape[-1]
    assert Cin == Cout, "stride=1 / downsample=None requires inplanes == planes"
    HW = H * W

    x_flat = x.reshape(N, HW, Cin)                           # free reshape
    # Weights as (ky, kx*cin, cout): one (3*Cin, Cout) slab per vertical tap.
    w1 = params["w1"].reshape(3, 3 * Cin, Cout).astype(jnp.bfloat16)
    w2 = params["w2"].reshape(3, 3 * Cout, Cout).astype(jnp.bfloat16)
    ones = jnp.ones((1, Cin), jnp.float32)
    zeros = jnp.zeros((1, Cin), jnp.float32)
    count = N * HW

    # conv1 (+ BN1 partial stats)
    y1, st1 = _conv3x3_bn_stats(x_flat, w1, ones, zeros,
                                H=H, W=W, fuse_bn_relu=False)
    scale1, shift1 = _bn_scale_shift(st1, params["g1"], params["b1"], count)

    # bn1 + relu fused into conv2's input path (+ BN2 partial stats)
    y2, st2 = _conv3x3_bn_stats(y1, w2, scale1, shift1,
                                H=H, W=W, fuse_bn_relu=True)
    scale2, shift2 = _bn_scale_shift(st2, params["g2"], params["b2"], count)

    # bn2 + residual + relu on a flat, lane-packed view (lane-dense stores
    # for C < 128; the repack is a free wrapper-side reshape).
    R = N * HW
    p = _lane_pack_factor(R, Cout)
    y2p = y2.reshape(R // p, p * Cout)
    xidp = x.reshape(R // p, p * Cout)
    scale2p = jnp.tile(scale2, (1, p))
    shift2p = jnp.tile(shift2, (1, p))
    out_flat = _bn_add_relu(y2p, xidp, scale2p, shift2p)

    out = out_flat.reshape(N, H, W, Cout)                    # free reshape
    return jnp.transpose(out, (0, 3, 1, 2))                  # -> NCHW


# --------------------------------------------------------------------------
# Pure-JAX reference (bf16-matmul / fp32-accumulate numerics)
# --------------------------------------------------------------------------
def ref_forward(x_nchw, params):
    x = jnp.transpose(x_nchw, (0, 2, 3, 1))

    def conv(inp, w):
        return jax.lax.conv_general_dilated(
            inp.astype(jnp.bfloat16), w.astype(jnp.bfloat16),
            (1, 1), ((1, 1), (1, 1)),
            dimension_numbers=("NHWC", "HWIO", "NHWC"),
            preferred_element_type=jnp.float32)

    def bn(y, g, b):
        m = jnp.mean(y, axis=(0, 1, 2), keepdims=True)
        v = jnp.mean((y - m) ** 2, axis=(0, 1, 2), keepdims=True)
        return (y - m) * jax.lax.rsqrt(v + EPS) * g + b

    out = jnp.maximum(bn(conv(x, params["w1"]), params["g1"], params["b1"]), 0.0)
    out = bn(conv(out, params["w2"]), params["g2"], params["b2"])
    out = jnp.maximum(out + x, 0.0)
    return jnp.transpose(out, (0, 3, 1, 2))


def init_params(key, inplanes, planes):
    ks = jax.random.split(key, 6)
    scale1 = 1.0 / jnp.sqrt(9.0 * inplanes)
    scale2 = 1.0 / jnp.sqrt(9.0 * planes)
    return {
        # conv weights in HWIO layout
        "w1": scale1 * jax.random.normal(ks[0], (3, 3, inplanes, planes), jnp.float32),
        "w2": scale2 * jax.random.normal(ks[1], (3, 3, planes, planes), jnp.float32),
        "g1": 1.0 + 0.1 * jax.random.normal(ks[2], (planes,), jnp.float32),
        "b1": 0.1 * jax.random.normal(ks[3], (planes,), jnp.float32),
        "g2": 1.0 + 0.1 * jax.random.normal(ks[4], (planes,), jnp.float32),
        "b2": 0.1 * jax.random.normal(ks[5], (planes,), jnp.float32),
    }


if __name__ == "__main__":
    key = jax.random.PRNGKey(0)
    k_x, k_p = jax.random.split(key)

    N, C, H, W = 2, 8, 16, 16        # inplanes = planes = 8, stride = 1
    x = jax.random.normal(k_x, (N, C, H, W), jnp.float32)
    params = init_params(k_p, C, C)

    out = jax.block_until_ready(basic_block_forward(x, params))
    ref = jax.block_until_ready(ref_forward(x, params))

    assert out.shape == (N, C, H, W)
    max_err = float(jnp.max(jnp.abs(out - ref)))
    # bf16 inter-kernel activations -> slightly wider tolerance than pure fp32.
    assert jnp.allclose(out, ref, rtol=3e-2, atol=3e-2), max_err

    print("KERNEL_OK")
</pallas_src>

<mosaic_0001>
module attributes {stable_mosaic.version = 11 : i64} {
  func.func @_conv_kernel(%arg0: i32, %arg1: memref<2x256x8xf32, #tpu.memory_space<vmem>>, %arg2: memref<3x24x8xbf16, #tpu.memory_space<vmem>>, %arg3: memref<1x8xf32, #tpu.memory_space<vmem>>, %arg4: memref<1x8xf32, #tpu.memory_space<vmem>>, %arg5: memref<2x256x8xbf16, #tpu.memory_space<vmem>>, %arg6: memref<2x2x8xf32, #tpu.memory_space<vmem>>, %arg7: memref<256x8xf32, #tpu.memory_space<vmem>>) attributes {dimension_semantics = [#tpu.dimension_semantics<parallel>], iteration_bounds = array<i64: 1>, scalar_prefetch = 0 : i64, scratch_operands = 1 : i64, tpu.core_type = #tpu.core_type<tc>, window_params = [{transform_indices = @transform_0, window_bounds = array<i64: 2, 256, 8>}, {pipeline_mode = #tpu.pipeline_mode<synchronous>, transform_indices = @transform_1, window_bounds = array<i64: 3, 24, 8>}, {pipeline_mode = #tpu.pipeline_mode<synchronous>, transform_indices = @transform_2, window_bounds = array<i64: 1, 8>}, {pipeline_mode = #tpu.pipeline_mode<synchronous>, transform_indices = @transform_3, window_bounds = array<i64: 1, 8>}, {transform_indices = @transform_4, window_bounds = array<i64: 2, 256, 8>}, {transform_indices = @transform_5, window_bounds = array<i64: 2, 2, 8>}]} {
    %0 = tpu.iota {dimensions = array<i32: 0>} : vector<256x1xi32>
    %c16_i32 = arith.constant 16 : i32
    %c0_i32 = arith.constant 0 : i32
    %1 = arith.cmpi eq, %c16_i32, %c0_i32 : i32
    %c1_i32 = arith.constant 1 : i32
    %2 = arith.select %1, %c1_i32, %c16_i32 : i32
    %3 = vector.broadcast %2 : i32 to vector<256x1xi32>
    %4 = arith.remsi %0, %3 : vector<256x1xi32>
    %c0_i32_0 = arith.constant 0 : i32
    %5 = vector.broadcast %c0_i32_0 : i32 to vector<256x1xi32>
    %6 = arith.cmpi ne, %4, %5 : vector<256x1xi32>
    %c0_i32_1 = arith.constant 0 : i32
    %7 = vector.broadcast %c0_i32_1 : i32 to vector<256x1xi32>
    %8 = arith.cmpi slt, %4, %7 : vector<256x1xi32>
    %c0_i32_2 = arith.constant 0 : i32
    %9 = arith.cmpi slt, %2, %c0_i32_2 : i32
    %10 = vector.broadcast %9 : i1 to vector<256x1xi1>
    %11 = vector.broadcast %10 : vector<256x1xi1> to vector<256x1xi1>
    %12 = arith.xori %8, %11 : vector<256x1xi1>
    %13 = arith.andi %12, %6 : vector<256x1xi1>
    %14 = vector.broadcast %2 : i32 to vector<256x1xi32>
    %15 = arith.addi %4, %14 : vector<256x1xi32>
    %16 = arith.select %13, %15, %4 : vector<256x1xi1>, vector<256x1xi32>
    %c0_i32_3 = arith.constant 0 : i32
    %17 = vector.broadcast %c0_i32_3 : i32 to vector<256x1xi32>
    %18 = arith.cmpi ne, %16, %17 : vector<256x1xi32>
    %c15_i32 = arith.constant 15 : i32
    %19 = vector.broadcast %c15_i32 : i32 to vector<256x1xi32>
    %20 = arith.cmpi ne, %16, %19 : vector<256x1xi32>
    %cst = arith.constant 0.000000e+00 : bf16
    %21 = vector.broadcast %cst : bf16 to vector<1x8xbf16>
    %c0 = arith.constant 0 : index
    %c0_4 = arith.constant 0 : index
    %c0_5 = arith.constant 0 : index
    %22 = vector.load %arg1[%c0, %c0_4, %c0_5] : memref<2x256x8xf32, #tpu.memory_space<vmem>>, vector<1x256x8xf32>
    %23 = vector.shape_cast %22 : vector<1x256x8xf32> to vector<256x8xf32>
    %24 = arith.truncf %23 : vector<256x8xf32> to vector<256x8xbf16>
    %25 = vector.extract_strided_slice %24 {offsets = [0, 0], sizes = [255, 8], strides = [1, 1]} : vector<256x8xbf16> to vector<255x8xbf16>
    %26 = tpu.concatenate %21, %25 in 0 : vector<1x8xbf16>, vector<255x8xbf16> -> vector<256x8xbf16>
    %27 = vector.extract_strided_slice %24 {offsets = [1, 0], sizes = [255, 8], strides = [1, 1]} : vector<256x8xbf16> to vector<255x8xbf16>
    %28 = tpu.concatenate %27, %21 in 0 : vector<255x8xbf16>, vector<1x8xbf16> -> vector<256x8xbf16>
    %cst_6 = arith.constant 0.000000e+00 : bf16
    %29 = vector.shape_cast %18 : vector<256x1xi1> to vector<256x1xi1>
    %30 = vector.broadcast %29 : vector<256x1xi1> to vector<256x8xi1>
    %31 = vector.broadcast %cst_6 : bf16 to vector<256x8xbf16>
    %32 = arith.select %30, %26, %31 : vector<256x8xi1>, vector<256x8xbf16>
    %cst_7 = arith.constant 0.000000e+00 : bf16
    %33 = vector.shape_cast %20 : vector<256x1xi1> to vector<256x1xi1>
    %34 = vector.broadcast %33 : vector<256x1xi1> to vector<256x8xi1>
    %35 = vector.broadcast %cst_7 : bf16 to vector<256x8xbf16>
    %36 = arith.select %34, %28, %35 : vector<256x8xi1>, vector<256x8xbf16>
    %37 = tpu.concatenate %32, %24, %36 in 1 : vector<256x8xbf16>, vector<256x8xbf16>, vector<256x8xbf16> -> vector<256x24xbf16>
    %c1 = arith.constant 1 : index
    %c0_8 = arith.constant 0 : index
    %c0_9 = arith.constant 0 : index
    %38 = vector.load %arg2[%c1, %c0_8, %c0_9] : memref<3x24x8xbf16, #tpu.memory_space<vmem>>, vector<1x24x8xbf16>
    %39 = vector.shape_cast %38 : vector<1x24x8xbf16> to vector<24x8xbf16>
    %cst_10 = arith.constant dense<0.000000e+00> : vector<256x8xf32>
    %40 = tpu.matmul %37, %39, %cst_10 {dimension_numbers = #tpu.dot_dimension_numbers<[1], [0], [0], [1], [0, 0, 1, 1], [], []>} : vector<256x24xbf16>, vector<24x8xbf16>, vector<256x8xf32> -> vector<256x8xf32>
    %c0_11 = arith.constant 0 : index
    %c0_12 = arith.constant 0 : index
    %41 = vector.load %arg7[%c0_11, %c0_12] : memref<256x8xf32, #tpu.memory_space<vmem>>, vector<256x8xf32>
    tpu.vector_store %arg7[%c0_11, %c0_12], %40 {strides = array<i32>} : memref<256x8xf32, #tpu.memory_space<vmem>>, vector<256x8xf32>,
    %c16 = arith.constant 16 : index
    %c0_13 = arith.constant 0 : index
    %42 = vector.load %arg7[%c16, %c0_13] : memref<256x8xf32, #tpu.memory_space<vmem>>, vector<240x8xf32>
    %43 = vector.extract_strided_slice %37 {offsets = [0, 0], sizes = [240, 24], strides = [1, 1]} : vector<256x24xbf16> to vector<240x24xbf16>
    %c0_14 = arith.constant 0 : index
    %c0_15 = arith.constant 0 : index
    %c0_16 = arith.constant 0 : index
    %44 = vector.load %arg2[%c0_14, %c0_15, %c0_16] : memref<3x24x8xbf16, #tpu.memory_space<vmem>>, vector<1x24x8xbf16>
    %45 = vector.shape_cast %44 : vector<1x24x8xbf16> to vector<24x8xbf16>
    %cst_17 = arith.constant dense<0.000000e+00> : vector<240x8xf32>
    %46 = tpu.matmul %43, %45, %cst_17 {dimension_numbers = #tpu.dot_dimension_numbers<[1], [0], [0], [1], [0, 0, 1, 1], [], []>} : vector<240x24xbf16>, vector<24x8xbf16>, vector<240x8xf32> -> vector<240x8xf32>
    %47 = arith.addf %42, %46 : vector<240x8xf32>
    %c16_18 = arith.constant 16 : index
    %c0_19 = arith.constant 0 : index
    %48 = vector.load %arg7[%c16_18, %c0_19] : memref<256x8xf32, #tpu.memory_space<vmem>>, vector<240x8xf32>
    tpu.vector_store %arg7[%c16_18, %c0_19], %47 {strides = array<i32>} : memref<256x8xf32, #tpu.memory_space<vmem>>, vector<240x8xf32>,
    %c0_20 = arith.constant 0 : index
    %c0_21 = arith.constant 0 : index
    %49 = vector.load %arg7[%c0_20, %c0_21] : memref<256x8xf32, #tpu.memory_space<vmem>>, vector<240x8xf32>
    %50 = vector.extract_strided_slice %37 {offsets = [16, 0], sizes = [240, 24], strides = [1, 1]} : vector<256x24xbf16> to vector<240x24xbf16>
    %c2 = arith.constant 2 : index
    %c0_22 = arith.constant 0 : index
    %c0_23 = arith.constant 0 : index
    %51 = vector.load %arg2[%c2, %c0_22, %c0_23] : memref<3x24x8xbf16, #tpu.memory_space<vmem>>, vector<1x24x8xbf16>
    %52 = vector.shape_cast %51 : vector<1x24x8xbf16> to vector<24x8xbf16>
    %cst_24 = arith.constant dense<0.000000e+00> : vector<240x8xf32>
    %53 = tpu.matmul %50, %52, %cst_24 {dimension_numbers = #tpu.dot_dimension_numbers<[1], [0], [0], [1], [0, 0, 1, 1], [], []>} : vector<240x24xbf16>, vector<24x8xbf16>, vector<240x8xf32> -> vector<240x8xf32>
    %54 = arith.addf %49, %53 : vector<240x8xf32>
    %c0_25 = arith.constant 0 : index
    %c0_26 = arith.constant 0 : index
    %55 = vector.load %arg7[%c0_25, %c0_26] : memref<256x8xf32, #tpu.memory_space<vmem>>, vector<240x8xf32>
    tpu.vector_store %arg7[%c0_25, %c0_26], %54 {strides = array<i32>} : memref<256x8xf32, #tpu.memory_space<vmem>>, vector<240x8xf32>,
    %c0_27 = arith.constant 0 : index
    %c0_28 = arith.constant 0 : index
    %56 = vector.load %arg7[%c0_27, %c0_28] : memref<256x8xf32, #tpu.memory_space<vmem>>, vector<256x8xf32>
    %57 = arith.truncf %56 : vector<256x8xf32> to vector<256x8xbf16>
    %c0_29 = arith.constant 0 : index
    %c0_30 = arith.constant 0 : index
    %c0_31 = arith.constant 0 : index
    %58 = vector.load %arg5[%c0_29, %c0_30, %c0_31] : memref<2x256x8xbf16, #tpu.memory_space<vmem>>, vector<1x256x8xbf16>
    %59 = vector.shape_cast %58 : vector<1x256x8xbf16> to vector<256x8xbf16>
    %60 = vector.shape_cast %57 : vector<256x8xbf16> to vector<1x256x8xbf16>
    tpu.vector_store %arg5[%c0_29, %c0_30, %c0_31], %60 {strides = array<i32>} : memref<2x256x8xbf16, #tpu.memory_space<vmem>>, vector<1x256x8xbf16>,
    %cst_32 = arith.constant dense<0.000000e+00> : vector<8xf32>
    %61 = vector.multi_reduction <add>, %56, %cst_32 [0] : vector<256x8xf32> to vector<8xf32>
    %62 = vector.shape_cast %61 : vector<8xf32> to vector<1x8xf32>
    %63 = arith.mulf %56, %56 : vector<256x8xf32>
    %cst_33 = arith.constant dense<0.000000e+00> : vector<8xf32>
    %64 = vector.multi_reduction <add>, %63, %cst_33 [0] : vector<256x8xf32> to vector<8xf32>
    %65 = vector.shape_cast %64 : vector<8xf32> to vector<1x8xf32>
    %66 = tpu.concatenate %62, %65 in 0 : vector<1x8xf32>, vector<1x8xf32> -> vector<2x8xf32>
    %c0_34 = arith.constant 0 : index
    %c0_35 = arith.constant 0 : index
    %c0_36 = arith.constant 0 : index
    %67 = vector.load %arg6[%c0_34, %c0_35, %c0_36] : memref<2x2x8xf32, #tpu.memory_space<vmem>>, vector<1x2x8xf32>
    %68 = vector.shape_cast %67 : vector<1x2x8xf32> to vector<2x8xf32>
    %69 = vector.shape_cast %66 : vector<2x8xf32> to vector<1x2x8xf32>
    tpu.vector_store %arg6[%c0_34, %c0_35, %c0_36], %69 {strides = array<i32>} : memref<2x2x8xf32, #tpu.memory_space<vmem>>, vector<1x2x8xf32>,
    %c1_37 = arith.constant 1 : index
    %c0_38 = arith.constant 0 : index
    %c0_39 = arith.constant 0 : index
    %70 = vector.load %arg1[%c1_37, %c0_38, %c0_39] : memref<2x256x8xf32, #tpu.memory_space<vmem>>, vector<1x256x8xf32>
    %71 = vector.shape_cast %70 : vector<1x256x8xf32> to vector<256x8xf32>
    %72 = arith.truncf %71 : vector<256x8xf32> to vector<256x8xbf16>
    %73 = vector.extract_strided_slice %72 {offsets = [0, 0], sizes = [255, 8], strides = [1, 1]} : vector<256x8xbf16> to vector<255x8xbf16>
    %74 = tpu.concatenate %21, %73 in 0 : vector<1x8xbf16>, vector<255x8xbf16> -> vector<256x8xbf16>
    %75 = vector.extract_strided_slice %72 {offsets = [1, 0], sizes = [255, 8], strides = [1, 1]} : vector<256x8xbf16> to vector<255x8xbf16>
    %76 = tpu.concatenate %75, %21 in 0 : vector<255x8xbf16>, vector<1x8xbf16> -> vector<256x8xbf16>
    %cst_40 = arith.constant 0.000000e+00 : bf16
    %77 = vector.shape_cast %18 : vector<256x1xi1> to vector<256x1xi1>
    %78 = vector.broadcast %77 : vector<256x1xi1> to vector<256x8xi1>
    %79 = vector.broadcast %cst_40 : bf16 to vector<256x8xbf16>
    %80 = arith.select %78, %74, %79 : vector<256x8xi1>, vector<256x8xbf16>
    %cst_41 = arith.constant 0.000000e+00 : bf16
    %81 = vector.shape_cast %20 : vector<256x1xi1> to vector<256x1xi1>
    %82 = vector.broadcast %81 : vector<256x1xi1> to vector<256x8xi1>
    %83 = vector.broadcast %cst_41 : bf16 to vector<256x8xbf16>
    %84 = arith.select %82, %76, %83 : vector<256x8xi1>, vector<256x8xbf16>
    %85 = tpu.concatenate %80, %72, %84 in 1 : vector<256x8xbf16>, vector<256x8xbf16>, vector<256x8xbf16> -> vector<256x24xbf16>
    %c1_42 = arith.constant 1 : index
    %c0_43 = arith.constant 0 : index
    %c0_44 = arith.constant 0 : index
    %86 = vector.load %arg2[%c1_42, %c0_43, %c0_44] : memref<3x24x8xbf16, #tpu.memory_space<vmem>>, vector<1x24x8xbf16>
    %87 = vector.shape_cast %86 : vector<1x24x8xbf16> to vector<24x8xbf16>
    %cst_45 = arith.constant dense<0.000000e+00> : vector<256x8xf32>
    %88 = tpu.matmul %85, %87, %cst_45 {dimension_numbers = #tpu.dot_dimension_numbers<[1], [0], [0], [1], [0, 0, 1, 1], [], []>} : vector<256x24xbf16>, vector<24x8xbf16>, vector<256x8xf32> -> vector<256x8xf32>
    %c0_46 = arith.constant 0 : index
    %c0_47 = arith.constant 0 : index
    %89 = vector.load %arg7[%c0_46, %c0_47] : memref<256x8xf32, #tpu.memory_space<vmem>>, vector<256x8xf32>
    tpu.vector_store %arg7[%c0_46, %c0_47], %88 {strides = array<i32>} : memref<256x8xf32, #tpu.memory_space<vmem>>, vector<256x8xf32>,
    %c16_48 = arith.constant 16 : index
    %c0_49 = arith.constant 0 : index
    %90 = vector.load %arg7[%c16_48, %c0_49] : memref<256x8xf32, #tpu.memory_space<vmem>>, vector<240x8xf32>
    %91 = vector.extract_strided_slice %85 {offsets = [0, 0], sizes = [240, 24], strides = [1, 1]} : vector<256x24xbf16> to vector<240x24xbf16>
    %c0_50 = arith.constant 0 : index
    %c0_51 = arith.constant 0 : index
    %c0_52 = arith.constant 0 : index
    %92 = vector.load %arg2[%c0_50, %c0_51, %c0_52] : memref<3x24x8xbf16, #tpu.memory_space<vmem>>, vector<1x24x8xbf16>
    %93 = vector.shape_cast %92 : vector<1x24x8xbf16> to vector<24x8xbf16>
    %cst_53 = arith.constant dense<0.000000e+00> : vector<240x8xf32>
    %94 = tpu.matmul %91, %93, %cst_53 {dimension_numbers = #tpu.dot_dimension_numbers<[1], [0], [0], [1], [0, 0, 1, 1], [], []>} : vector<240x24xbf16>, vector<24x8xbf16>, vector<240x8xf32> -> vector<240x8xf32>
    %95 = arith.addf %90, %94 : vector<240x8xf32>
    %c16_54 = arith.constant 16 : index
    %c0_55 = arith.constant 0 : index
    %96 = vector.load %arg7[%c16_54, %c0_55] : memref<256x8xf32, #tpu.memory_space<vmem>>, vector<240x8xf32>
    tpu.vector_store %arg7[%c16_54, %c0_55], %95 {strides = array<i32>} : memref<256x8xf32, #tpu.memory_space<vmem>>, vector<240x8xf32>,
    %c0_56 = arith.constant 0 : index
    %c0_57 = arith.constant 0 : index
    %97 = vector.load %arg7[%c0_56, %c0_57] : memref<256x8xf32, #tpu.memory_space<vmem>>, vector<240x8xf32>
    %98 = vector.extract_strided_slice %85 {offsets = [16, 0], sizes = [240, 24], strides = [1, 1]} : vector<256x24xbf16> to vector<240x24xbf16>
    %c2_58 = arith.constant 2 : index
    %c0_59 = arith.constant 0 : index
    %c0_60 = arith.constant 0 : index
    %99 = vector.load %arg2[%c2_58, %c0_59, %c0_60] : memref<3x24x8xbf16, #tpu.memory_space<vmem>>, vector<1x24x8xbf16>
    %100 = vector.shape_cast %99 : vector<1x24x8xbf16> to vector<24x8xbf16>
    %cst_61 = arith.constant dense<0.000000e+00> : vector<240x8xf32>
    %101 = tpu.matmul %98, %100, %cst_61 {dimension_numbers = #tpu.dot_dimension_numbers<[1], [0], [0], [1], [0, 0, 1, 1], [], []>} : vector<240x24xbf16>, vector<24x8xbf16>, vector<240x8xf32> -> vector<240x8xf32>
    %102 = arith.addf %97, %101 : vector<240x8xf32>
    %c0_62 = arith.constant 0 : index
    %c0_63 = arith.constant 0 : index
    %103 = vector.load %arg7[%c0_62, %c0_63] : memref<256x8xf32, #tpu.memory_space<vmem>>, vector<240x8xf32>
    tpu.vector_store %arg7[%c0_62, %c0_63], %102 {strides = array<i32>} : memref<256x8xf32, #tpu.memory_space<vmem>>, vector<240x8xf32>,
    %c0_64 = arith.constant 0 : index
    %c0_65 = arith.constant 0 : index
    %104 = vector.load %arg7[%c0_64, %c0_65] : memref<256x8xf32, #tpu.memory_space<vmem>>, vector<256x8xf32>
    %105 = arith.truncf %104 : vector<256x8xf32> to vector<256x8xbf16>
    %c1_66 = arith.constant 1 : index
    %c0_67 = arith.constant 0 : index
    %c0_68 = arith.constant 0 : index
    %106 = vector.load %arg5[%c1_66, %c0_67, %c0_68] : memref<2x256x8xbf16, #tpu.memory_space<vmem>>, vector<1x256x8xbf16>
    %107 = vector.shape_cast %106 : vector<1x256x8xbf16> to vector<256x8xbf16>
    %108 = vector.shape_cast %105 : vector<256x8xbf16> to vector<1x256x8xbf16>
    tpu.vector_store %arg5[%c1_66, %c0_67, %c0_68], %108 {strides = array<i32>} : memref<2x256x8xbf16, #tpu.memory_space<vmem>>, vector<1x256x8xbf16>,
    %cst_69 = arith.constant dense<0.000000e+00> : vector<8xf32>
    %109 = vector.multi_reduction <add>, %104, %cst_69 [0] : vector<256x8xf32> to vector<8xf32>
    %110 = vector.shape_cast %109 : vector<8xf32> to vector<1x8xf32>
    %111 = arith.mulf %104, %104 : vector<256x8xf32>
    %cst_70 = arith.constant dense<0.000000e+00> : vector<8xf32>
    %112 = vector.multi_reduction <add>, %111, %cst_70 [0] : vector<256x8xf32> to vector<8xf32>
    %113 = vector.shape_cast %112 : vector<8xf32> to vector<1x8xf32>
    %114 = tpu.concatenate %110, %113 in 0 : vector<1x8xf32>, vector<1x8xf32> -> vector<2x8xf32>
    %c1_71 = arith.constant 1 : index
    %c0_72 = arith.constant 0 : index
    %c0_73 = arith.constant 0 : index
    %115 = vector.load %arg6[%c1_71, %c0_72, %c0_73] : memref<2x2x8xf32, #tpu.memory_space<vmem>>, vector<1x2x8xf32>
    %116 = vector.shape_cast %115 : vector<1x2x8xf32> to vector<2x8xf32>
    %117 = vector.shape_cast %114 : vector<2x8xf32> to vector<1x2x8xf32>
    tpu.vector_store %arg6[%c1_71, %c0_72, %c0_73], %117 {strides = array<i32>} : memref<2x2x8xf32, #tpu.memory_space<vmem>>, vector<1x2x8xf32>,
    return
  }
  func.func @transform_0(%arg0: i32) -> (i32, i32, i32) {
    %c0_i32 = arith.constant 0 : i32
    %c0_i32_0 = arith.constant 0 : i32
    %c0_i32_1 = arith.constant 0 : i32
    return %arg0, %c0_i32, %c0_i32_0 : i32, i32, i32
  }
  func.func @transform_1(%arg0: i32) -> (i32, i32, i32) {
    %c0_i32 = arith.constant 0 : i32
    %c0_i32_0 = arith.constant 0 : i32
    %c0_i32_1 = arith.constant 0 : i32
    %c0_i32_2 = arith.constant 0 : i32
    return %c0_i32, %c0_i32_0, %c0_i32_1 : i32, i32, i32
  }
  func.func @transform_2(%arg0: i32) -> (i32, i32) {
    %c0_i32 = arith.constant 0 : i32
    %c0_i32_0 = arith.constant 0 : i32
    %c0_i32_1 = arith.constant 0 : i32
    return %c0_i32, %c0_i32_0 : i32, i32
  }
  func.func @transform_3(%arg0: i32) -> (i32, i32) {
    %c0_i32 = arith.constant 0 : i32
    %c0_i32_0 = arith.constant 0 : i32
    %c0_i32_1 = arith.constant 0 : i32
    return %c0_i32, %c0_i32_0 : i32, i32
  }
  func.func @transform_4(%arg0: i32) -> (i32, i32, i32) {
    %c0_i32 = arith.constant 0 : i32
    %c0_i32_0 = arith.constant 0 : i32
    %c0_i32_1 = arith.constant 0 : i32
    return %arg0, %c0_i32, %c0_i32_0 : i32, i32, i32
  }
  func.func @transform_5(%arg0: i32) -> (i32, i32, i32) {
    %c0_i32 = arith.constant 0 : i32
    %c0_i32_0 = arith.constant 0 : i32
    %c0_i32_1 = arith.constant 0 : i32
    return %arg0, %c0_i32, %c0_i32_0 : i32, i32, i32
  }
}

</mosaic_0001>

<llo_original>
// kernel: tpu_custom_call.1
$region0: #{tpu_custom_call.1}
  #allocation0 [shape = 'u32[]', space=smem, size = 0x4, offset = 0x4, fixed_abs, tag = 'smem constant byte address 0x4 - core index']
  #allocation1 [shape = 'u32[72,128]{1,0:T(1,128)}', space=vmem, size = 0x9000, scoped, tag = 'internal scratch']
  #allocation2 [shape = 'f32[256,8]{1,0:T(8,128)}', space=vmem, size = 0x20000, scoped, tag = 'scratch operand']
  %s0 = inlined_call_operand.vmem [shape: f32[2,256,8], index: 0, kind: input, shape index: {}]
  %s1 = inlined_call_operand.vmem [shape: bf16[3,24,8], index: 1, kind: input, shape index: {}]
  %s2 = inlined_call_operand.vmem [shape: f32[1,8], index: 2, kind: input, shape index: {}]
  %s3 = inlined_call_operand.vmem [shape: f32[1,8], index: 3, kind: input, shape index: {}]
  %s4 = inlined_call_operand.vmem [shape: bf16[2,256,8], index: 4, kind: output, shape index: {0}]
  %s5 = inlined_call_operand.hbm [shape: f32[2,2,8], index: 5, kind: output, shape index: {1}]
  %6 = xla_tuple %s4, %s5
  %s7 = sld [smem:[#allocation0]]
  $region34: #{tpu_custom_call.1} parent=0
    _
  %s9 = ssub.s32 1, %s7
  %s10 = scalar_select 0, %s9, %s7
  $region1: #{tpu_custom_call.1} parent=0
    #allocation3 [shape = 'u8[2048]{0}', space=vmem, size = 0x800, scoped, tag = 'output window, operand 1, single buffered']
    #allocation4 [shape = 's32[1]{0}', space=sflag, size = 0x4, scoped, tag = 'scoped memory for tpu_custom_call.1']
    %11 = vsyncpa [#allocation4], 0
    // Predicated region
    $region2: #{tpu_custom_call.1} parent=1 // pred_check
      _
    $region3: #{tpu_custom_call.1} parent=1 // pred_check_branch
      %13 = sbr.rel (0) target = $region5
    $region4: #{tpu_custom_call.1} parent=1 // pred_region
      _
    $region5: #{tpu_custom_call.1} parent=1 // pred_fallthru
      _
    // Predicated region
    $region6: #{tpu_custom_call.1} parent=1 // pred_check
      _
    $region7: #{tpu_custom_call.1} parent=1 // pred_check_branch
      %15 = sbr.rel (0) target = $region9
    $region8: #{tpu_custom_call.1} parent=1 // pred_region
      _
    $region9: #{tpu_custom_call.1} parent=1 // pred_fallthru
      _
    // Predicated region
    $region10: #{tpu_custom_call.1} parent=1 // pred_check
      _
    $region11: #{tpu_custom_call.1} parent=1 // pred_check_branch
      %17 = sbr.rel (0) target = $region13
    $region12: #{tpu_custom_call.1} parent=1 // pred_region
      _
    $region13: #{tpu_custom_call.1} parent=1 // pred_fallthru
      _
    // Predicated region
    $region14: #{tpu_custom_call.1} parent=1 // pred_check
      _
    $region15: #{tpu_custom_call.1} parent=1 // pred_check_branch
      %19 = sbr.rel (0) target = $region17
    $region16: #{tpu_custom_call.1} parent=1 // pred_region
      _
    $region17: #{tpu_custom_call.1} parent=1 // pred_fallthru
      _
    %v23 = vlaneseq
    %v24 = vshrl.u32 %v23, 7
    %v25 = vadd.s32 %v24, 8
    %v26 = vadd.s32 %v24, 16
    %v27 = vadd.s32 %v24, 24
    %v28 = vadd.s32 %v24, 32
    %v29 = vadd.s32 %v24, 40
    %v30 = vadd.s32 %v24, 48
    %v31 = vadd.s32 %v24, 56
    %v32 = vadd.s32 %v24, 64
    %v33 = vadd.s32 %v24, 72
    %v34 = vadd.s32 %v24, 80
    %v35 = vadd.s32 %v24, 88
    %v36 = vadd.s32 %v24, 96
    %v37 = vadd.s32 %v24, 104
    %v38 = vadd.s32 %v24, 112
    %v39 = vadd.s32 %v24, 120
    %v40 = vadd.s32 %v24, 128
    %v41 = vadd.s32 %v24, 136
    %v42 = vadd.s32 %v24, 144
    %v43 = vadd.s32 %v24, 152
    %v44 = vadd.s32 %v24, 160
    %v45 = vadd.s32 %v24, 168
    %v46 = vadd.s32 %v24, 176
    %v47 = vadd.s32 %v24, 184
    %v48 = vadd.s32 %v24, 192
    %v49 = vadd.s32 %v24, 200
    %v50 = vadd.s32 %v24, 208
    %v51 = vadd.s32 %v24, 216
    %v52 = vadd.s32 %v24, 224
    %v53 = vadd.s32 %v24, 232
    %v54 = vadd.s32 %v24, 240
    %v55 = vadd.s32 %v24, 248
    %vm56 = vcmp.lt.s32.totalorder %v24, 0
    %v57 = vsub.s32 0, %v24
    %v58 = vsel %vm56, %v57, %v24
    %v59 = vshrl.u32 %v58, 4
    %v60 = vand.u32 %v58, 15
    %v61 = vsub.s32 0, %v60
    %v62 = vsel %vm56, %v61, %v60
    %vm63 = vcmp.lt.s32.totalorder %v25, 0
    %v64 = vsub.s32 0, %v25
    %v65 = vsel %vm63, %v64, %v25
    %v66 = vshrl.u32 %v65, 4
    %v67 = vand.u32 %v65, 15
    %v68 = vsub.s32 0, %v67
    %v69 = vsel %vm63, %v68, %v67
    %vm70 = vcmp.lt.s32.totalorder %v26, 0
    %v71 = vsub.s32 0, %v26
    %v72 = vsel %vm70, %v71, %v26
    %v73 = vshrl.u32 %v72, 4
    %v74 = vand.u32 %v72, 15
    %v75 = vsub.s32 0, %v74
    %v76 = vsel %vm70, %v75, %v74
    %vm77 = vcmp.lt.s32.totalorder %v27, 0
    %v78 = vsub.s32 0, %v27
    %v79 = vsel %vm77, %v78, %v27
    %v80 = vshrl.u32 %v79, 4
    %v81 = vand.u32 %v79, 15
    %v82 = vsub.s32 0, %v81
    %v83 = vsel %vm77, %v82, %v81
    %vm84 = vcmp.lt.s32.totalorder %v28, 0
    %v85 = vsub.s32 0, %v28
    %v86 = vsel %vm84, %v85, %v28
    %v87 = vshrl.u32 %v86, 4
    %v88 = vand.u32 %v86, 15
    %v89 = vsub.s32 0, %v88
    %v90 = vsel %vm84, %v89, %v88
    %vm91 = vcmp.lt.s32.totalorder %v29, 0
    %v92 = vsub.s32 0, %v29
    %v93 = vsel %vm91, %v92, %v29
    %v94 = vshrl.u32 %v93, 4
    %v95 = vand.u32 %v93, 15
    %v96 = vsub.s32 0, %v95
    %v97 = vsel %vm91, %v96, %v95
    %vm98 = vcmp.lt.s32.totalorder %v30, 0
    %v99 = vsub.s32 0, %v30
    %v100 = vsel %vm98, %v99, %v30
    %v101 = vshrl.u32 %v100, 4
    %v102 = vand.u32 %v100, 15
    %v103 = vsub.s32 0, %v102
    %v104 = vsel %vm98, %v103, %v102
    %vm105 = vcmp.lt.s32.totalorder %v31, 0
    %v106 = vsub.s32 0, %v31
    %v107 = vsel %vm105, %v106, %v31
    %v108 = vshrl.u32 %v107, 4
    %v109 = vand.u32 %v107, 15
    %v110 = vsub.s32 0, %v109
    %v111 = vsel %vm105, %v110, %v109
    %vm112 = vcmp.lt.s32.totalorder %v32, 0
    %v113 = vsub.s32 0, %v32
    %v114 = vsel %vm112, %v113, %v32
    %v115 = vshrl.u32 %v114, 4
    %v116 = vand.u32 %v114, 15
    %v117 = vsub.s32 0, %v116
    %v118 = vsel %vm112, %v117, %v116
    %vm119 = vcmp.lt.s32.totalorder %v33, 0
    %v120 = vsub.s32 0, %v33
    %v121 = vsel %vm119, %v120, %v33
    %v122 = vshrl.u32 %v121, 4
    %v123 = vand.u32 %v121, 15
    %v124 = vsub.s32 0, %v123
    %v125 = vsel %vm119, %v124, %v123
    %vm126 = vcmp.lt.s32.totalorder %v34, 0
    %v127 = vsub.s32 0, %v34
    %v128 = vsel %vm126, %v127, %v34
    %v129 = vshrl.u32 %v128, 4
    %v130 = vand.u32 %v128, 15
    %v131 = vsub.s32 0, %v130
    %v132 = vsel %vm126, %v131, %v130
    %vm133 = vcmp.lt.s32.totalorder %v35, 0
    %v134 = vsub.s32 0, %v35
    %v135 = vsel %vm133, %v134, %v35
    %v136 = vshrl.u32 %v135, 4
    %v137 = vand.u32 %v135, 15
    %v138 = vsub.s32 0, %v137
    %v139 = vsel %vm133, %v138, %v137
    %vm140 = vcmp.lt.s32.totalorder %v36, 0
    %v141 = vsub.s32 0, %v36
    %v142 = vsel %vm140, %v141, %v36
    %v143 = vshrl.u32 %v142, 4
    %v144 = vand.u32 %v142, 15
    %v145 = vsub.s32 0, %v144
    %v146 = vsel %vm140, %v145, %v144
    %vm147 = vcmp.lt.s32.totalorder %v37, 0
    %v148 = vsub.s32 0, %v37
    %v149 = vsel %vm147, %v148, %v37
    %v150 = vshrl.u32 %v149, 4
    %v151 = vand.u32 %v149, 15
    %v152 = vsub.s32 0, %v151
    %v153 = vsel %vm147, %v152, %v151
    %vm154 = vcmp.lt.s32.totalorder %v38, 0
    %v155 = vsub.s32 0, %v38
    %v156 = vsel %vm154, %v155, %v38
    %v157 = vshrl.u32 %v156, 4
    %v158 = vand.u32 %v156, 15
    %v159 = vsub.s32 0, %v158
    %v160 = vsel %vm154, %v159, %v158
    %vm161 = vcmp.lt.s32.totalorder %v39, 0
    %v162 = vsub.s32 0, %v39
    %v163 = vsel %vm161, %v162, %v39
    %v164 = vshrl.u32 %v163, 4
    %v165 = vand.u32 %v163, 15
    %v166 = vsub.s32 0, %v165
    %v167 = vsel %vm161, %v166, %v165
    %vm168 = vcmp.lt.s32.totalorder %v40, 0
    %v169 = vsub.s32 0, %v40
    %v170 = vsel %vm168, %v169, %v40
    %v171 = vshrl.u32 %v170, 4
    %v172 = vand.u32 %v170, 15
    %v173 = vsub.s32 0, %v172
    %v174 = vsel %vm168, %v173, %v172
    %vm175 = vcmp.lt.s32.totalorder %v41, 0
    %v176 = vsub.s32 0, %v41
    %v177 = vsel %vm175, %v176, %v41
    %v178 = vshrl.u32 %v177, 4
    %v179 = vand.u32 %v177, 15
    %v180 = vsub.s32 0, %v179
    %v181 = vsel %vm175, %v180, %v179
    %vm182 = vcmp.lt.s32.totalorder %v42, 0
    %v183 = vsub.s32 0, %v42
    %v184 = vsel %vm182, %v183, %v42
    %v185 = vshrl.u32 %v184, 4
    %v186 = vand.u32 %v184, 15
    %v187 = vsub.s32 0, %v186
    %v188 = vsel %vm182, %v187, %v186
    %vm189 = vcmp.lt.s32.totalorder %v43, 0
    %v190 = vsub.s32 0, %v43
    %v191 = vsel %vm189, %v190, %v43
    %v192 = vshrl.u32 %v191, 4
    %v193 = vand.u32 %v191, 15
    %v194 = vsub.s32 0, %v193
    %v195 = vsel %vm189, %v194, %v193
    %vm196 = vcmp.lt.s32.totalorder %v44, 0
    %v197 = vsub.s32 0, %v44
    %v198 = vsel %vm196, %v197, %v44
    %v199 = vshrl.u32 %v198, 4
    %v200 = vand.u32 %v198, 15
    %v201 = vsub.s32 0, %v200
    %v202 = vsel %vm196, %v201, %v200
    %vm203 = vcmp.lt.s32.totalorder %v45, 0
    %v204 = vsub.s32 0, %v45
    %v205 = vsel %vm203, %v204, %v45
    %v206 = vshrl.u32 %v205, 4
    %v207 = vand.u32 %v205, 15
    %v208 = vsub.s32 0, %v207
    %v209 = vsel %vm203, %v208, %v207
    %vm210 = vcmp.lt.s32.totalorder %v46, 0
    %v211 = vsub.s32 0, %v46
    %v212 = vsel %vm210, %v211, %v46
    %v213 = vshrl.u32 %v212, 4
    %v214 = vand.u32 %v212, 15
    %v215 = vsub.s32 0, %v214
    %v216 = vsel %vm210, %v215, %v214
    %vm217 = vcmp.lt.s32.totalorder %v47, 0
    %v218 = vsub.s32 0, %v47
    %v219 = vsel %vm217, %v218, %v47
    %v220 = vshrl.u32 %v219, 4
    %v221 = vand.u32 %v219, 15
    %v222 = vsub.s32 0, %v221
    %v223 = vsel %vm217, %v222, %v221
    %vm224 = vcmp.lt.s32.totalorder %v48, 0
    %v225 = vsub.s32 0, %v48
    %v226 = vsel %vm224, %v225, %v48
    %v227 = vshrl.u32 %v226, 4
    %v228 = vand.u32 %v226, 15
    %v229 = vsub.s32 0, %v228
    %v230 = vsel %vm224, %v229, %v228
    %vm231 = vcmp.lt.s32.totalorder %v49, 0
    %v232 = vsub.s32 0, %v49
    %v233 = vsel %vm231, %v232, %v49
    %v234 = vshrl.u32 %v233, 4
    %v235 = vand.u32 %v233, 15
    %v236 = vsub.s32 0, %v235
    %v237 = vsel %vm231, %v236, %v235
    %vm238 = vcmp.lt.s32.totalorder %v50, 0
    %v239 = vsub.s32 0, %v50
    %v240 = vsel %vm238, %v239, %v50
    %v241 = vshrl.u32 %v240, 4
    %v242 = vand.u32 %v240, 15
    %v243 = vsub.s32 0, %v242
    %v244 = vsel %vm238, %v243, %v242
    %vm245 = vcmp.lt.s32.totalorder %v51, 0
    %v246 = vsub.s32 0, %v51
    %v247 = vsel %vm245, %v246, %v51
    %v248 = vshrl.u32 %v247, 4
    %v249 = vand.u32 %v247, 15
    %v250 = vsub.s32 0, %v249
    %v251 = vsel %vm245, %v250, %v249
    %vm252 = vcmp.lt.s32.totalorder %v52, 0
    %v253 = vsub.s32 0, %v52
    %v254 = vsel %vm252, %v253, %v52
    %v255 = vshrl.u32 %v254, 4
    %v256 = vand.u32 %v254, 15
    %v257 = vsub.s32 0, %v256
    %v258 = vsel %vm252, %v257, %v256
    %vm259 = vcmp.lt.s32.totalorder %v53, 0
    %v260 = vsub.s32 0, %v53
    %v261 = vsel %vm259, %v260, %v53
    %v262 = vshrl.u32 %v261, 4
    %v263 = vand.u32 %v261, 15
    %v264 = vsub.s32 0, %v263
    %v265 = vsel %vm259, %v264, %v263
    %vm266 = vcmp.lt.s32.totalorder %v54, 0
    %v267 = vsub.s32 0, %v54
    %v268 = vsel %vm266, %v267, %v54
    %v269 = vshrl.u32 %v268, 4
    %v270 = vand.u32 %v268, 15
    %v271 = vsub.s32 0, %v270
    %v272 = vsel %vm266, %v271, %v270
    %vm273 = vcmp.lt.s32.totalorder %v55, 0
    %v274 = vsub.s32 0, %v55
    %v275 = vsel %vm273, %v274, %v55
    %v276 = vshrl.u32 %v275, 4
    %v277 = vand.u32 %v275, 15
    %v278 = vsub.s32 0, %v277
    %v279 = vsel %vm273, %v278, %v277
    %vm280 = vcmp.ne.s32.totalorder %v62, 0
    %vm281 = vcmp.ne.s32.totalorder %v69, 0
    %vm282 = vcmp.ne.s32.totalorder %v76, 0
    %vm283 = vcmp.ne.s32.totalorder %v83, 0
    %vm284 = vcmp.ne.s32.totalorder %v90, 0
    %vm285 = vcmp.ne.s32.totalorder %v97, 0
    %vm286 = vcmp.ne.s32.totalorder %v104, 0
    %vm287 = vcmp.ne.s32.totalorder %v111, 0
    %vm288 = vcmp.ne.s32.totalorder %v118, 0
    %vm289 = vcmp.ne.s32.totalorder %v125, 0
    %vm290 = vcmp.ne.s32.totalorder %v132, 0
    %vm291 = vcmp.ne.s32.totalorder %v139, 0
    %vm292 = vcmp.ne.s32.totalorder %v146, 0
    %vm293 = vcmp.ne.s32.totalorder %v153, 0
    %vm294 = vcmp.ne.s32.totalorder %v160, 0
    %vm295 = vcmp.ne.s32.totalorder %v167, 0
    %vm296 = vcmp.ne.s32.totalorder %v174, 0
    %vm297 = vcmp.ne.s32.totalorder %v181, 0
    %vm298 = vcmp.ne.s32.totalorder %v188, 0
    %vm299 = vcmp.ne.s32.totalorder %v195, 0
    %vm300 = vcmp.ne.s32.totalorder %v202, 0
    %vm301 = vcmp.ne.s32.totalorder %v209, 0
    %vm302 = vcmp.ne.s32.totalorder %v216, 0
    %vm303 = vcmp.ne.s32.totalorder %v223, 0
    %vm304 = vcmp.ne.s32.totalorder %v230, 0
    %vm305 = vcmp.ne.s32.totalorder %v237, 0
    %vm306 = vcmp.ne.s32.totalorder %v244, 0
    %vm307 = vcmp.ne.s32.totalorder %v251, 0
    %vm308 = vcmp.ne.s32.totalorder %v258, 0
    %vm309 = vcmp.ne.s32.totalorder %v265, 0
    %vm310 = vcmp.ne.s32.totalorder %v272, 0
    %vm311 = vcmp.ne.s32.totalorder %v279, 0
    %vm312 = vcmp.lt.s32.totalorder %v62, 0
    %vm313 = vcmp.lt.s32.totalorder %v69, 0
    %vm314 = vcmp.lt.s32.totalorder %v76, 0
    %vm315 = vcmp.lt.s32.totalorder %v83, 0
    %vm316 = vcmp.lt.s32.totalorder %v90, 0
    %vm317 = vcmp.lt.s32.totalorder %v97, 0
    %vm318 = vcmp.lt.s32.totalorder %v104, 0
    %vm319 = vcmp.lt.s32.totalorder %v111, 0
    %vm320 = vcmp.lt.s32.totalorder %v118, 0
    %vm321 = vcmp.lt.s32.totalorder %v125, 0
    %vm322 = vcmp.lt.s32.totalorder %v132, 0
    %vm323 = vcmp.lt.s32.totalorder %v139, 0
    %vm324 = vcmp.lt.s32.totalorder %v146, 0
    %vm325 = vcmp.lt.s32.totalorder %v153, 0
    %vm326 = vcmp.lt.s32.totalorder %v160, 0
    %vm327 = vcmp.lt.s32.totalorder %v167, 0
    %vm328 = vcmp.lt.s32.totalorder %v174, 0
    %vm329 = vcmp.lt.s32.totalorder %v181, 0
    %vm330 = vcmp.lt.s32.totalorder %v188, 0
    %vm331 = vcmp.lt.s32.totalorder %v195, 0
    %vm332 = vcmp.lt.s32.totalorder %v202, 0
    %vm333 = vcmp.lt.s32.totalorder %v209, 0
    %vm334 = vcmp.lt.s32.totalorder %v216, 0
    %vm335 = vcmp.lt.s32.totalorder %v223, 0
    %vm336 = vcmp.lt.s32.totalorder %v230, 0
    %vm337 = vcmp.lt.s32.totalorder %v237, 0
    %vm338 = vcmp.lt.s32.totalorder %v244, 0
    %vm339 = vcmp.lt.s32.totalorder %v251, 0
    %vm340 = vcmp.lt.s32.totalorder %v258, 0
    %vm341 = vcmp.lt.s32.totalorder %v265, 0
    %vm342 = vcmp.lt.s32.totalorder %v272, 0
    %vm343 = vcmp.lt.s32.totalorder %v279, 0
    %vm344 = vmand %vm312, %vm280
    %vm345 = vmand %vm313, %vm281
    %vm346 = vmand %vm314, %vm282
    %vm347 = vmand %vm315, %vm283
    %vm348 = vmand %vm316, %vm284
    %vm349 = vmand %vm317, %vm285
    %vm350 = vmand %vm318, %vm286
    %vm351 = vmand %vm319, %vm287
    %vm352 = vmand %vm320, %vm288
    %vm353 = vmand %vm321, %vm289
    %vm354 = vmand %vm322, %vm290
    %vm355 = vmand %vm323, %vm291
    %vm356 = vmand %vm324, %vm292
    %vm357 = vmand %vm325, %vm293
    %vm358 = vmand %vm326, %vm294
    %vm359 = vmand %vm327, %vm295
    %vm360 = vmand %vm328, %vm296
    %vm361 = vmand %vm329, %vm297
    %vm362 = vmand %vm330, %vm298
    %vm363 = vmand %vm331, %vm299
    %vm364 = vmand %vm332, %vm300
    %vm365 = vmand %vm333, %vm301
    %vm366 = vmand %vm334, %vm302
    %vm367 = vmand %vm335, %vm303
    %vm368 = vmand %vm336, %vm304
    %vm369 = vmand %vm337, %vm305
    %vm370 = vmand %vm338, %vm306
    %vm371 = vmand %vm339, %vm307
    %vm372 = vmand %vm340, %vm308
    %vm373 = vmand %vm341, %vm309
    %vm374 = vmand %vm342, %vm310
    %vm375 = vmand %vm343, %vm311
    %v376 = vadd.s32 %v62, 16
    %v377 = vadd.s32 %v69, 16
    %v378 = vadd.s32 %v76, 16
    %v379 = vadd.s32 %v83, 16
    %v380 = vadd.s32 %v90, 16
    %v381 = vadd.s32 %v97, 16
    %v382 = vadd.s32 %v104, 16
    %v383 = vadd.s32 %v111, 16
    %v384 = vadd.s32 %v118, 16
    %v385 = vadd.s32 %v125, 16
    %v386 = vadd.s32 %v132, 16
    %v387 = vadd.s32 %v139, 16
    %v388 = vadd.s32 %v146, 16
    %v389 = vadd.s32 %v153, 16
    %v390 = vadd.s32 %v160, 16
    %v391 = vadd.s32 %v167, 16
    %v392 = vadd.s32 %v174, 16
    %v393 = vadd.s32 %v181, 16
    %v394 = vadd.s32 %v188, 16
    %v395 = vadd.s32 %v195, 16
    %v396 = vadd.s32 %v202, 16
    %v397 = vadd.s32 %v209, 16
    %v398 = vadd.s32 %v216, 16
    %v399 = vadd.s32 %v223, 16
    %v400 = vadd.s32 %v230, 16
    %v401 = vadd.s32 %v237, 16
    %v402 = vadd.s32 %v244, 16
    %v403 = vadd.s32 %v251, 16
    %v404 = vadd.s32 %v258, 16
    %v405 = vadd.s32 %v265, 16
    %v406 = vadd.s32 %v272, 16
    %v407 = vadd.s32 %v279, 16
    %v408 = vsel %vm344, %v376, %v62
    %v409 = vsel %vm345, %v377, %v69
    %v410 = vsel %vm346, %v378, %v76
    %v411 = vsel %vm347, %v379, %v83
    %v412 = vsel %vm348, %v380, %v90
    %v413 = vsel %vm349, %v381, %v97
    %v414 = vsel %vm350, %v382, %v104
    %v415 = vsel %vm351, %v383, %v111
    %v416 = vsel %vm352, %v384, %v118
    %v417 = vsel %vm353, %v385, %v125
    %v418 = vsel %vm354, %v386, %v132
    %v419 = vsel %vm355, %v387, %v139
    %v420 = vsel %vm356, %v388, %v146
    %v421 = vsel %vm357, %v389, %v153
    %v422 = vsel %vm358, %v390, %v160
    %v423 = vsel %vm359, %v391, %v167
    %v424 = vsel %vm360, %v392, %v174
    %v425 = vsel %vm361, %v393, %v181
    %v426 = vsel %vm362, %v394, %v188
    %v427 = vsel %vm363, %v395, %v195
    %v428 = vsel %vm364, %v396, %v202
    %v429 = vsel %vm365, %v397, %v209
    %v430 = vsel %vm366, %v398, %v216
    %v431 = vsel %vm367, %v399, %v223
    %v432 = vsel %vm368, %v400, %v230
    %v433 = vsel %vm369, %v401, %v237
    %v434 = vsel %vm370, %v402, %v244
    %v435 = vsel %vm371, %v403, %v251
    %v436 = vsel %vm372, %v404, %v258
    %v437 = vsel %vm373, %v405, %v265
    %v438 = vsel %vm374, %v406, %v272
    %v439 = vsel %vm375, %v407, %v279
    %vm440 = vcmp.ne.s32.totalorder %v408, 0
    %vm441 = vcmp.ne.s32.totalorder %v409, 0
    %vm442 = vcmp.ne.s32.totalorder %v410, 0
    %vm443 = vcmp.ne.s32.totalorder %v411, 0
    %vm444 = vcmp.ne.s32.totalorder %v412, 0
    %vm445 = vcmp.ne.s32.totalorder %v413, 0
    %vm446 = vcmp.ne.s32.totalorder %v414, 0
    %vm447 = vcmp.ne.s32.totalorder %v415, 0
    %vm448 = vcmp.ne.s32.totalorder %v416, 0
    %vm449 = vcmp.ne.s32.totalorder %v417, 0
    %vm450 = vcmp.ne.s32.totalorder %v418, 0
    %vm451 = vcmp.ne.s32.totalorder %v419, 0
    %vm452 = vcmp.ne.s32.totalorder %v420, 0
    %vm453 = vcmp.ne.s32.totalorder %v421, 0
    %vm454 = vcmp.ne.s32.totalorder %v422, 0
    %vm455 = vcmp.ne.s32.totalorder %v423, 0
    %vm456 = vcmp.ne.s32.totalorder %v424, 0
    %vm457 = vcmp.ne.s32.totalorder %v425, 0
    %vm458 = vcmp.ne.s32.totalorder %v426, 0
    %vm459 = vcmp.ne.s32.totalorder %v427, 0
    %vm460 = vcmp.ne.s32.totalorder %v428, 0
    %vm461 = vcmp.ne.s32.totalorder %v429, 0
    %vm462 = vcmp.ne.s32.totalorder %v430, 0
    %vm463 = vcmp.ne.s32.totalorder %v431, 0
    %vm464 = vcmp.ne.s32.totalorder %v432, 0
    %vm465 = vcmp.ne.s32.totalorder %v433, 0
    %vm466 = vcmp.ne.s32.totalorder %v434, 0
    %vm467 = vcmp.ne.s32.totalorder %v435, 0
    %vm468 = vcmp.ne.s32.totalorder %v436, 0
    %vm469 = vcmp.ne.s32.totalorder %v437, 0
    %vm470 = vcmp.ne.s32.totalorder %v438, 0
    %vm471 = vcmp.ne.s32.totalorder %v439, 0
    %vm472 = vcmp.ne.s32.totalorder %v408, 15
    %vm473 = vcmp.ne.s32.totalorder %v409, 15
    %vm474 = vcmp.ne.s32.totalorder %v410, 15
    %vm475 = vcmp.ne.s32.totalorder %v411, 15
    %vm476 = vcmp.ne.s32.totalorder %v412, 15
    %vm477 = vcmp.ne.s32.totalorder %v413, 15
    %vm478 = vcmp.ne.s32.totalorder %v414, 15
    %vm479 = vcmp.ne.s32.totalorder %v415, 15
    %vm480 = vcmp.ne.s32.totalorder %v416, 15
    %vm481 = vcmp.ne.s32.totalorder %v417, 15
    %vm482 = vcmp.ne.s32.totalorder %v418, 15
    %vm483 = vcmp.ne.s32.totalorder %v419, 15
    %vm484 = vcmp.ne.s32.totalorder %v420, 15
    %vm485 = vcmp.ne.s32.totalorder %v421, 15
    %vm486 = vcmp.ne.s32.totalorder %v422, 15
    %vm487 = vcmp.ne.s32.totalorder %v423, 15
    %vm488 = vcmp.ne.s32.totalorder %v424, 15
    %vm489 = vcmp.ne.s32.totalorder %v425, 15
    %vm490 = vcmp.ne.s32.totalorder %v426, 15
    %vm491 = vcmp.ne.s32.totalorder %v427, 15
    %vm492 = vcmp.ne.s32.totalorder %v428, 15
    %vm493 = vcmp.ne.s32.totalorder %v429, 15
    %vm494 = vcmp.ne.s32.totalorder %v430, 15
    %vm495 = vcmp.ne.s32.totalorder %v431, 15
    %vm496 = vcmp.ne.s32.totalorder %v432, 15
    %vm497 = vcmp.ne.s32.totalorder %v433, 15
    %vm498 = vcmp.ne.s32.totalorder %v434, 15
    %vm499 = vcmp.ne.s32.totalorder %v435, 15
    %vm500 = vcmp.ne.s32.totalorder %v436, 15
    %vm501 = vcmp.ne.s32.totalorder %v437, 15
    %vm502 = vcmp.ne.s32.totalorder %v438, 15
    %vm503 = vcmp.ne.s32.totalorder %v439, 15
    %v504 = vld [vmem:[%s0] sm:$0xff]
    %v505 = vld [vmem:[%s0 + $0x8] sm:$0xff]
    %v506 = vld [vmem:[%s0 + $0x10] sm:$0xff]
    %v507 = vld [vmem:[%s0 + $0x18] sm:$0xff]
    %v508 = vld [vmem:[%s0 + $0x20] sm:$0xff]
    %v509 = vld [vmem:[%s0 + $0x28] sm:$0xff]
    %v510 = vld [vmem:[%s0 + $0x30] sm:$0xff]
    %v511 = vld [vmem:[%s0 + $0x38] sm:$0xff]
    %v512 = vld [vmem:[%s0 + $0x40] sm:$0xff]
    %v513 = vld [vmem:[%s0 + $0x48] sm:$0xff]
    %v514 = vld [vmem:[%s0 + $0x50] sm:$0xff]
    %v515 = vld [vmem:[%s0 + $0x58] sm:$0xff]
    %v516 = vld [vmem:[%s0 + $0x60] sm:$0xff]
    %v517 = vld [vmem:[%s0 + $0x68] sm:$0xff]
    %v518 = vld [vmem:[%s0 + $0x70] sm:$0xff]
    %v519 = vld [vmem:[%s0 + $0x78] sm:$0xff]
    %v520 = vld [vmem:[%s0 + $0x80] sm:$0xff]
    %v521 = vld [vmem:[%s0 + $0x88] sm:$0xff]
    %v522 = vld [vmem:[%s0 + $0x90] sm:$0xff]
    %v523 = vld [vmem:[%s0 + $0x98] sm:$0xff]
    %v524 = vld [vmem:[%s0 + $0xa0] sm:$0xff]
    %v525 = vld [vmem:[%s0 + $0xa8] sm:$0xff]
    %v526 = vld [vmem:[%s0 + $0xb0] sm:$0xff]
    %v527 = vld [vmem:[%s0 + $0xb8] sm:$0xff]
    %v528 = vld [vmem:[%s0 + $0xc0] sm:$0xff]
    %v529 = vld [vmem:[%s0 + $0xc8] sm:$0xff]
    %v530 = vld [vmem:[%s0 + $0xd0] sm:$0xff]
    %v531 = vld [vmem:[%s0 + $0xd8] sm:$0xff]
    %v532 = vld [vmem:[%s0 + $0xe0] sm:$0xff]
    %v533 = vld [vmem:[%s0 + $0xe8] sm:$0xff]
    %v534 = vld [vmem:[%s0 + $0xf0] sm:$0xff]
    %v535 = vld [vmem:[%s0 + $0xf8] sm:$0xff]
    %v536 = vpack.c.bf16 %v504, %v504
    %v537 = vpack.c.bf16 %v505, %v505
    %v538 = vpack.c.bf16 %v506, %v506
    %v539 = vpack.c.bf16 %v507, %v507
    %v540 = vpack.c.bf16 %v508, %v508
    %v541 = vpack.c.bf16 %v509, %v509
    %v542 = vpack.c.bf16 %v510, %v510
    %v543 = vpack.c.bf16 %v511, %v511
    %v544 = vpack.c.bf16 %v512, %v512
    %v545 = vpack.c.bf16 %v513, %v513
    %v546 = vpack.c.bf16 %v514, %v514
    %v547 = vpack.c.bf16 %v515, %v515
    %v548 = vpack.c.bf16 %v516, %v516
    %v549 = vpack.c.bf16 %v517, %v517
    %v550 = vpack.c.bf16 %v518, %v518
    %v551 = vpack.c.bf16 %v519, %v519
    %v552 = vpack.c.bf16 %v520, %v520
    %v553 = vpack.c.bf16 %v521, %v521
    %v554 = vpack.c.bf16 %v522, %v522
    %v555 = vpack.c.bf16 %v523, %v523
    %v556 = vpack.c.bf16 %v524, %v524
    %v557 = vpack.c.bf16 %v525, %v525
    %v558 = vpack.c.bf16 %v526, %v526
    %v559 = vpack.c.bf16 %v527, %v527
    %v560 = vpack.c.bf16 %v528, %v528
    %v561 = vpack.c.bf16 %v529, %v529
    %v562 = vpack.c.bf16 %v530, %v530
    %v563 = vpack.c.bf16 %v531, %v531
    %v564 = vpack.c.bf16 %v532, %v532
    %v565 = vpack.c.bf16 %v533, %v533
    %v566 = vpack.c.bf16 %v534, %v534
    %v567 = vpack.c.bf16 %v535, %v535
    %v600 = vunpack.c.l.b16 %v536
    %v601 = vunpack.c.l.b16 %v537
    %v602 = vunpack.c.l.b16 %v538
    %v603 = vunpack.c.l.b16 %v539
    %v604 = vunpack.c.l.b16 %v540
    %v605 = vunpack.c.l.b16 %v541
    %v606 = vunpack.c.l.b16 %v542
    %v607 = vunpack.c.l.b16 %v543
    %v608 = vunpack.c.l.b16 %v544
    %v609 = vunpack.c.l.b16 %v545
    %v610 = vunpack.c.l.b16 %v546
    %v611 = vunpack.c.l.b16 %v547
    %v612 = vunpack.c.l.b16 %v548
    %v613 = vunpack.c.l.b16 %v549
    %v614 = vunpack.c.l.b16 %v550
    %v615 = vunpack.c.l.b16 %v551
    %v616 = vunpack.c.l.b16 %v552
    %v617 = vunpack.c.l.b16 %v553
    %v618 = vunpack.c.l.b16 %v554
    %v619 = vunpack.c.l.b16 %v555
    %v620 = vunpack.c.l.b16 %v556
    %v621 = vunpack.c.l.b16 %v557
    %v622 = vunpack.c.l.b16 %v558
    %v623 = vunpack.c.l.b16 %v559
    %v624 = vunpack.c.l.b16 %v560
    %v625 = vunpack.c.l.b16 %v561
    %v626 = vunpack.c.l.b16 %v562
    %v627 = vunpack.c.l.b16 %v563
    %v628 = vunpack.c.l.b16 %v564
    %v629 = vunpack.c.l.b16 %v565
    %v630 = vunpack.c.l.b16 %v566
    %v631 = vunpack.c.l.b16 %v567
    %v632 = vpack.c.b16 %v601, %v600
    %v633 = vpack.c.b16 %v603, %v602
    %v634 = vpack.c.b16 %v605, %v604
    %v635 = vpack.c.b16 %v607, %v606
    %v636 = vpack.c.b16 %v609, %v608
    %v637 = vpack.c.b16 %v611, %v610
    %v638 = vpack.c.b16 %v613, %v612
    %v639 = vpack.c.b16 %v615, %v614
    %v640 = vpack.c.b16 %v617, %v616
    %v641 = vpack.c.b16 %v619, %v618
    %v642 = vpack.c.b16 %v621, %v620
    %v643 = vpack.c.b16 %v623, %v622
    %v644 = vpack.c.b16 %v625, %v624
    %v645 = vpack.c.b16 %v627, %v626
    %v646 = vpack.c.b16 %v629, %v628
    %v647 = vpack.c.b16 %v631, %v630
    %vm648 = vsmask.f32 256
    %v650 = vshrl.u32 %v632, 16
    %v652 = vrot.slane %v650, 7
    %v653 = vshll.u32 %v632, 16
    %v655 = vor.u32 %v652, %v653
    %v657 = vshrl.u32 %v633, 16
    %v659 = vrot.slane %v657, 7
    %v660 = vshll.u32 %v633, 16
    %v662 = vor.u32 %v659, %v660
    %v663 = vsel %vm648, %v652, %v662
    %v665 = vshrl.u32 %v634, 16
    %v667 = vrot.slane %v665, 7
    %v668 = vshll.u32 %v634, 16
    %v670 = vor.u32 %v667, %v668
    %v671 = vsel %vm648, %v659, %v670
    %v673 = vshrl.u32 %v635, 16
    %v675 = vrot.slane %v673, 7
    %v676 = vshll.u32 %v635, 16
    %v678 = vor.u32 %v675, %v676
    %v679 = vsel %vm648, %v667, %v678
    %v681 = vshrl.u32 %v636, 16
    %v683 = vrot.slane %v681, 7
    %v684 = vshll.u32 %v636, 16
    %v686 = vor.u32 %v683, %v684
    %v687 = vsel %vm648, %v675, %v686
    %v689 = vshrl.u32 %v637, 16
    %v691 = vrot.slane %v689, 7
    %v692 = vshll.u32 %v637, 16
    %v694 = vor.u32 %v691, %v692
    %v695 = vsel %vm648, %v683, %v694
    %v697 = vshrl.u32 %v638, 16
    %v699 = vrot.slane %v697, 7
    %v700 = vshll.u32 %v638, 16
    %v702 = vor.u32 %v699, %v700
    %v703 = vsel %vm648, %v691, %v702
    %v705 = vshrl.u32 %v639, 16
    %v707 = vrot.slane %v705, 7
    %v708 = vshll.u32 %v639, 16
    %v710 = vor.u32 %v707, %v708
    %v711 = vsel %vm648, %v699, %v710
    %v713 = vshrl.u32 %v640, 16
    %v715 = vrot.slane %v713, 7
    %v716 = vshll.u32 %v640, 16
    %v718 = vor.u32 %v715, %v716
    %v719 = vsel %vm648, %v707, %v718
    %v721 = vshrl.u32 %v641, 16
    %v723 = vrot.slane %v721, 7
    %v724 = vshll.u32 %v641, 16
    %v726 = vor.u32 %v723, %v724
    %v727 = vsel %vm648, %v715, %v726
    %v729 = vshrl.u32 %v642, 16
    %v731 = vrot.slane %v729, 7
    %v732 = vshll.u32 %v642, 16
    %v734 = vor.u32 %v731, %v732
    %v735 = vsel %vm648, %v723, %v734
    %v737 = vshrl.u32 %v643, 16
    %v739 = vrot.slane %v737, 7
    %v740 = vshll.u32 %v643, 16
    %v742 = vor.u32 %v739, %v740
    %v743 = vsel %vm648, %v731, %v742
    %v745 = vshrl.u32 %v644, 16
    %v747 = vrot.slane %v745, 7
    %v748 = vshll.u32 %v644, 16
    %v750 = vor.u32 %v747, %v748
    %v751 = vsel %vm648, %v739, %v750
    %v753 = vshrl.u32 %v645, 16
    %v755 = vrot.slane %v753, 7
    %v756 = vshll.u32 %v645, 16
    %v758 = vor.u32 %v755, %v756
    %v759 = vsel %vm648, %v747, %v758
    %v761 = vshrl.u32 %v646, 16
    %v763 = vrot.slane %v761, 7
    %v764 = vshll.u32 %v646, 16
    %v766 = vor.u32 %v763, %v764
    %v767 = vsel %vm648, %v755, %v766
    %v769 = vshrl.u32 %v647, 16
    %v771 = vrot.slane %v769, 7
    %v772 = vshll.u32 %v647, 16
    %v774 = vor.u32 %v771, %v772
    %v775 = vsel %vm648, %v763, %v774
    %vm792 = vcmask 1040384
    %vm793 = vmand %vm792, %vm648
    %v794 = vsel %vm793, 0, %v655
    %vm795 = vsmask.f32 7424
    %v796 = vrot.slane %v653, 1
    %v797 = vor.u32 %v650, %v796
    %v798 = vrot.slane %v660, 1
    %v799 = vsel %vm795, %v797, %v798
    %v800 = vor.u32 %v657, %v798
    %v801 = vrot.slane %v668, 1
    %v802 = vsel %vm795, %v800, %v801
    %v803 = vor.u32 %v665, %v801
    %v804 = vrot.slane %v676, 1
    %v805 = vsel %vm795, %v803, %v804
    %v806 = vor.u32 %v673, %v804
    %v807 = vrot.slane %v684, 1
    %v808 = vsel %vm795, %v806, %v807
    %v809 = vor.u32 %v681, %v807
    %v810 = vrot.slane %v692, 1
    %v811 = vsel %vm795, %v809, %v810
    %v812 = vor.u32 %v689, %v810
    %v813 = vrot.slane %v700, 1
    %v814 = vsel %vm795, %v812, %v813
    %v815 = vor.u32 %v697, %v813
    %v816 = vrot.slane %v708, 1
    %v817 = vsel %vm795, %v815, %v816
    %v818 = vor.u32 %v705, %v816
    %v819 = vrot.slane %v716, 1
    %v820 = vsel %vm795, %v818, %v819
    %v821 = vor.u32 %v713, %v819
    %v822 = vrot.slane %v724, 1
    %v823 = vsel %vm795, %v821, %v822
    %v824 = vor.u32 %v721, %v822
    %v825 = vrot.slane %v732, 1
    %v826 = vsel %vm795, %v824, %v825
    %v827 = vor.u32 %v729, %v825
    %v828 = vrot.slane %v740, 1
    %v829 = vsel %vm795, %v827, %v828
    %v830 = vor.u32 %v737, %v828
    %v831 = vrot.slane %v748, 1
    %v832 = vsel %vm795, %v830, %v831
    %v833 = vor.u32 %v745, %v831
    %v834 = vrot.slane %v756, 1
    %v835 = vsel %vm795, %v833, %v834
    %v836 = vor.u32 %v753, %v834
    %v837 = vrot.slane %v764, 1
    %v838 = vsel %vm795, %v836, %v837
    %v839 = vor.u32 %v761, %v837
    %v840 = vrot.slane %v772, 1
    %v841 = vsel %vm795, %v839, %v840
    %v842 = vor.u32 %v769, %v840
    %vm859 = vcmask 1047552
    %vm860 = vmand %vm859, %vm795
    %v861 = vsel %vm860, %v842, 0
    %v862 = vsel %vm440, 1, 0
    %v863 = vsel %vm441, 1, 0
    %v864 = vsel %vm442, 1, 0
    %v865 = vsel %vm443, 1, 0
    %v866 = vsel %vm444, 1, 0
    %v867 = vsel %vm445, 1, 0
    %v868 = vsel %vm446, 1, 0
    %v869 = vsel %vm447, 1, 0
    %v870 = vsel %vm448, 1, 0
    %v871 = vsel %vm449, 1, 0
    %v872 = vsel %vm450, 1, 0
    %v873 = vsel %vm451, 1, 0
    %v874 = vsel %vm452, 1, 0
    %v875 = vsel %vm453, 1, 0
    %v876 = vsel %vm454, 1, 0
    %v877 = vsel %vm455, 1, 0
    %v878 = vsel %vm456, 1, 0
    %v879 = vsel %vm457, 1, 0
    %v880 = vsel %vm458, 1, 0
    %v881 = vsel %vm459, 1, 0
    %v882 = vsel %vm460, 1, 0
    %v883 = vsel %vm461, 1, 0
    %v884 = vsel %vm462, 1, 0
    %v885 = vsel %vm463, 1, 0
    %v886 = vsel %vm464, 1, 0
    %v887 = vsel %vm465, 1, 0
    %v888 = vsel %vm466, 1, 0
    %v889 = vsel %vm467, 1, 0
    %v890 = vsel %vm468, 1, 0
    %v891 = vsel %vm469, 1, 0
    %v892 = vsel %vm470, 1, 0
    %v893 = vsel %vm471, 1, 0
    %vm894 = vcmp.eq.s32.totalorder %v862, 1
    %vm895 = vcmp.eq.s32.totalorder %v863, 1
    %vm896 = vcmp.eq.s32.totalorder %v864, 1
    %vm897 = vcmp.eq.s32.totalorder %v865, 1
    %vm898 = vcmp.eq.s32.totalorder %v866, 1
    %vm899 = vcmp.eq.s32.totalorder %v867, 1
    %vm900 = vcmp.eq.s32.totalorder %v868, 1
    %vm901 = vcmp.eq.s32.totalorder %v869, 1
    %vm902 = vcmp.eq.s32.totalorder %v870, 1
    %vm903 = vcmp.eq.s32.totalorder %v871, 1
    %vm904 = vcmp.eq.s32.totalorder %v872, 1
    %vm905 = vcmp.eq.s32.totalorder %v873, 1
    %vm906 = vcmp.eq.s32.totalorder %v874, 1
    %vm907 = vcmp.eq.s32.totalorder %v875, 1
    %vm908 = vcmp.eq.s32.totalorder %v876, 1
    %vm909 = vcmp.eq.s32.totalorder %v877, 1
    %vm910 = vcmp.eq.s32.totalorder %v878, 1
    %vm911 = vcmp.eq.s32.totalorder %v879, 1
    %vm912 = vcmp.eq.s32.totalorder %v880, 1
    %vm913 = vcmp.eq.s32.totalorder %v881, 1
    %vm914 = vcmp.eq.s32.totalorder %v882, 1
    %vm915 = vcmp.eq.s32.totalorder %v883, 1
    %vm916 = vcmp.eq.s32.totalorder %v884, 1
    %vm917 = vcmp.eq.s32.totalorder %v885, 1
    %vm918 = vcmp.eq.s32.totalorder %v886, 1
    %vm919 = vcmp.eq.s32.totalorder %v887, 1
    %vm920 = vcmp.eq.s32.totalorder %v888, 1
    %vm921 = vcmp.eq.s32.totalorder %v889, 1
    %vm922 = vcmp.eq.s32.totalorder %v890, 1
    %vm923 = vcmp.eq.s32.totalorder %v891, 1
    %vm924 = vcmp.eq.s32.totalorder %v892, 1
    %vm925 = vcmp.eq.s32.totalorder %v893, 1
    %vm926 = vmpackc.low %vm894, %vm894
    %vm927 = vmpackc.low %vm895, %vm895
    %vm928 = vmpackc.low %vm896, %vm896
    %vm929 = vmpackc.low %vm897, %vm897
    %vm930 = vmpackc.low %vm898, %vm898
    %vm931 = vmpackc.low %vm899, %vm899
    %vm932 = vmpackc.low %vm900, %vm900
    %vm933 = vmpackc.low %vm901, %vm901
    %vm934 = vmpackc.low %vm902, %vm902
    %vm935 = vmpackc.low %vm903, %vm903
    %vm936 = vmpackc.low %vm904, %vm904
    %vm937 = vmpackc.low %vm905, %vm905
    %vm938 = vmpackc.low %vm906, %vm906
    %vm939 = vmpackc.low %vm907, %vm907
    %vm940 = vmpackc.low %vm908, %vm908
    %vm941 = vmpackc.low %vm909, %vm909
    %vm942 = vmpackc.low %vm910, %vm910
    %vm943 = vmpackc.low %vm911, %vm911
    %vm944 = vmpackc.low %vm912, %vm912
    %vm945 = vmpackc.low %vm913, %vm913
    %vm946 = vmpackc.low %vm914, %vm914
    %vm947 = vmpackc.low %vm915, %vm915
    %vm948 = vmpackc.low %vm916, %vm916
    %vm949 = vmpackc.low %vm917, %vm917
    %vm950 = vmpackc.low %vm918, %vm918
    %vm951 = vmpackc.low %vm919, %vm919
    %vm952 = vmpackc.low %vm920, %vm920
    %vm953 = vmpackc.low %vm921, %vm921
    %vm954 = vmpackc.low %vm922, %vm922
    %vm955 = vmpackc.low %vm923, %vm923
    %vm956 = vmpackc.low %vm924, %vm924
    %vm957 = vmpackc.low %vm925, %vm925
    %v958 = vsel %vm926, 65537, 0
    %v959 = vsel %vm927, 65537, 0
    %v960 = vsel %vm928, 65537, 0
    %v961 = vsel %vm929, 65537, 0
    %v962 = vsel %vm930, 65537, 0
    %v963 = vsel %vm931, 65537, 0
    %v964 = vsel %vm932, 65537, 0
    %v965 = vsel %vm933, 65537, 0
    %v966 = vsel %vm934, 65537, 0
    %v967 = vsel %vm935, 65537, 0
    %v968 = vsel %vm936, 65537, 0
    %v969 = vsel %vm937, 65537, 0
    %v970 = vsel %vm938, 65537, 0
    %v971 = vsel %vm939, 65537, 0
    %v972 = vsel %vm940, 65537, 0
    %v973 = vsel %vm941, 65537, 0
    %v974 = vsel %vm942, 65537, 0
    %v975 = vsel %vm943, 65537, 0
    %v976 = vsel %vm944, 65537, 0
    %v977 = vsel %vm945, 65537, 0
    %v978 = vsel %vm946, 65537, 0
    %v979 = vsel %vm947, 65537, 0
    %v980 = vsel %vm948, 65537, 0
    %v981 = vsel %vm949, 65537, 0
    %v982 = vsel %vm950, 65537, 0
    %v983 = vsel %vm951, 65537, 0
    %v984 = vsel %vm952, 65537, 0
    %v985 = vsel %vm953, 65537, 0
    %v986 = vsel %vm954, 65537, 0
    %v987 = vsel %vm955, 65537, 0
    %v988 = vsel %vm956, 65537, 0
    %v989 = vsel %vm957, 65537, 0
    %v990 = vunpack.c.l.b16 %v958
    %v991 = vunpack.c.l.b16 %v959
    %v992 = vunpack.c.l.b16 %v960
    %v993 = vunpack.c.l.b16 %v961
    %v994 = vunpack.c.l.b16 %v962
    %v995 = vunpack.c.l.b16 %v963
    %v996 = vunpack.c.l.b16 %v964
    %v997 = vunpack.c.l.b16 %v965
    %v998 = vunpack.c.l.b16 %v966
    %v999 = vunpack.c.l.b16 %v967
    %v1000 = vunpack.c.l.b16 %v968
    %v1001 = vunpack.c.l.b16 %v969
    %v1002 = vunpack.c.l.b16 %v970
    %v1003 = vunpack.c.l.b16 %v971
    %v1004 = vunpack.c.l.b16 %v972
    %v1005 = vunpack.c.l.b16 %v973
    %v1006 = vunpack.c.l.b16 %v974
    %v1007 = vunpack.c.l.b16 %v975
    %v1008 = vunpack.c.l.b16 %v976
    %v1009 = vunpack.c.l.b16 %v977
    %v1010 = vunpack.c.l.b16 %v978
    %v1011 = vunpack.c.l.b16 %v979
    %v1012 = vunpack.c.l.b16 %v980
    %v1013 = vunpack.c.l.b16 %v981
    %v1014 = vunpack.c.l.b16 %v982
    %v1015 = vunpack.c.l.b16 %v983
    %v1016 = vunpack.c.l.b16 %v984
    %v1017 = vunpack.c.l.b16 %v985
    %v1018 = vunpack.c.l.b16 %v986
    %v1019 = vunpack.c.l.b16 %v987
    %v1020 = vunpack.c.l.b16 %v988
    %v1021 = vunpack.c.l.b16 %v989
    %v1022 = vpack.c.b16 %v991, %v990
    %v1023 = vpack.c.b16 %v993, %v992
    %v1024 = vpack.c.b16 %v995, %v994
    %v1025 = vpack.c.b16 %v997, %v996
    %v1026 = vpack.c.b16 %v999, %v998
    %v1027 = vpack.c.b16 %v1001, %v1000
    %v1028 = vpack.c.b16 %v1003, %v1002
    %v1029 = vpack.c.b16 %v1005, %v1004
    %v1030 = vpack.c.b16 %v1007, %v1006
    %v1031 = vpack.c.b16 %v1009, %v1008
    %v1032 = vpack.c.b16 %v1011, %v1010
    %v1033 = vpack.c.b16 %v1013, %v1012
    %v1034 = vpack.c.b16 %v1015, %v1014
    %v1035 = vpack.c.b16 %v1017, %v1016
    %v1036 = vpack.c.b16 %v1019, %v1018
    %v1037 = vpack.c.b16 %v1021, %v1020
    %v1038 = vunpack.c.l.b16 %v1022
    %v1039 = vunpack.c.h.b16 %v1022
    %v1040 = vunpack.c.l.b16 0
    %v1041 = vunpack.c.h.b16 0
    %vm1042 = vcmp.ne.s32.totalorder %v1038, %v1040
    %vm1043 = vcmp.ne.s32.totalorder %v1039, %v1041
    %vm1044 = vmpackc.low %vm1043, %vm1042
    %v1045 = vunpack.c.l.b16 %v1023
    %v1046 = vunpack.c.h.b16 %v1023
    %v1047 = vunpack.c.l.b16 0
    %v1048 = vunpack.c.h.b16 0
    %vm1049 = vcmp.ne.s32.totalorder %v1045, %v1047
    %vm1050 = vcmp.ne.s32.totalorder %v1046, %v1048
    %vm1051 = vmpackc.low %vm1050, %vm1049
    %v1052 = vunpack.c.l.b16 %v1024
    %v1053 = vunpack.c.h.b16 %v1024
    %v1054 = vunpack.c.l.b16 0
    %v1055 = vunpack.c.h.b16 0
    %vm1056 = vcmp.ne.s32.totalorder %v1052, %v1054
    %vm1057 = vcmp.ne.s32.totalorder %v1053, %v1055
    %vm1058 = vmpackc.low %vm1057, %vm1056
    %v1059 = vunpack.c.l.b16 %v1025
    %v1060 = vunpack.c.h.b16 %v1025
    %v1061 = vunpack.c.l.b16 0
    %v1062 = vunpack.c.h.b16 0
    %vm1063 = vcmp.ne.s32.totalorder %v1059, %v1061
    %vm1064 = vcmp.ne.s32.totalorder %v1060, %v1062
    %vm1065 = vmpackc.low %vm1064, %vm1063
    %v1066 = vunpack.c.l.b16 %v1026
    %v1067 = vunpack.c.h.b16 %v1026
    %v1068 = vunpack.c.l.b16 0
    %v1069 = vunpack.c.h.b16 0
    %vm1070 = vcmp.ne.s32.totalorder %v1066, %v1068
    %vm1071 = vcmp.ne.s32.totalorder %v1067, %v1069
    %vm1072 = vmpackc.low %vm1071, %vm1070
    %v1073 = vunpack.c.l.b16 %v1027
    %v1074 = vunpack.c.h.b16 %v1027
    %v1075 = vunpack.c.l.b16 0
    %v1076 = vunpack.c.h.b16 0
    %vm1077 = vcmp.ne.s32.totalorder %v1073, %v1075
    %vm1078 = vcmp.ne.s32.totalorder %v1074, %v1076
    %vm1079 = vmpackc.low %vm1078, %vm1077
    %v1080 = vunpack.c.l.b16 %v1028
    %v1081 = vunpack.c.h.b16 %v1028
    %v1082 = vunpack.c.l.b16 0
    %v1083 = vunpack.c.h.b16 0
    %vm1084 = vcmp.ne.s32.totalorder %v1080, %v1082
    %vm1085 = vcmp.ne.s32.totalorder %v1081, %v1083
    %vm1086 = vmpackc.low %vm1085, %vm1084
    %v1087 = vunpack.c.l.b16 %v1029
    %v1088 = vunpack.c.h.b16 %v1029
    %v1089 = vunpack.c.l.b16 0
    %v1090 = vunpack.c.h.b16 0
    %vm1091 = vcmp.ne.s32.totalorder %v1087, %v1089
    %vm1092 = vcmp.ne.s32.totalorder %v1088, %v1090
    %vm1093 = vmpackc.low %vm1092, %vm1091
    %v1094 = vunpack.c.l.b16 %v1030
    %v1095 = vunpack.c.h.b16 %v1030
    %v1096 = vunpack.c.l.b16 0
    %v1097 = vunpack.c.h.b16 0
    %vm1098 = vcmp.ne.s32.totalorder %v1094, %v1096
    %vm1099 = vcmp.ne.s32.totalorder %v1095, %v1097
    %vm1100 = vmpackc.low %vm1099, %vm1098
    %v1101 = vunpack.c.l.b16 %v1031
    %v1102 = vunpack.c.h.b16 %v1031
    %v1103 = vunpack.c.l.b16 0
    %v1104 = vunpack.c.h.b16 0
    %vm1105 = vcmp.ne.s32.totalorder %v1101, %v1103
    %vm1106 = vcmp.ne.s32.totalorder %v1102, %v1104
    %vm1107 = vmpackc.low %vm1106, %vm1105
    %v1108 = vunpack.c.l.b16 %v1032
    %v1109 = vunpack.c.h.b16 %v1032
    %v1110 = vunpack.c.l.b16 0
    %v1111 = vunpack.c.h.b16 0
    %vm1112 = vcmp.ne.s32.totalorder %v1108, %v1110
    %vm1113 = vcmp.ne.s32.totalorder %v1109, %v1111
    %vm1114 = vmpackc.low %vm1113, %vm1112
    %v1115 = vunpack.c.l.b16 %v1033
    %v1116 = vunpack.c.h.b16 %v1033
    %v1117 = vunpack.c.l.b16 0
    %v1118 = vunpack.c.h.b16 0
    %vm1119 = vcmp.ne.s32.totalorder %v1115, %v1117
    %vm1120 = vcmp.ne.s32.totalorder %v1116, %v1118
    %vm1121 = vmpackc.low %vm1120, %vm1119
    %v1122 = vunpack.c.l.b16 %v1034
    %v1123 = vunpack.c.h.b16 %v1034
    %v1124 = vunpack.c.l.b16 0
    %v1125 = vunpack.c.h.b16 0
    %vm1126 = vcmp.ne.s32.totalorder %v1122, %v1124
    %vm1127 = vcmp.ne.s32.totalorder %v1123, %v1125
    %vm1128 = vmpackc.low %vm1127, %vm1126
    %v1129 = vunpack.c.l.b16 %v1035
    %v1130 = vunpack.c.h.b16 %v1035
    %v1131 = vunpack.c.l.b16 0
    %v1132 = vunpack.c.h.b16 0
    %vm1133 = vcmp.ne.s32.totalorder %v1129, %v1131
    %vm1134 = vcmp.ne.s32.totalorder %v1130, %v1132
    %vm1135 = vmpackc.low %vm1134, %vm1133
    %v1136 = vunpack.c.l.b16 %v1036
    %v1137 = vunpack.c.h.b16 %v1036
    %v1138 = vunpack.c.l.b16 0
    %v1139 = vunpack.c.h.b16 0
    %vm1140 = vcmp.ne.s32.totalorder %v1136, %v1138
    %vm1141 = vcmp.ne.s32.totalorder %v1137, %v1139
    %vm1142 = vmpackc.low %vm1141, %vm1140
    %v1143 = vunpack.c.l.b16 %v1037
    %v1144 = vunpack.c.h.b16 %v1037
    %v1145 = vunpack.c.l.b16 0
    %v1146 = vunpack.c.h.b16 0
    %vm1147 = vcmp.ne.s32.totalorder %v1143, %v1145
    %vm1148 = vcmp.ne.s32.totalorder %v1144, %v1146
    %vm1149 = vmpackc.low %vm1148, %vm1147
    %v1150 = vsel %vm1044, %v794, 0
    %v1151 = vsel %vm1051, %v663, 0
    %v1152 = vsel %vm1058, %v671, 0
    %v1153 = vsel %vm1065, %v679, 0
    %v1154 = vsel %vm1072, %v687, 0
    %v1155 = vsel %vm1079, %v695, 0
    %v1156 = vsel %vm1086, %v703, 0
    %v1157 = vsel %vm1093, %v711, 0
    %v1158 = vsel %vm1100, %v719, 0
    %v1159 = vsel %vm1107, %v727, 0
    %v1160 = vsel %vm1114, %v735, 0
    %v1161 = vsel %vm1121, %v743, 0
    %v1162 = vsel %vm1128, %v751, 0
    %v1163 = vsel %vm1135, %v759, 0
    %v1164 = vsel %vm1142, %v767, 0
    %v1165 = vsel %vm1149, %v775, 0
    %v1166 = vsel %vm472, 1, 0
    %v1167 = vsel %vm473, 1, 0
    %v1168 = vsel %vm474, 1, 0
    %v1169 = vsel %vm475, 1, 0
    %v1170 = vsel %vm476, 1, 0
    %v1171 = vsel %vm477, 1, 0
    %v1172 = vsel %vm478, 1, 0
    %v1173 = vsel %vm479, 1, 0
    %v1174 = vsel %vm480, 1, 0
    %v1175 = vsel %vm481, 1, 0
    %v1176 = vsel %vm482, 1, 0
    %v1177 = vsel %vm483, 1, 0
    %v1178 = vsel %vm484, 1, 0
    %v1179 = vsel %vm485, 1, 0
    %v1180 = vsel %vm486, 1, 0
    %v1181 = vsel %vm487, 1, 0
    %v1182 = vsel %vm488, 1, 0
    %v1183 = vsel %vm489, 1, 0
    %v1184 = vsel %vm490, 1, 0
    %v1185 = vsel %vm491, 1, 0
    %v1186 = vsel %vm492, 1, 0
    %v1187 = vsel %vm493, 1, 0
    %v1188 = vsel %vm494, 1, 0
    %v1189 = vsel %vm495, 1, 0
    %v1190 = vsel %vm496, 1, 0
    %v1191 = vsel %vm497, 1, 0
    %v1192 = vsel %vm498, 1, 0
    %v1193 = vsel %vm499, 1, 0
    %v1194 = vsel %vm500, 1, 0
    %v1195 = vsel %vm501, 1, 0
    %v1196 = vsel %vm502, 1, 0
    %v1197 = vsel %vm503, 1, 0
    %vm1198 = vcmp.eq.s32.totalorder %v1166, 1
    %vm1199 = vcmp.eq.s32.totalorder %v1167, 1
    %vm1200 = vcmp.eq.s32.totalorder %v1168, 1
    %vm1201 = vcmp.eq.s32.totalorder %v1169, 1
    %vm1202 = vcmp.eq.s32.totalorder %v1170, 1
    %vm1203 = vcmp.eq.s32.totalorder %v1171, 1
    %vm1204 = vcmp.eq.s32.totalorder %v1172, 1
    %vm1205 = vcmp.eq.s32.totalorder %v1173, 1
    %vm1206 = vcmp.eq.s32.totalorder %v1174, 1
    %vm1207 = vcmp.eq.s32.totalorder %v1175, 1
    %vm1208 = vcmp.eq.s32.totalorder %v1176, 1
    %vm1209 = vcmp.eq.s32.totalorder %v1177, 1
    %vm1210 = vcmp.eq.s32.totalorder %v1178, 1
    %vm1211 = vcmp.eq.s32.totalorder %v1179, 1
    %vm1212 = vcmp.eq.s32.totalorder %v1180, 1
    %vm1213 = vcmp.eq.s32.totalorder %v1181, 1
    %vm1214 = vcmp.eq.s32.totalorder %v1182, 1
    %vm1215 = vcmp.eq.s32.totalorder %v1183, 1
    %vm1216 = vcmp.eq.s32.totalorder %v1184, 1
    %vm1217 = vcmp.eq.s32.totalorder %v1185, 1
    %vm1218 = vcmp.eq.s32.totalorder %v1186, 1
    %vm1219 = vcmp.eq.s32.totalorder %v1187, 1
    %vm1220 = vcmp.eq.s32.totalorder %v1188, 1
    %vm1221 = vcmp.eq.s32.totalorder %v1189, 1
    %vm1222 = vcmp.eq.s32.totalorder %v1190, 1
    %vm1223 = vcmp.eq.s32.totalorder %v1191, 1
    %vm1224 = vcmp.eq.s32.totalorder %v1192, 1
    %vm1225 = vcmp.eq.s32.totalorder %v1193, 1
    %vm1226 = vcmp.eq.s32.totalorder %v1194, 1
    %vm1227 = vcmp.eq.s32.totalorder %v1195, 1
    %vm1228 = vcmp.eq.s32.totalorder %v1196, 1
    %vm1229 = vcmp.eq.s32.totalorder %v1197, 1
    %vm1230 = vmpackc.low %vm1198, %vm1198
    %vm1231 = vmpackc.low %vm1199, %vm1199
    %vm1232 = vmpackc.low %vm1200, %vm1200
    %vm1233 = vmpackc.low %vm1201, %vm1201
    %vm1234 = vmpackc.low %vm1202, %vm1202
    %vm1235 = vmpackc.low %vm1203, %vm1203
    %vm1236 = vmpackc.low %vm1204, %vm1204
    %vm1237 = vmpackc.low %vm1205, %vm1205
    %vm1238 = vmpackc.low %vm1206, %vm1206
    %vm1239 = vmpackc.low %vm1207, %vm1207
    %vm1240 = vmpackc.low %vm1208, %vm1208
    %vm1241 = vmpackc.low %vm1209, %vm1209
    %vm1242 = vmpackc.low %vm1210, %vm1210
    %vm1243 = vmpackc.low %vm1211, %vm1211
    %vm1244 = vmpackc.low %vm1212, %vm1212
    %vm1245 = vmpackc.low %vm1213, %vm1213
    %vm1246 = vmpackc.low %vm1214, %vm1214
    %vm1247 = vmpackc.low %vm1215, %vm1215
    %vm1248 = vmpackc.low %vm1216, %vm1216
    %vm1249 = vmpackc.low %vm1217, %vm1217
    %vm1250 = vmpackc.low %vm1218, %vm1218
    %vm1251 = vmpackc.low %vm1219, %vm1219
    %vm1252 = vmpackc.low %vm1220, %vm1220
    %vm1253 = vmpackc.low %vm1221, %vm1221
    %vm1254 = vmpackc.low %vm1222, %vm1222
    %vm1255 = vmpackc.low %vm1223, %vm1223
    %vm1256 = vmpackc.low %vm1224, %vm1224
    %vm1257 = vmpackc.low %vm1225, %vm1225
    %vm1258 = vmpackc.low %vm1226, %vm1226
    %vm1259 = vmpackc.low %vm1227, %vm1227
    %vm1260 = vmpackc.low %vm1228, %vm1228
    %vm1261 = vmpackc.low %vm1229, %vm1229
    %v1262 = vsel %vm1230, 65537, 0
    %v1263 = vsel %vm1231, 65537, 0
    %v1264 = vsel %vm1232, 65537, 0
    %v1265 = vsel %vm1233, 65537, 0
    %v1266 = vsel %vm1234, 65537, 0
    %v1267 = vsel %vm1235, 65537, 0
    %v1268 = vsel %vm1236, 65537, 0
    %v1269 = vsel %vm1237, 65537, 0
    %v1270 = vsel %vm1238, 65537, 0
    %v1271 = vsel %vm1239, 65537, 0
    %v1272 = vsel %vm1240, 65537, 0
    %v1273 = vsel %vm1241, 65537, 0
    %v1274 = vsel %vm1242, 65537, 0
    %v1275 = vsel %vm1243, 65537, 0
    %v1276 = vsel %vm1244, 65537, 0
    %v1277 = vsel %vm1245, 65537, 0
    %v1278 = vsel %vm1246, 65537, 0
    %v1279 = vsel %vm1247, 65537, 0
    %v1280 = vsel %vm1248, 65537, 0
    %v1281 = vsel %vm1249, 65537, 0
    %v1282 = vsel %vm1250, 65537, 0
    %v1283 = vsel %vm1251, 65537, 0
    %v1284 = vsel %vm1252, 65537, 0
    %v1285 = vsel %vm1253, 65537, 0
    %v1286 = vsel %vm1254, 65537, 0
    %v1287 = vsel %vm1255, 65537, 0
    %v1288 = vsel %vm1256, 65537, 0
    %v1289 = vsel %vm1257, 65537, 0
    %v1290 = vsel %vm1258, 65537, 0
    %v1291 = vsel %vm1259, 65537, 0
    %v1292 = vsel %vm1260, 65537, 0
    %v1293 = vsel %vm1261, 65537, 0
    %v1294 = vunpack.c.l.b16 %v1262
    %v1295 = vunpack.c.l.b16 %v1263
    %v1296 = vunpack.c.l.b16 %v1264
    %v1297 = vunpack.c.l.b16 %v1265
    %v1298 = vunpack.c.l.b16 %v1266
    %v1299 = vunpack.c.l.b16 %v1267
    %v1300 = vunpack.c.l.b16 %v1268
    %v1301 = vunpack.c.l.b16 %v1269
    %v1302 = vunpack.c.l.b16 %v1270
    %v1303 = vunpack.c.l.b16 %v1271
    %v1304 = vunpack.c.l.b16 %v1272
    %v1305 = vunpack.c.l.b16 %v1273
    %v1306 = vunpack.c.l.b16 %v1274
    %v1307 = vunpack.c.l.b16 %v1275
    %v1308 = vunpack.c.l.b16 %v1276
    %v1309 = vunpack.c.l.b16 %v1277
    %v1310 = vunpack.c.l.b16 %v1278
    %v1311 = vunpack.c.l.b16 %v1279
    %v1312 = vunpack.c.l.b16 %v1280
    %v1313 = vunpack.c.l.b16 %v1281
    %v1314 = vunpack.c.l.b16 %v1282
    %v1315 = vunpack.c.l.b16 %v1283
    %v1316 = vunpack.c.l.b16 %v1284
    %v1317 = vunpack.c.l.b16 %v1285
    %v1318 = vunpack.c.l.b16 %v1286
    %v1319 = vunpack.c.l.b16 %v1287
    %v1320 = vunpack.c.l.b16 %v1288
    %v1321 = vunpack.c.l.b16 %v1289
    %v1322 = vunpack.c.l.b16 %v1290
    %v1323 = vunpack.c.l.b16 %v1291
    %v1324 = vunpack.c.l.b16 %v1292
    %v1325 = vunpack.c.l.b16 %v1293
    %v1326 = vpack.c.b16 %v1295, %v1294
    %v1327 = vpack.c.b16 %v1297, %v1296
    %v1328 = vpack.c.b16 %v1299, %v1298
    %v1329 = vpack.c.b16 %v1301, %v1300
    %v1330 = vpack.c.b16 %v1303, %v1302
    %v1331 = vpack.c.b16 %v1305, %v1304
    %v1332 = vpack.c.b16 %v1307, %v1306
    %v1333 = vpack.c.b16 %v1309, %v1308
    %v1334 = vpack.c.b16 %v1311, %v1310
    %v1335 = vpack.c.b16 %v1313, %v1312
    %v1336 = vpack.c.b16 %v1315, %v1314
    %v1337 = vpack.c.b16 %v1317, %v1316
    %v1338 = vpack.c.b16 %v1319, %v1318
    %v1339 = vpack.c.b16 %v1321, %v1320
    %v1340 = vpack.c.b16 %v1323, %v1322
    %v1341 = vpack.c.b16 %v1325, %v1324
    %v1342 = vunpack.c.l.b16 %v1326
    %v1343 = vunpack.c.h.b16 %v1326
    %v1344 = vunpack.c.l.b16 0
    %v1345 = vunpack.c.h.b16 0
    %vm1346 = vcmp.ne.s32.totalorder %v1342, %v1344
    %vm1347 = vcmp.ne.s32.totalorder %v1343, %v1345
    %vm1348 = vmpackc.low %vm1347, %vm1346
    %v1349 = vunpack.c.l.b16 %v1327
    %v1350 = vunpack.c.h.b16 %v1327
    %v1351 = vunpack.c.l.b16 0
    %v1352 = vunpack.c.h.b16 0
    %vm1353 = vcmp.ne.s32.totalorder %v1349, %v1351
    %vm1354 = vcmp.ne.s32.totalorder %v1350, %v1352
    %vm1355 = vmpackc.low %vm1354, %vm1353
    %v1356 = vunpack.c.l.b16 %v1328
    %v1357 = vunpack.c.h.b16 %v1328
    %v1358 = vunpack.c.l.b16 0
    %v1359 = vunpack.c.h.b16 0
    %vm1360 = vcmp.ne.s32.totalorder %v1356, %v1358
    %vm1361 = vcmp.ne.s32.totalorder %v1357, %v1359
    %vm1362 = vmpackc.low %vm1361, %vm1360
    %v1363 = vunpack.c.l.b16 %v1329
    %v1364 = vunpack.c.h.b16 %v1329
    %v1365 = vunpack.c.l.b16 0
    %v1366 = vunpack.c.h.b16 0
    %vm1367 = vcmp.ne.s32.totalorder %v1363, %v1365
    %vm1368 = vcmp.ne.s32.totalorder %v1364, %v1366
    %vm1369 = vmpackc.low %vm1368, %vm1367
    %v1370 = vunpack.c.l.b16 %v1330
    %v1371 = vunpack.c.h.b16 %v1330
    %v1372 = vunpack.c.l.b16 0
    %v1373 = vunpack.c.h.b16 0
    %vm1374 = vcmp.ne.s32.totalorder %v1370, %v1372
    %vm1375 = vcmp.ne.s32.totalorder %v1371, %v1373
    %vm1376 = vmpackc.low %vm1375, %vm1374
    %v1377 = vunpack.c.l.b16 %v1331
    %v1378 = vunpack.c.h.b16 %v1331
    %v1379 = vunpack.c.l.b16 0
    %v1380 = vunpack.c.h.b16 0
    %vm1381 = vcmp.ne.s32.totalorder %v1377, %v1379
    %vm1382 = vcmp.ne.s32.totalorder %v1378, %v1380
    %vm1383 = vmpackc.low %vm1382, %vm1381
    %v1384 = vunpack.c.l.b16 %v1332
    %v1385 = vunpack.c.h.b16 %v1332
    %v1386 = vunpack.c.l.b16 0
    %v1387 = vunpack.c.h.b16 0
    %vm1388 = vcmp.ne.s32.totalorder %v1384, %v1386
    %vm1389 = vcmp.ne.s32.totalorder %v1385, %v1387
    %vm1390 = vmpackc.low %vm1389, %vm1388
    %v1391 = vunpack.c.l.b16 %v1333
    %v1392 = vunpack.c.h.b16 %v1333
    %v1393 = vunpack.c.l.b16 0
    %v1394 = vunpack.c.h.b16 0
    %vm1395 = vcmp.ne.s32.totalorder %v1391, %v1393
    %vm1396 = vcmp.ne.s32.totalorder %v1392, %v1394
    %vm1397 = vmpackc.low %vm1396, %vm1395
    %v1398 = vunpack.c.l.b16 %v1334
    %v1399 = vunpack.c.h.b16 %v1334
    %v1400 = vunpack.c.l.b16 0
    %v1401 = vunpack.c.h.b16 0
    %vm1402 = vcmp.ne.s32.totalorder %v1398, %v1400
    %vm1403 = vcmp.ne.s32.totalorder %v1399, %v1401
    %vm1404 = vmpackc.low %vm1403, %vm1402
    %v1405 = vunpack.c.l.b16 %v1335
    %v1406 = vunpack.c.h.b16 %v1335
    %v1407 = vunpack.c.l.b16 0
    %v1408 = vunpack.c.h.b16 0
    %vm1409 = vcmp.ne.s32.totalorder %v1405, %v1407
    %vm1410 = vcmp.ne.s32.totalorder %v1406, %v1408
    %vm1411 = vmpackc.low %vm1410, %vm1409
    %v1412 = vunpack.c.l.b16 %v1336
    %v1413 = vunpack.c.h.b16 %v1336
    %v1414 = vunpack.c.l.b16 0
    %v1415 = vunpack.c.h.b16 0
    %vm1416 = vcmp.ne.s32.totalorder %v1412, %v1414
    %vm1417 = vcmp.ne.s32.totalorder %v1413, %v1415
    %vm1418 = vmpackc.low %vm1417, %vm1416
    %v1419 = vunpack.c.l.b16 %v1337
    %v1420 = vunpack.c.h.b16 %v1337
    %v1421 = vunpack.c.l.b16 0
    %v1422 = vunpack.c.h.b16 0
    %vm1423 = vcmp.ne.s32.totalorder %v1419, %v1421
    %vm1424 = vcmp.ne.s32.totalorder %v1420, %v1422
    %vm1425 = vmpackc.low %vm1424, %vm1423
    %v1426 = vunpack.c.l.b16 %v1338
    %v1427 = vunpack.c.h.b16 %v1338
    %v1428 = vunpack.c.l.b16 0
    %v1429 = vunpack.c.h.b16 0
    %vm1430 = vcmp.ne.s32.totalorder %v1426, %v1428
    %vm1431 = vcmp.ne.s32.totalorder %v1427, %v1429
    %vm1432 = vmpackc.low %vm1431, %vm1430
    %v1433 = vunpack.c.l.b16 %v1339
    %v1434 = vunpack.c.h.b16 %v1339
    %v1435 = vunpack.c.l.b16 0
    %v1436 = vunpack.c.h.b16 0
    %vm1437 = vcmp.ne.s32.totalorder %v1433, %v1435
    %vm1438 = vcmp.ne.s32.totalorder %v1434, %v1436
    %vm1439 = vmpackc.low %vm1438, %vm1437
    %v1440 = vunpack.c.l.b16 %v1340
    %v1441 = vunpack.c.h.b16 %v1340
    %v1442 = vunpack.c.l.b16 0
    %v1443 = vunpack.c.h.b16 0
    %vm1444 = vcmp.ne.s32.totalorder %v1440, %v1442
    %vm1445 = vcmp.ne.s32.totalorder %v1441, %v1443
    %vm1446 = vmpackc.low %vm1445, %vm1444
    %v1447 = vunpack.c.l.b16 %v1341
    %v1448 = vunpack.c.h.b16 %v1341
    %v1449 = vunpack.c.l.b16 0
    %v1450 = vunpack.c.h.b16 0
    %vm1451 = vcmp.ne.s32.totalorder %v1447, %v1449
    %vm1452 = vcmp.ne.s32.totalorder %v1448, %v1450
    %vm1453 = vmpackc.low %vm1452, %vm1451
    %v1454 = vsel %vm1348, %v799, 0
    %v1455 = vsel %vm1355, %v802, 0
    %v1456 = vsel %vm1362, %v805, 0
    %v1457 = vsel %vm1369, %v808, 0
    %v1458 = vsel %vm1376, %v811, 0
    %v1459 = vsel %vm1383, %v814, 0
    %v1460 = vsel %vm1390, %v817, 0
    %v1461 = vsel %vm1397, %v820, 0
    %v1462 = vsel %vm1404, %v823, 0
    %v1463 = vsel %vm1411, %v826, 0
    %v1464 = vsel %vm1418, %v829, 0
    %v1465 = vsel %vm1425, %v832, 0
    %v1466 = vsel %vm1432, %v835, 0
    %v1467 = vsel %vm1439, %v838, 0
    %v1468 = vsel %vm1446, %v841, 0
    %v1469 = vsel %vm1453, %v861, 0
    %1470 = vrot.lane.b32.xlu0 %v632, 8
    %v1471 = vpop.permute.xlu0 %1470
    %1472 = vrot.lane.b32.xlu0 %v633, 8
    %v1473 = vpop.permute.xlu0 %1472
    %1474 = vrot.lane.b32.xlu0 %v634, 8
    %v1475 = vpop.permute.xlu0 %1474
    %1476 = vrot.lane.b32.xlu0 %v635, 8
    %v1477 = vpop.permute.xlu0 %1476
    %1478 = vrot.lane.b32.xlu0 %v636, 8
    %v1479 = vpop.permute.xlu0 %1478
    %1480 = vrot.lane.b32.xlu0 %v637, 8
    %v1481 = vpop.permute.xlu0 %1480
    %1482 = vrot.lane.b32.xlu0 %v638, 8
    %v1483 = vpop.permute.xlu0 %1482
    %1484 = vrot.lane.b32.xlu0 %v639, 8
    %v1485 = vpop.permute.xlu0 %1484
    %1486 = vrot.lane.b32.xlu0 %v640, 8
    %v1487 = vpop.permute.xlu0 %1486
    %1488 = vrot.lane.b32.xlu0 %v641, 8
    %v1489 = vpop.permute.xlu0 %1488
    %1490 = vrot.lane.b32.xlu0 %v642, 8
    %v1491 = vpop.permute.xlu0 %1490
    %1492 = vrot.lane.b32.xlu0 %v643, 8
    %v1493 = vpop.permute.xlu0 %1492
    %1494 = vrot.lane.b32.xlu0 %v644, 8
    %v1495 = vpop.permute.xlu0 %1494
    %1496 = vrot.lane.b32.xlu0 %v645, 8
    %v1497 = vpop.permute.xlu0 %1496
    %1498 = vrot.lane.b32.xlu0 %v646, 8
    %v1499 = vpop.permute.xlu0 %1498
    %1500 = vrot.lane.b32.xlu0 %v647, 8
    %v1501 = vpop.permute.xlu0 %1500
    %1518 = vrot.lane.b32.xlu0 %v1454, 16
    %v1519 = vpop.permute.xlu0 %1518
    %1520 = vrot.lane.b32.xlu0 %v1455, 16
    %v1521 = vpop.permute.xlu0 %1520
    %1522 = vrot.lane.b32.xlu0 %v1456, 16
    %v1523 = vpop.permute.xlu0 %1522
    %1524 = vrot.lane.b32.xlu0 %v1457, 16
    %v1525 = vpop.permute.xlu0 %1524
    %1526 = vrot.lane.b32.xlu0 %v1458, 16
    %v1527 = vpop.permute.xlu0 %1526
    %1528 = vrot.lane.b32.xlu0 %v1459, 16
    %v1529 = vpop.permute.xlu0 %1528
    %1530 = vrot.lane.b32.xlu0 %v1460, 16
    %v1531 = vpop.permute.xlu0 %1530
    %1532 = vrot.lane.b32.xlu0 %v1461, 16
    %v1533 = vpop.permute.xlu0 %1532
    %1534 = vrot.lane.b32.xlu0 %v1462, 16
    %v1535 = vpop.permute.xlu0 %1534
    %1536 = vrot.lane.b32.xlu0 %v1463, 16
    %v1537 = vpop.permute.xlu0 %1536
    %1538 = vrot.lane.b32.xlu0 %v1464, 16
    %v1539 = vpop.permute.xlu0 %1538
    %1540 = vrot.lane.b32.xlu0 %v1465, 16
    %v1541 = vpop.permute.xlu0 %1540
    %1542 = vrot.lane.b32.xlu0 %v1466, 16
    %v1543 = vpop.permute.xlu0 %1542
    %1544 = vrot.lane.b32.xlu0 %v1467, 16
    %v1545 = vpop.permute.xlu0 %1544
    %1546 = vrot.lane.b32.xlu0 %v1468, 16
    %v1547 = vpop.permute.xlu0 %1546
    %1548 = vrot.lane.b32.xlu0 %v1469, 16
    %v1549 = vpop.permute.xlu0 %1548
    %vm1550 = vcmask 64512
    %v1553 = vsel %vm1550, %v1150, %v1471
    %v1556 = vsel %vm1550, %v1151, %v1473
    %v1559 = vsel %vm1550, %v1152, %v1475
    %v1562 = vsel %vm1550, %v1153, %v1477
    %v1565 = vsel %vm1550, %v1154, %v1479
    %v1568 = vsel %vm1550, %v1155, %v1481
    %v1571 = vsel %vm1550, %v1156, %v1483
    %v1574 = vsel %vm1550, %v1157, %v1485
    %v1577 = vsel %vm1550, %v1158, %v1487
    %v1580 = vsel %vm1550, %v1159, %v1489
    %v1583 = vsel %vm1550, %v1160, %v1491
    %v1586 = vsel %vm1550, %v1161, %v1493
    %v1589 = vsel %vm1550, %v1162, %v1495
    %v1592 = vsel %vm1550, %v1163, %v1497
    %v1595 = vsel %vm1550, %v1164, %v1499
    %v1598 = vsel %vm1550, %v1165, %v1501
    %vm1599 = vcmask 130048
    %v1601 = vsel %vm1599, %v1553, %v1519
    %v1603 = vsel %vm1599, %v1556, %v1521
    %v1605 = vsel %vm1599, %v1559, %v1523
    %v1607 = vsel %vm1599, %v1562, %v1525
    %v1609 = vsel %vm1599, %v1565, %v1527
    %v1611 = vsel %vm1599, %v1568, %v1529
    %v1613 = vsel %vm1599, %v1571, %v1531
    %v1615 = vsel %vm1599, %v1574, %v1533
    %v1617 = vsel %vm1599, %v1577, %v1535
    %v1619 = vsel %vm1599, %v1580, %v1537
    %v1621 = vsel %vm1599, %v1583, %v1539
    %v1623 = vsel %vm1599, %v1586, %v1541
    %v1625 = vsel %vm1599, %v1589, %v1543
    %v1627 = vsel %vm1599, %v1592, %v1545
    %v1629 = vsel %vm1599, %v1595, %v1547
    %v1631 = vsel %vm1599, %v1598, %v1549
    %s1632 = scalar_lea.vmem %s1, 12
    %v1633 = vld [vmem:[%s1632] sm:$0xf]
    %v1634 = vld [vmem:[%s1632 + $0x4] sm:$0xf]
    %v1635 = vld [vmem:[%s1632 + $0x8] sm:$0xf]
    %v1639 = vunpack.c.l.b16 %v1633
    %v1640 = vunpack.c.l.b16 %v1634
    %v1641 = vunpack.c.l.b16 %v1635
    %v1642 = vpack.c.b16 %v1640, %v1639
    %v1643 = vpack.c.b16 %v1641, %v1641
    %vm1645 = vcmask 195584
    %v1646 = vsel %vm1645, %v1601, 0
    %v1648 = vsel %vm1645, %v1603, 0
    %v1650 = vsel %vm1645, %v1605, 0
    %v1652 = vsel %vm1645, %v1607, 0
    %v1654 = vsel %vm1645, %v1609, 0
    %v1656 = vsel %vm1645, %v1611, 0
    %v1658 = vsel %vm1645, %v1613, 0
    %v1660 = vsel %vm1645, %v1615, 0
    %v1662 = vsel %vm1645, %v1617, 0
    %v1664 = vsel %vm1645, %v1619, 0
    %v1666 = vsel %vm1645, %v1621, 0
    %v1668 = vsel %vm1645, %v1623, 0
    %v1670 = vsel %vm1645, %v1625, 0
    %v1672 = vsel %vm1645, %v1627, 0
    %v1674 = vsel %vm1645, %v1629, 0
    %v1676 = vsel %vm1645, %v1631, 0
    %vm1678 = vcmask 1043456
    %v1680 = vsel %vm1678, %v1643, 0
    %1682 = vmatpush.bf16.msra.mxu0 0
    %1683 = vmatpush.bf16.msra.mxu0 0
    %1684 = vmatpush.bf16.msra.mxu0 0
    %1685 = vmatpush.bf16.msra.mxu0 0
    %1686 = vmatpush.bf16.msra.mxu0 0
    %1687 = vmatpush.bf16.msra.mxu0 0
    %1688 = vmatpush.bf16.msra.mxu0 %v1680
    %1689 = vmatpush.bf16.msra.mxu0 %v1642
    %1690 = vmatmul.bf16.gmra.mxu0 %v1646
    %v1691 = vpop.f32.mrf.mxu0
    %v1692 = vadd.f32 0.0, %v1691
    %v1693 = vpop.f32.mrf.mxu0
    %v1694 = vadd.f32 0.0, %v1693
    %1695 = vmatmul.bf16.gmra.mxu0 %v1648
    %v1696 = vpop.f32.mrf.mxu0
    %v1697 = vadd.f32 0.0, %v1696
    %v1698 = vpop.f32.mrf.mxu0
    %v1699 = vadd.f32 0.0, %v1698
    %1700 = vmatmul.bf16.gmra.mxu0 %v1650
    %v1701 = vpop.f32.mrf.mxu0
    %v1702 = vadd.f32 0.0, %v1701
    %v1703 = vpop.f32.mrf.mxu0
    %v1704 = vadd.f32 0.0, %v1703
    %1705 = vmatmul.bf16.gmra.mxu0 %v1652
    %v1706 = vpop.f32.mrf.mxu0
    %v1707 = vadd.f32 0.0, %v1706
    %v1708 = vpop.f32.mrf.mxu0
    %v1709 = vadd.f32 0.0, %v1708
    %1710 = vmatmul.bf16.gmra.mxu0 %v1654
    %v1711 = vpop.f32.mrf.mxu0
    %v1712 = vadd.f32 0.0, %v1711
    %v1713 = vpop.f32.mrf.mxu0
    %v1714 = vadd.f32 0.0, %v1713
    %1715 = vmatmul.bf16.gmra.mxu0 %v1656
    %v1716 = vpop.f32.mrf.mxu0
    %v1717 = vadd.f32 0.0, %v1716
    %v1718 = vpop.f32.mrf.mxu0
    %v1719 = vadd.f32 0.0, %v1718
    %1720 = vmatmul.bf16.gmra.mxu0 %v1658
    %v1721 = vpop.f32.mrf.mxu0
    %v1722 = vadd.f32 0.0, %v1721
    %v1723 = vpop.f32.mrf.mxu0
    %v1724 = vadd.f32 0.0, %v1723
    %1725 = vmatmul.bf16.gmra.mxu0 %v1660
    %v1726 = vpop.f32.mrf.mxu0
    %v1727 = vadd.f32 0.0, %v1726
    %v1728 = vpop.f32.mrf.mxu0
    %v1729 = vadd.f32 0.0, %v1728
    %1730 = vmatmul.bf16.gmra.mxu0 %v1662
    %v1731 = vpop.f32.mrf.mxu0
    %v1732 = vadd.f32 0.0, %v1731
    %v1733 = vpop.f32.mrf.mxu0
    %v1734 = vadd.f32 0.0, %v1733
    %1735 = vmatmul.bf16.gmra.mxu0 %v1664
    %v1736 = vpop.f32.mrf.mxu0
    %v1737 = vadd.f32 0.0, %v1736
    %v1738 = vpop.f32.mrf.mxu0
    %v1739 = vadd.f32 0.0, %v1738
    %1740 = vmatmul.bf16.gmra.mxu0 %v1666
    %v1741 = vpop.f32.mrf.mxu0
    %v1742 = vadd.f32 0.0, %v1741
    %v1743 = vpop.f32.mrf.mxu0
    %v1744 = vadd.f32 0.0, %v1743
    %1745 = vmatmul.bf16.gmra.mxu0 %v1668
    %v1746 = vpop.f32.mrf.mxu0
    %v1747 = vadd.f32 0.0, %v1746
    %v1748 = vpop.f32.mrf.mxu0
    %v1749 = vadd.f32 0.0, %v1748
    %1750 = vmatmul.bf16.gmra.mxu0 %v1670
    %v1751 = vpop.f32.mrf.mxu0
    %v1752 = vadd.f32 0.0, %v1751
    %v1753 = vpop.f32.mrf.mxu0
    %v1754 = vadd.f32 0.0, %v1753
    %1755 = vmatmul.bf16.gmra.mxu0 %v1672
    %v1756 = vpop.f32.mrf.mxu0
    %v1757 = vadd.f32 0.0, %v1756
    %v1758 = vpop.f32.mrf.mxu0
    %v1759 = vadd.f32 0.0, %v1758
    %1760 = vmatmul.bf16.gmra.mxu0 %v1674
    %v1761 = vpop.f32.mrf.mxu0
    %v1762 = vadd.f32 0.0, %v1761
    %v1763 = vpop.f32.mrf.mxu0
    %v1764 = vadd.f32 0.0, %v1763
    %1765 = vmatmul.bf16.gmra.mxu0 %v1676
    %v1766 = vpop.f32.mrf.mxu0
    %v1767 = vadd.f32 0.0, %v1766
    %v1768 = vpop.f32.mrf.mxu0
    %v1769 = vadd.f32 0.0, %v1768
    %1770 = vdwg.mxu0
    %1771 = vst.msk [vmem:[#allocation2] sm:$0xff] %vm1550, %v1692
    %1772 = vst.msk [vmem:[#allocation2 + $0x8] sm:$0xff] %vm1550, %v1694
    %1773 = vst.msk [vmem:[#allocation2 + $0x10] sm:$0xff] %vm1550, %v1697
    %1774 = vst.msk [vmem:[#allocation2 + $0x18] sm:$0xff] %vm1550, %v1699
    %1775 = vst.msk [vmem:[#allocation2 + $0x20] sm:$0xff] %vm1550, %v1702
    %1776 = vst.msk [vmem:[#allocation2 + $0x28] sm:$0xff] %vm1550, %v1704
    %1777 = vst.msk [vmem:[#allocation2 + $0x30] sm:$0xff] %vm1550, %v1707
    %1778 = vst.msk [vmem:[#allocation2 + $0x38] sm:$0xff] %vm1550, %v1709
    %1779 = vst.msk [vmem:[#allocation2 + $0x40] sm:$0xff] %vm1550, %v1712
    %1780 = vst.msk [vmem:[#allocation2 + $0x48] sm:$0xff] %vm1550, %v1714
    %1781 = vst.msk [vmem:[#allocation2 + $0x50] sm:$0xff] %vm1550, %v1717
    %1782 = vst.msk [vmem:[#allocation2 + $0x58] sm:$0xff] %vm1550, %v1719
    %1783 = vst.msk [vmem:[#allocation2 + $0x60] sm:$0xff] %vm1550, %v1722
    %1784 = vst.msk [vmem:[#allocation2 + $0x68] sm:$0xff] %vm1550, %v1724
    %1785 = vst.msk [vmem:[#allocation2 + $0x70] sm:$0xff] %vm1550, %v1727
    %1786 = vst.msk [vmem:[#allocation2 + $0x78] sm:$0xff] %vm1550, %v1729
    %1787 = vst.msk [vmem:[#allocation2 + $0x80] sm:$0xff] %vm1550, %v1732
    %1788 = vst.msk [vmem:[#allocation2 + $0x88] sm:$0xff] %vm1550, %v1734
    %1789 = vst.msk [vmem:[#allocation2 + $0x90] sm:$0xff] %vm1550, %v1737
    %1790 = vst.msk [vmem:[#allocation2 + $0x98] sm:$0xff] %vm1550, %v1739
    %1791 = vst.msk [vmem:[#allocation2 + $0xa0] sm:$0xff] %vm1550, %v1742
    %1792 = vst.msk [vmem:[#allocation2 + $0xa8] sm:$0xff] %vm1550, %v1744
    %1793 = vst.msk [vmem:[#allocation2 + $0xb0] sm:$0xff] %vm1550, %v1747
    %1794 = vst.msk [vmem:[#allocation2 + $0xb8] sm:$0xff] %vm1550, %v1749
    %1795 = vst.msk [vmem:[#allocation2 + $0xc0] sm:$0xff] %vm1550, %v1752
    %1796 = vst.msk [vmem:[#allocation2 + $0xc8] sm:$0xff] %vm1550, %v1754
    %1797 = vst.msk [vmem:[#allocation2 + $0xd0] sm:$0xff] %vm1550, %v1757
    %1798 = vst.msk [vmem:[#allocation2 + $0xd8] sm:$0xff] %vm1550, %v1759
    %1799 = vst.msk [vmem:[#allocation2 + $0xe0] sm:$0xff] %vm1550, %v1762
    %1800 = vst.msk [vmem:[#allocation2 + $0xe8] sm:$0xff] %vm1550, %v1764
    %1801 = vst.msk [vmem:[#allocation2 + $0xf0] sm:$0xff] %vm1550, %v1767
    %1802 = vst.msk [vmem:[#allocation2 + $0xf8] sm:$0xff] %vm1550, %v1769
    %v1803 = vld [vmem:[#allocation2 + $0x10] sm:$0xff]
    %v1804 = vld [vmem:[#allocation2 + $0x18] sm:$0xff]
    %v1805 = vld [vmem:[#allocation2 + $0x20] sm:$0xff]
    %v1806 = vld [vmem:[#allocation2 + $0x28] sm:$0xff]
    %v1807 = vld [vmem:[#allocation2 + $0x30] sm:$0xff]
    %v1808 = vld [vmem:[#allocation2 + $0x38] sm:$0xff]
    %v1809 = vld [vmem:[#allocation2 + $0x40] sm:$0xff]
    %v1810 = vld [vmem:[#allocation2 + $0x48] sm:$0xff]
    %v1811 = vld [vmem:[#allocation2 + $0x50] sm:$0xff]
    %v1812 = vld [vmem:[#allocation2 + $0x58] sm:$0xff]
    %v1813 = vld [vmem:[#allocation2 + $0x60] sm:$0xff]
    %v1814 = vld [vmem:[#allocation2 + $0x68] sm:$0xff]
    %v1815 = vld [vmem:[#allocation2 + $0x70] sm:$0xff]
    %v1816 = vld [vmem:[#allocation2 + $0x78] sm:$0xff]
    %v1817 = vld [vmem:[#allocation2 + $0x80] sm:$0xff]
    %v1818 = vld [vmem:[#allocation2 + $0x88] sm:$0xff]
    %v1819 = vld [vmem:[#allocation2 + $0x90] sm:$0xff]
    %v1820 = vld [vmem:[#allocation2 + $0x98] sm:$0xff]
    %v1821 = vld [vmem:[#allocation2 + $0xa0] sm:$0xff]
    %v1822 = vld [vmem:[#allocation2 + $0xa8] sm:$0xff]
    %v1823 = vld [vmem:[#allocation2 + $0xb0] sm:$0xff]
    %v1824 = vld [vmem:[#allocation2 + $0xb8] sm:$0xff]
    %v1825 = vld [vmem:[#allocation2 + $0xc0] sm:$0xff]
    %v1826 = vld [vmem:[#allocation2 + $0xc8] sm:$0xff]
    %v1827 = vld [vmem:[#allocation2 + $0xd0] sm:$0xff]
    %v1828 = vld [vmem:[#allocation2 + $0xd8] sm:$0xff]
    %v1829 = vld [vmem:[#allocation2 + $0xe0] sm:$0xff]
    %v1830 = vld [vmem:[#allocation2 + $0xe8] sm:$0xff]
    %v1831 = vld [vmem:[#allocation2 + $0xf0] sm:$0xff]
    %v1832 = vld [vmem:[#allocation2 + $0xf8] sm:$0xff]
    %v1833 = vld [vmem:[%s1] sm:$0xf]
    %v1834 = vld [vmem:[%s1 + $0x4] sm:$0xf]
    %v1835 = vld [vmem:[%s1 + $0x8] sm:$0xf]
    %v1839 = vunpack.c.l.b16 %v1833
    %v1840 = vunpack.c.l.b16 %v1834
    %v1841 = vunpack.c.l.b16 %v1835
    %v1842 = vpack.c.b16 %v1840, %v1839
    %v1843 = vpack.c.b16 %v1841, %v1841
    %v1846 = vsel %vm1678, %v1843, 0
    %1848 = vmatpush.bf16.msra.mxu0 0
    %1849 = vmatpush.bf16.msra.mxu0 0
    %1850 = vmatpush.bf16.msra.mxu0 0
    %1851 = vmatpush.bf16.msra.mxu0 0
    %1852 = vmatpush.bf16.msra.mxu0 0
    %1853 = vmatpush.bf16.msra.mxu0 0
    %1854 = vmatpush.bf16.msra.mxu0 %v1846
    %1855 = vmatpush.bf16.msra.mxu0 %v1842
    %1856 = vmatmul.bf16.gmra.mxu0 %v1646
    %v1857 = vpop.f32.mrf.mxu0
    %v1858 = vadd.f32 0.0, %v1857
    %v1859 = vpop.f32.mrf.mxu0
    %v1860 = vadd.f32 0.0, %v1859
    %1861 = vmatmul.bf16.gmra.mxu0 %v1648
    %v1862 = vpop.f32.mrf.mxu0
    %v1863 = vadd.f32 0.0, %v1862
    %v1864 = vpop.f32.mrf.mxu0
    %v1865 = vadd.f32 0.0, %v1864
    %1866 = vmatmul.bf16.gmra.mxu0 %v1650
    %v1867 = vpop.f32.mrf.mxu0
    %v1868 = vadd.f32 0.0, %v1867
    %v1869 = vpop.f32.mrf.mxu0
    %v1870 = vadd.f32 0.0, %v1869
    %1871 = vmatmul.bf16.gmra.mxu0 %v1652
    %v1872 = vpop.f32.mrf.mxu0
    %v1873 = vadd.f32 0.0, %v1872
    %v1874 = vpop.f32.mrf.mxu0
    %v1875 = vadd.f32 0.0, %v1874
    %1876 = vmatmul.bf16.gmra.mxu0 %v1654
    %v1877 = vpop.f32.mrf.mxu0
    %v1878 = vadd.f32 0.0, %v1877
    %v1879 = vpop.f32.mrf.mxu0
    %v1880 = vadd.f32 0.0, %v1879
    %1881 = vmatmul.bf16.gmra.mxu0 %v1656
    %v1882 = vpop.f32.mrf.mxu0
    %v1883 = vadd.f32 0.0, %v1882
    %v1884 = vpop.f32.mrf.mxu0
    %v1885 = vadd.f32 0.0, %v1884
    %1886 = vmatmul.bf16.gmra.mxu0 %v1658
    %v1887 = vpop.f32.mrf.mxu0
    %v1888 = vadd.f32 0.0, %v1887
    %v1889 = vpop.f32.mrf.mxu0
    %v1890 = vadd.f32 0.0, %v1889
    %1891 = vmatmul.bf16.gmra.mxu0 %v1660
    %v1892 = vpop.f32.mrf.mxu0
    %v1893 = vadd.f32 0.0, %v1892
    %v1894 = vpop.f32.mrf.mxu0
    %v1895 = vadd.f32 0.0, %v1894
    %1896 = vmatmul.bf16.gmra.mxu0 %v1662
    %v1897 = vpop.f32.mrf.mxu0
    %v1898 = vadd.f32 0.0, %v1897
    %v1899 = vpop.f32.mrf.mxu0
    %v1900 = vadd.f32 0.0, %v1899
    %1901 = vmatmul.bf16.gmra.mxu0 %v1664
    %v1902 = vpop.f32.mrf.mxu0
    %v1903 = vadd.f32 0.0, %v1902
    %v1904 = vpop.f32.mrf.mxu0
    %v1905 = vadd.f32 0.0, %v1904
    %1906 = vmatmul.bf16.gmra.mxu0 %v1666
    %v1907 = vpop.f32.mrf.mxu0
    %v1908 = vadd.f32 0.0, %v1907
    %v1909 = vpop.f32.mrf.mxu0
    %v1910 = vadd.f32 0.0, %v1909
    %1911 = vmatmul.bf16.gmra.mxu0 %v1668
    %v1912 = vpop.f32.mrf.mxu0
    %v1913 = vadd.f32 0.0, %v1912
    %v1914 = vpop.f32.mrf.mxu0
    %v1915 = vadd.f32 0.0, %v1914
    %1916 = vmatmul.bf16.gmra.mxu0 %v1670
    %v1917 = vpop.f32.mrf.mxu0
    %v1918 = vadd.f32 0.0, %v1917
    %v1919 = vpop.f32.mrf.mxu0
    %v1920 = vadd.f32 0.0, %v1919
    %1921 = vmatmul.bf16.gmra.mxu0 %v1672
    %v1922 = vpop.f32.mrf.mxu0
    %v1923 = vadd.f32 0.0, %v1922
    %v1924 = vpop.f32.mrf.mxu0
    %v1925 = vadd.f32 0.0, %v1924
    %1926 = vmatmul.bf16.gmra.mxu0 %v1674
    %v1927 = vpop.f32.mrf.mxu0
    %v1928 = vadd.f32 0.0, %v1927
    %v1929 = vpop.f32.mrf.mxu0
    %v1930 = vadd.f32 0.0, %v1929
    %1931 = vdwg.mxu0
    %v1932 = vadd.f32 %v1803, %v1858
    %v1933 = vadd.f32 %v1804, %v1860
    %v1934 = vadd.f32 %v1805, %v1863
    %v1935 = vadd.f32 %v1806, %v1865
    %v1936 = vadd.f32 %v1807, %v1868
    %v1937 = vadd.f32 %v1808, %v1870
    %v1938 = vadd.f32 %v1809, %v1873
    %v1939 = vadd.f32 %v1810, %v1875
    %v1940 = vadd.f32 %v1811, %v1878
    %v1941 = vadd.f32 %v1812, %v1880
    %v1942 = vadd.f32 %v1813, %v1883
    %v1943 = vadd.f32 %v1814, %v1885
    %v1944 = vadd.f32 %v1815, %v1888
    %v1945 = vadd.f32 %v1816, %v1890
    %v1946 = vadd.f32 %v1817, %v1893
    %v1947 = vadd.f32 %v1818, %v1895
    %v1948 = vadd.f32 %v1819, %v1898
    %v1949 = vadd.f32 %v1820, %v1900
    %v1950 = vadd.f32 %v1821, %v1903
    %v1951 = vadd.f32 %v1822, %v1905
    %v1952 = vadd.f32 %v1823, %v1908
    %v1953 = vadd.f32 %v1824, %v1910
    %v1954 = vadd.f32 %v1825, %v1913
    %v1955 = vadd.f32 %v1826, %v1915
    %v1956 = vadd.f32 %v1827, %v1918
    %v1957 = vadd.f32 %v1828, %v1920
    %v1958 = vadd.f32 %v1829, %v1923
    %v1959 = vadd.f32 %v1830, %v1925
    %v1960 = vadd.f32 %v1831, %v1928
    %v1961 = vadd.f32 %v1832, %v1930
    %1962 = vst.msk [vmem:[#allocation2 + $0x10] sm:$0xff] %vm1550, %v1932
    %1963 = vst.msk [vmem:[#allocation2 + $0x18] sm:$0xff] %vm1550, %v1933
    %1964 = vst.msk [vmem:[#allocation2 + $0x20] sm:$0xff] %vm1550, %v1934
    %1965 = vst.msk [vmem:[#allocation2 + $0x28] sm:$0xff] %vm1550, %v1935
    %1966 = vst.msk [vmem:[#allocation2 + $0x30] sm:$0xff] %vm1550, %v1936
    %1967 = vst.msk [vmem:[#allocation2 + $0x38] sm:$0xff] %vm1550, %v1937
    %1968 = vst.msk [vmem:[#allocation2 + $0x40] sm:$0xff] %vm1550, %v1938
    %1969 = vst.msk [vmem:[#allocation2 + $0x48] sm:$0xff] %vm1550, %v1939
    %1970 = vst.msk [vmem:[#allocation2 + $0x50] sm:$0xff] %vm1550, %v1940
    %1971 = vst.msk [vmem:[#allocation2 + $0x58] sm:$0xff] %vm1550, %v1941
    %1972 = vst.msk [vmem:[#allocation2 + $0x60] sm:$0xff] %vm1550, %v1942
    %1973 = vst.msk [vmem:[#allocation2 + $0x68] sm:$0xff] %vm1550, %v1943
    %1974 = vst.msk [vmem:[#allocation2 + $0x70] sm:$0xff] %vm1550, %v1944
    %1975 = vst.msk [vmem:[#allocation2 + $0x78] sm:$0xff] %vm1550, %v1945
    %1976 = vst.msk [vmem:[#allocation2 + $0x80] sm:$0xff] %vm1550, %v1946
    %1977 = vst.msk [vmem:[#allocation2 + $0x88] sm:$0xff] %vm1550, %v1947
    %1978 = vst.msk [vmem:[#allocation2 + $0x90] sm:$0xff] %vm1550, %v1948
    %1979 = vst.msk [vmem:[#allocation2 + $0x98] sm:$0xff] %vm1550, %v1949
    %1980 = vst.msk [vmem:[#allocation2 + $0xa0] sm:$0xff] %vm1550, %v1950
    %1981 = vst.msk [vmem:[#allocation2 + $0xa8] sm:$0xff] %vm1550, %v1951
    %1982 = vst.msk [vmem:[#allocation2 + $0xb0] sm:$0xff] %vm1550, %v1952
    %1983 = vst.msk [vmem:[#allocation2 + $0xb8] sm:$0xff] %vm1550, %v1953
    %1984 = vst.msk [vmem:[#allocation2 + $0xc0] sm:$0xff] %vm1550, %v1954
    %1985 = vst.msk [vmem:[#allocation2 + $0xc8] sm:$0xff] %vm1550, %v1955
    %1986 = vst.msk [vmem:[#allocation2 + $0xd0] sm:$0xff] %vm1550, %v1956
    %1987 = vst.msk [vmem:[#allocation2 + $0xd8] sm:$0xff] %vm1550, %v1957
    %1988 = vst.msk [vmem:[#allocation2 + $0xe0] sm:$0xff] %vm1550, %v1958
    %1989 = vst.msk [vmem:[#allocation2 + $0xe8] sm:$0xff] %vm1550, %v1959
    %1990 = vst.msk [vmem:[#allocation2 + $0xf0] sm:$0xff] %vm1550, %v1960
    %1991 = vst.msk [vmem:[#allocation2 + $0xf8] sm:$0xff] %vm1550, %v1961
    %v1992 = vld [vmem:[#allocation2] sm:$0xff]
    %v1993 = vld [vmem:[#allocation2 + $0x8] sm:$0xff]
    %v1994 = vld [vmem:[#allocation2 + $0x10] sm:$0xff]
    %v1995 = vld [vmem:[#allocation2 + $0x18] sm:$0xff]
    %v1996 = vld [vmem:[#allocation2 + $0x20] sm:$0xff]
    %v1997 = vld [vmem:[#allocation2 + $0x28] sm:$0xff]
    %v1998 = vld [vmem:[#allocation2 + $0x30] sm:$0xff]
    %v1999 = vld [vmem:[#allocation2 + $0x38] sm:$0xff]
    %v2000 = vld [vmem:[#allocation2 + $0x40] sm:$0xff]
    %v2001 = vld [vmem:[#allocation2 + $0x48] sm:$0xff]
    %v2002 = vld [vmem:[#allocation2 + $0x50] sm:$0xff]
    %v2003 = vld [vmem:[#allocation2 + $0x58] sm:$0xff]
    %v2004 = vld [vmem:[#allocation2 + $0x60] sm:$0xff]
    %v2005 = vld [vmem:[#allocation2 + $0x68] sm:$0xff]
    %v2006 = vld [vmem:[#allocation2 + $0x70] sm:$0xff]
    %v2007 = vld [vmem:[#allocation2 + $0x78] sm:$0xff]
    %v2008 = vld [vmem:[#allocation2 + $0x80] sm:$0xff]
    %v2009 = vld [vmem:[#allocation2 + $0x88] sm:$0xff]
    %v2010 = vld [vmem:[#allocation2 + $0x90] sm:$0xff]
    %v2011 = vld [vmem:[#allocation2 + $0x98] sm:$0xff]
    %v2012 = vld [vmem:[#allocation2 + $0xa0] sm:$0xff]
    %v2013 = vld [vmem:[#allocation2 + $0xa8] sm:$0xff]
    %v2014 = vld [vmem:[#allocation2 + $0xb0] sm:$0xff]
    %v2015 = vld [vmem:[#allocation2 + $0xb8] sm:$0xff]
    %v2016 = vld [vmem:[#allocation2 + $0xc0] sm:$0xff]
    %v2017 = vld [vmem:[#allocation2 + $0xc8] sm:$0xff]
    %v2018 = vld [vmem:[#allocation2 + $0xd0] sm:$0xff]
    %v2019 = vld [vmem:[#allocation2 + $0xd8] sm:$0xff]
    %v2020 = vld [vmem:[#allocation2 + $0xe0] sm:$0xff]
    %v2021 = vld [vmem:[#allocation2 + $0xe8] sm:$0xff]
    %s2022 = scalar_lea.vmem %s1, 24
    %v2023 = vld [vmem:[%s2022] sm:$0xf]
    %v2024 = vld [vmem:[%s2022 + $0x4] sm:$0xf]
    %v2025 = vld [vmem:[%s2022 + $0x8] sm:$0xf]
    %v2029 = vunpack.c.l.b16 %v2023
    %v2030 = vunpack.c.l.b16 %v2024
    %v2031 = vunpack.c.l.b16 %v2025
    %v2032 = vpack.c.b16 %v2030, %v2029
    %v2033 = vpack.c.b16 %v2031, %v2031
    %v2036 = vsel %vm1678, %v2033, 0
    %2038 = vmatpush.bf16.msra.mxu0 0
    %2039 = vmatpush.bf16.msra.mxu0 0
    %2040 = vmatpush.bf16.msra.mxu0 0
    %2041 = vmatpush.bf16.msra.mxu0 0
    %2042 = vmatpush.bf16.msra.mxu0 0
    %2043 = vmatpush.bf16.msra.mxu0 0
    %2044 = vmatpush.bf16.msra.mxu0 %v2036
    %2045 = vmatpush.bf16.msra.mxu0 %v2032
    %2046 = vmatmul.bf16.gmra.mxu0 %v1648
    %v2047 = vpop.f32.mrf.mxu0
    %v2048 = vadd.f32 0.0, %v2047
    %v2049 = vpop.f32.mrf.mxu0
    %v2050 = vadd.f32 0.0, %v2049
    %2051 = vmatmul.bf16.gmra.mxu0 %v1650
    %v2052 = vpop.f32.mrf.mxu0
    %v2053 = vadd.f32 0.0, %v2052
    %v2054 = vpop.f32.mrf.mxu0
    %v2055 = vadd.f32 0.0, %v2054
    %2056 = vmatmul.bf16.gmra.mxu0 %v1652
    %v2057 = vpop.f32.mrf.mxu0
    %v2058 = vadd.f32 0.0, %v2057
    %v2059 = vpop.f32.mrf.mxu0
    %v2060 = vadd.f32 0.0, %v2059
    %2061 = vmatmul.bf16.gmra.mxu0 %v1654
    %v2062 = vpop.f32.mrf.mxu0
    %v2063 = vadd.f32 0.0, %v2062
    %v2064 = vpop.f32.mrf.mxu0
    %v2065 = vadd.f32 0.0, %v2064
    %2066 = vmatmul.bf16.gmra.mxu0 %v1656
    %v2067 = vpop.f32.mrf.mxu0
    %v2068 = vadd.f32 0.0, %v2067
    %v2069 = vpop.f32.mrf.mxu0
    %v2070 = vadd.f32 0.0, %v2069
    %2071 = vmatmul.bf16.gmra.mxu0 %v1658
    %v2072 = vpop.f32.mrf.mxu0
    %v2073 = vadd.f32 0.0, %v2072
    %v2074 = vpop.f32.mrf.mxu0
    %v2075 = vadd.f32 0.0, %v2074
    %2076 = vmatmul.bf16.gmra.mxu0 %v1660
    %v2077 = vpop.f32.mrf.mxu0
    %v2078 = vadd.f32 0.0, %v2077
    %v2079 = vpop.f32.mrf.mxu0
    %v2080 = vadd.f32 0.0, %v2079
    %2081 = vmatmul.bf16.gmra.mxu0 %v1662
    %v2082 = vpop.f32.mrf.mxu0
    %v2083 = vadd.f32 0.0, %v2082
    %v2084 = vpop.f32.mrf.mxu0
    %v2085 = vadd.f32 0.0, %v2084
    %2086 = vmatmul.bf16.gmra.mxu0 %v1664
    %v2087 = vpop.f32.mrf.mxu0
    %v2088 = vadd.f32 0.0, %v2087
    %v2089 = vpop.f32.mrf.mxu0
    %v2090 = vadd.f32 0.0, %v2089
    %2091 = vmatmul.bf16.gmra.mxu0 %v1666
    %v2092 = vpop.f32.mrf.mxu0
    %v2093 = vadd.f32 0.0, %v2092
    %v2094 = vpop.f32.mrf.mxu0
    %v2095 = vadd.f32 0.0, %v2094
    %2096 = vmatmul.bf16.gmra.mxu0 %v1668
    %v2097 = vpop.f32.mrf.mxu0
    %v2098 = vadd.f32 0.0, %v2097
    %v2099 = vpop.f32.mrf.mxu0
    %v2100 = vadd.f32 0.0, %v2099
    %2101 = vmatmul.bf16.gmra.mxu0 %v1670
    %v2102 = vpop.f32.mrf.mxu0
    %v2103 = vadd.f32 0.0, %v2102
    %v2104 = vpop.f32.mrf.mxu0
    %v2105 = vadd.f32 0.0, %v2104
    %2106 = vmatmul.bf16.gmra.mxu0 %v1672
    %v2107 = vpop.f32.mrf.mxu0
    %v2108 = vadd.f32 0.0, %v2107
    %v2109 = vpop.f32.mrf.mxu0
    %v2110 = vadd.f32 0.0, %v2109
    %2111 = vmatmul.bf16.gmra.mxu0 %v1674
    %v2112 = vpop.f32.mrf.mxu0
    %v2113 = vadd.f32 0.0, %v2112
    %v2114 = vpop.f32.mrf.mxu0
    %v2115 = vadd.f32 0.0, %v2114
    %2116 = vmatmul.bf16.gmra.mxu0 %v1676
    %v2117 = vpop.f32.mrf.mxu0
    %v2118 = vadd.f32 0.0, %v2117
    %v2119 = vpop.f32.mrf.mxu0
    %v2120 = vadd.f32 0.0, %v2119
    %2121 = vdwg.mxu0
    %v2122 = vadd.f32 %v1992, %v2048
    %v2123 = vadd.f32 %v1993, %v2050
    %v2124 = vadd.f32 %v1994, %v2053
    %v2125 = vadd.f32 %v1995, %v2055
    %v2126 = vadd.f32 %v1996, %v2058
    %v2127 = vadd.f32 %v1997, %v2060
    %v2128 = vadd.f32 %v1998, %v2063
    %v2129 = vadd.f32 %v1999, %v2065
    %v2130 = vadd.f32 %v2000, %v2068
    %v2131 = vadd.f32 %v2001, %v2070
    %v2132 = vadd.f32 %v2002, %v2073
    %v2133 = vadd.f32 %v2003, %v2075
    %v2134 = vadd.f32 %v2004, %v2078
    %v2135 = vadd.f32 %v2005, %v2080
    %v2136 = vadd.f32 %v2006, %v2083
    %v2137 = vadd.f32 %v2007, %v2085
    %v2138 = vadd.f32 %v2008, %v2088
    %v2139 = vadd.f32 %v2009, %v2090
    %v2140 = vadd.f32 %v2010, %v2093
    %v2141 = vadd.f32 %v2011, %v2095
    %v2142 = vadd.f32 %v2012, %v2098
    %v2143 = vadd.f32 %v2013, %v2100
    %v2144 = vadd.f32 %v2014, %v2103
    %v2145 = vadd.f32 %v2015, %v2105
    %v2146 = vadd.f32 %v2016, %v2108
    %v2147 = vadd.f32 %v2017, %v2110
    %v2148 = vadd.f32 %v2018, %v2113
    %v2149 = vadd.f32 %v2019, %v2115
    %v2150 = vadd.f32 %v2020, %v2118
    %v2151 = vadd.f32 %v2021, %v2120
    %2152 = vst.msk [vmem:[#allocation2] sm:$0xff] %vm1550, %v2122
    %2153 = vst.msk [vmem:[#allocation2 + $0x8] sm:$0xff] %vm1550, %v2123
    %2154 = vst.msk [vmem:[#allocation2 + $0x10] sm:$0xff] %vm1550, %v2124
    %2155 = vst.msk [vmem:[#allocation2 + $0x18] sm:$0xff] %vm1550, %v2125
    %2156 = vst.msk [vmem:[#allocation2 + $0x20] sm:$0xff] %vm1550, %v2126
    %2157 = vst.msk [vmem:[#allocation2 + $0x28] sm:$0xff] %vm1550, %v2127
    %2158 = vst.msk [vmem:[#allocation2 + $0x30] sm:$0xff] %vm1550, %v2128
    %2159 = vst.msk [vmem:[#allocation2 + $0x38] sm:$0xff] %vm1550, %v2129
    %2160 = vst.msk [vmem:[#allocation2 + $0x40] sm:$0xff] %vm1550, %v2130
    %2161 = vst.msk [vmem:[#allocation2 + $0x48] sm:$0xff] %vm1550, %v2131
    %2162 = vst.msk [vmem:[#allocation2 + $0x50] sm:$0xff] %vm1550, %v2132
    %2163 = vst.msk [vmem:[#allocation2 + $0x58] sm:$0xff] %vm1550, %v2133
    %2164 = vst.msk [vmem:[#allocation2 + $0x60] sm:$0xff] %vm1550, %v2134
    %2165 = vst.msk [vmem:[#allocation2 + $0x68] sm:$0xff] %vm1550, %v2135
    %2166 = vst.msk [vmem:[#allocation2 + $0x70] sm:$0xff] %vm1550, %v2136
    %2167 = vst.msk [vmem:[#allocation2 + $0x78] sm:$0xff] %vm1550, %v2137
    %2168 = vst.msk [vmem:[#allocation2 + $0x80] sm:$0xff] %vm1550, %v2138
    %2169 = vst.msk [vmem:[#allocation2 + $0x88] sm:$0xff] %vm1550, %v2139
    %2170 = vst.msk [vmem:[#allocation2 + $0x90] sm:$0xff] %vm1550, %v2140
    %2171 = vst.msk [vmem:[#allocation2 + $0x98] sm:$0xff] %vm1550, %v2141
    %2172 = vst.msk [vmem:[#allocation2 + $0xa0] sm:$0xff] %vm1550, %v2142
    %2173 = vst.msk [vmem:[#allocation2 + $0xa8] sm:$0xff] %vm1550, %v2143
    %2174 = vst.msk [vmem:[#allocation2 + $0xb0] sm:$0xff] %vm1550, %v2144
    %2175 = vst.msk [vmem:[#allocation2 + $0xb8] sm:$0xff] %vm1550, %v2145
    %2176 = vst.msk [vmem:[#allocation2 + $0xc0] sm:$0xff] %vm1550, %v2146
    %2177 = vst.msk [vmem:[#allocation2 + $0xc8] sm:$0xff] %vm1550, %v2147
    %2178 = vst.msk [vmem:[#allocation2 + $0xd0] sm:$0xff] %vm1550, %v2148
    %2179 = vst.msk [vmem:[#allocation2 + $0xd8] sm:$0xff] %vm1550, %v2149
    %2180 = vst.msk [vmem:[#allocation2 + $0xe0] sm:$0xff] %vm1550, %v2150
    %2181 = vst.msk [vmem:[#allocation2 + $0xe8] sm:$0xff] %vm1550, %v2151
    %v2182 = vld [vmem:[#allocation2] sm:$0xff]
    %v2183 = vld [vmem:[#allocation2 + $0x8] sm:$0xff]
    %v2184 = vld [vmem:[#allocation2 + $0x10] sm:$0xff]
    %v2185 = vld [vmem:[#allocation2 + $0x18] sm:$0xff]
    %v2186 = vld [vmem:[#allocation2 + $0x20] sm:$0xff]
    %v2187 = vld [vmem:[#allocation2 + $0x28] sm:$0xff]
    %v2188 = vld [vmem:[#allocation2 + $0x30] sm:$0xff]
    %v2189 = vld [vmem:[#allocation2 + $0x38] sm:$0xff]
    %v2190 = vld [vmem:[#allocation2 + $0x40] sm:$0xff]
    %v2191 = vld [vmem:[#allocation2 + $0x48] sm:$0xff]
    %v2192 = vld [vmem:[#allocation2 + $0x50] sm:$0xff]
    %v2193 = vld [vmem:[#allocation2 + $0x58] sm:$0xff]
    %v2194 = vld [vmem:[#allocation2 + $0x60] sm:$0xff]
    %v2195 = vld [vmem:[#allocation2 + $0x68] sm:$0xff]
    %v2196 = vld [vmem:[#allocation2 + $0x70] sm:$0xff]
    %v2197 = vld [vmem:[#allocation2 + $0x78] sm:$0xff]
    %v2198 = vld [vmem:[#allocation2 + $0x80] sm:$0xff]
    %v2199 = vld [vmem:[#allocation2 + $0x88] sm:$0xff]
    %v2200 = vld [vmem:[#allocation2 + $0x90] sm:$0xff]
    %v2201 = vld [vmem:[#allocation2 + $0x98] sm:$0xff]
    %v2202 = vld [vmem:[#allocation2 + $0xa0] sm:$0xff]
    %v2203 = vld [vmem:[#allocation2 + $0xa8] sm:$0xff]
    %v2204 = vld [vmem:[#allocation2 + $0xb0] sm:$0xff]
    %v2205 = vld [vmem:[#allocation2 + $0xb8] sm:$0xff]
    %v2206 = vld [vmem:[#allocation2 + $0xc0] sm:$0xff]
    %v2207 = vld [vmem:[#allocation2 + $0xc8] sm:$0xff]
    %v2208 = vld [vmem:[#allocation2 + $0xd0] sm:$0xff]
    %v2209 = vld [vmem:[#allocation2 + $0xd8] sm:$0xff]
    %v2210 = vld [vmem:[#allocation2 + $0xe0] sm:$0xff]
    %v2211 = vld [vmem:[#allocation2 + $0xe8] sm:$0xff]
    %v2212 = vld [vmem:[#allocation2 + $0xf0] sm:$0xff]
    %v2213 = vld [vmem:[#allocation2 + $0xf8] sm:$0xff]
    %v2214 = vpack.c.bf16 %v2182, %v2182
    %v2215 = vpack.c.bf16 %v2183, %v2183
    %v2216 = vpack.c.bf16 %v2184, %v2184
    %v2217 = vpack.c.bf16 %v2185, %v2185
    %v2218 = vpack.c.bf16 %v2186, %v2186
    %v2219 = vpack.c.bf16 %v2187, %v2187
    %v2220 = vpack.c.bf16 %v2188, %v2188
    %v2221 = vpack.c.bf16 %v2189, %v2189
    %v2222 = vpack.c.bf16 %v2190, %v2190
    %v2223 = vpack.c.bf16 %v2191, %v2191
    %v2224 = vpack.c.bf16 %v2192, %v2192
    %v2225 = vpack.c.bf16 %v2193, %v2193
    %v2226 = vpack.c.bf16 %v2194, %v2194
    %v2227 = vpack.c.bf16 %v2195, %v2195
    %v2228 = vpack.c.bf16 %v2196, %v2196
    %v2229 = vpack.c.bf16 %v2197, %v2197
    %v2230 = vpack.c.bf16 %v2198, %v2198
    %v2231 = vpack.c.bf16 %v2199, %v2199
    %v2232 = vpack.c.bf16 %v2200, %v2200
    %v2233 = vpack.c.bf16 %v2201, %v2201
    %v2234 = vpack.c.bf16 %v2202, %v2202
    %v2235 = vpack.c.bf16 %v2203, %v2203
    %v2236 = vpack.c.bf16 %v2204, %v2204
    %v2237 = vpack.c.bf16 %v2205, %v2205
    %v2238 = vpack.c.bf16 %v2206, %v2206
    %v2239 = vpack.c.bf16 %v2207, %v2207
    %v2240 = vpack.c.bf16 %v2208, %v2208
    %v2241 = vpack.c.bf16 %v2209, %v2209
    %v2242 = vpack.c.bf16 %v2210, %v2210
    %v2243 = vpack.c.bf16 %v2211, %v2211
    %v2244 = vpack.c.bf16 %v2212, %v2212
    %v2245 = vpack.c.bf16 %v2213, %v2213
    %vm2246 = vcmask 60416
    %2247 = vst.msk [vmem:[%s4] sm:$0xf] %vm2246, %v2214
    %2248 = vst.msk [vmem:[%s4 + $0x4] sm:$0xf] %vm2246, %v2215
    %2249 = vst.msk [vmem:[%s4 + $0x8] sm:$0xf] %vm2246, %v2216
    %2250 = vst.msk [vmem:[%s4 + $0xc] sm:$0xf] %vm2246, %v2217
    %2251 = vst.msk [vmem:[%s4 + $0x10] sm:$0xf] %vm2246, %v2218
    %2252 = vst.msk [vmem:[%s4 + $0x14] sm:$0xf] %vm2246, %v2219
    %2253 = vst.msk [vmem:[%s4 + $0x18] sm:$0xf] %vm2246, %v2220
    %2254 = vst.msk [vmem:[%s4 + $0x1c] sm:$0xf] %vm2246, %v2221
    %2255 = vst.msk [vmem:[%s4 + $0x20] sm:$0xf] %vm2246, %v2222
    %2256 = vst.msk [vmem:[%s4 + $0x24] sm:$0xf] %vm2246, %v2223
    %2257 = vst.msk [vmem:[%s4 + $0x28] sm:$0xf] %vm2246, %v2224
    %2258 = vst.msk [vmem:[%s4 + $0x2c] sm:$0xf] %vm2246, %v2225
    %2259 = vst.msk [vmem:[%s4 + $0x30] sm:$0xf] %vm2246, %v2226
    %2260 = vst.msk [vmem:[%s4 + $0x34] sm:$0xf] %vm2246, %v2227
    %2261 = vst.msk [vmem:[%s4 + $0x38] sm:$0xf] %vm2246, %v2228
    %2262 = vst.msk [vmem:[%s4 + $0x3c] sm:$0xf] %vm2246, %v2229
    %2263 = vst.msk [vmem:[%s4 + $0x40] sm:$0xf] %vm2246, %v2230
    %2264 = vst.msk [vmem:[%s4 + $0x44] sm:$0xf] %vm2246, %v2231
    %2265 = vst.msk [vmem:[%s4 + $0x48] sm:$0xf] %vm2246, %v2232
    %2266 = vst.msk [vmem:[%s4 + $0x4c] sm:$0xf] %vm2246, %v2233
    %2267 = vst.msk [vmem:[%s4 + $0x50] sm:$0xf] %vm2246, %v2234
    %2268 = vst.msk [vmem:[%s4 + $0x54] sm:$0xf] %vm2246, %v2235
    %2269 = vst.msk [vmem:[%s4 + $0x58] sm:$0xf] %vm2246, %v2236
    %2270 = vst.msk [vmem:[%s4 + $0x5c] sm:$0xf] %vm2246, %v2237
    %2271 = vst.msk [vmem:[%s4 + $0x60] sm:$0xf] %vm2246, %v2238
    %2272 = vst.msk [vmem:[%s4 + $0x64] sm:$0xf] %vm2246, %v2239
    %2273 = vst.msk [vmem:[%s4 + $0x68] sm:$0xf] %vm2246, %v2240
    %2274 = vst.msk [vmem:[%s4 + $0x6c] sm:$0xf] %vm2246, %v2241
    %2275 = vst.msk [vmem:[%s4 + $0x70] sm:$0xf] %vm2246, %v2242
    %2276 = vst.msk [vmem:[%s4 + $0x74] sm:$0xf] %vm2246, %v2243
    %2277 = vst.msk [vmem:[%s4 + $0x78] sm:$0xf] %vm2246, %v2244
    %2278 = vst.msk [vmem:[%s4 + $0x7c] sm:$0xf] %vm2246, %v2245
    %v2279 = vsel %vm1550, %v2182, 0.0
    %v2280 = vsel %vm1550, %v2183, 0.0
    %v2281 = vadd.f32 %v2279, %v2280
    %v2282 = vsel %vm1550, %v2184, 0.0
    %v2283 = vadd.f32 %v2281, %v2282
    %v2284 = vsel %vm1550, %v2185, 0.0
    %v2285 = vadd.f32 %v2283, %v2284
    %v2286 = vsel %vm1550, %v2186, 0.0
    %v2287 = vadd.f32 %v2285, %v2286
    %v2288 = vsel %vm1550, %v2187, 0.0
    %v2289 = vadd.f32 %v2287, %v2288
    %v2290 = vsel %vm1550, %v2188, 0.0
    %v2291 = vadd.f32 %v2289, %v2290
    %v2292 = vsel %vm1550, %v2189, 0.0
    %v2293 = vadd.f32 %v2291, %v2292
    %v2294 = vsel %vm1550, %v2190, 0.0
    %v2295 = vadd.f32 %v2293, %v2294
    %v2296 = vsel %vm1550, %v2191, 0.0
    %v2297 = vadd.f32 %v2295, %v2296
    %v2298 = vsel %vm1550, %v2192, 0.0
    %v2299 = vadd.f32 %v2297, %v2298
    %v2300 = vsel %vm1550, %v2193, 0.0
    %v2301 = vadd.f32 %v2299, %v2300
    %v2302 = vsel %vm1550, %v2194, 0.0
    %v2303 = vadd.f32 %v2301, %v2302
    %v2304 = vsel %vm1550, %v2195, 0.0
    %v2305 = vadd.f32 %v2303, %v2304
    %v2306 = vsel %vm1550, %v2196, 0.0
    %v2307 = vadd.f32 %v2305, %v2306
    %v2308 = vsel %vm1550, %v2197, 0.0
    %v2309 = vadd.f32 %v2307, %v2308
    %v2310 = vsel %vm1550, %v2198, 0.0
    %v2311 = vadd.f32 %v2309, %v2310
    %v2312 = vsel %vm1550, %v2199, 0.0
    %v2313 = vadd.f32 %v2311, %v2312
    %v2314 = vsel %vm1550, %v2200, 0.0
    %v2315 = vadd.f32 %v2313, %v2314
    %v2316 = vsel %vm1550, %v2201, 0.0
    %v2317 = vadd.f32 %v2315, %v2316
    %v2318 = vsel %vm1550, %v2202, 0.0
    %v2319 = vadd.f32 %v2317, %v2318
    %v2320 = vsel %vm1550, %v2203, 0.0
    %v2321 = vadd.f32 %v2319, %v2320
    %v2322 = vsel %vm1550, %v2204, 0.0
    %v2323 = vadd.f32 %v2321, %v2322
    %v2324 = vsel %vm1550, %v2205, 0.0
    %v2325 = vadd.f32 %v2323, %v2324
    %v2326 = vsel %vm1550, %v2206, 0.0
    %v2327 = vadd.f32 %v2325, %v2326
    %v2328 = vsel %vm1550, %v2207, 0.0
    %v2329 = vadd.f32 %v2327, %v2328
    %v2330 = vsel %vm1550, %v2208, 0.0
    %v2331 = vadd.f32 %v2329, %v2330
    %v2332 = vsel %vm1550, %v2209, 0.0
    %v2333 = vadd.f32 %v2331, %v2332
    %v2334 = vsel %vm1550, %v2210, 0.0
    %v2335 = vadd.f32 %v2333, %v2334
    %v2336 = vsel %vm1550, %v2211, 0.0
    %v2337 = vadd.f32 %v2335, %v2336
    %v2338 = vsel %vm1550, %v2212, 0.0
    %v2339 = vadd.f32 %v2337, %v2338
    %v2340 = vsel %vm1550, %v2213, 0.0
    %v2341 = vadd.f32 %v2339, %v2340
    %v2342 = vrot.slane %v2341, 4
    %v2343 = vadd.f32 %v2341, %v2342
    %v2344 = vrot.slane %v2343, 2
    %v2345 = vadd.f32 %v2343, %v2344
    %v2346 = vrot.slane %v2345, 1
    %v2347 = vadd.f32 %v2345, %v2346
    %v2348 = vmul.f32 %v2182, %v2182
    %v2349 = vmul.f32 %v2183, %v2183
    %v2350 = vmul.f32 %v2184, %v2184
    %v2351 = vmul.f32 %v2185, %v2185
    %v2352 = vmul.f32 %v2186, %v2186
    %v2353 = vmul.f32 %v2187, %v2187
    %v2354 = vmul.f32 %v2188, %v2188
    %v2355 = vmul.f32 %v2189, %v2189
    %v2356 = vmul.f32 %v2190, %v2190
    %v2357 = vmul.f32 %v2191, %v2191
    %v2358 = vmul.f32 %v2192, %v2192
    %v2359 = vmul.f32 %v2193, %v2193
    %v2360 = vmul.f32 %v2194, %v2194
    %v2361 = vmul.f32 %v2195, %v2195
    %v2362 = vmul.f32 %v2196, %v2196
    %v2363 = vmul.f32 %v2197, %v2197
    %v2364 = vmul.f32 %v2198, %v2198
    %v2365 = vmul.f32 %v2199, %v2199
    %v2366 = vmul.f32 %v2200, %v2200
    %v2367 = vmul.f32 %v2201, %v2201
    %v2368 = vmul.f32 %v2202, %v2202
    %v2369 = vmul.f32 %v2203, %v2203
    %v2370 = vmul.f32 %v2204, %v2204
    %v2371 = vmul.f32 %v2205, %v2205
    %v2372 = vmul.f32 %v2206, %v2206
    %v2373 = vmul.f32 %v2207, %v2207
    %v2374 = vmul.f32 %v2208, %v2208
    %v2375 = vmul.f32 %v2209, %v2209
    %v2376 = vmul.f32 %v2210, %v2210
    %v2377 = vmul.f32 %v2211, %v2211
    %v2378 = vmul.f32 %v2212, %v2212
    %v2379 = vmul.f32 %v2213, %v2213
    %v2380 = vsel %vm1550, %v2348, 0.0
    %v2381 = vsel %vm1550, %v2349, 0.0
    %v2382 = vadd.f32 %v2380, %v2381
    %v2383 = vsel %vm1550, %v2350, 0.0
    %v2384 = vadd.f32 %v2382, %v2383
    %v2385 = vsel %vm1550, %v2351, 0.0
    %v2386 = vadd.f32 %v2384, %v2385
    %v2387 = vsel %vm1550, %v2352, 0.0
    %v2388 = vadd.f32 %v2386, %v2387
    %v2389 = vsel %vm1550, %v2353, 0.0
    %v2390 = vadd.f32 %v2388, %v2389
    %v2391 = vsel %vm1550, %v2354, 0.0
    %v2392 = vadd.f32 %v2390, %v2391
    %v2393 = vsel %vm1550, %v2355, 0.0
    %v2394 = vadd.f32 %v2392, %v2393
    %v2395 = vsel %vm1550, %v2356, 0.0
    %v2396 = vadd.f32 %v2394, %v2395
    %v2397 = vsel %vm1550, %v2357, 0.0
    %v2398 = vadd.f32 %v2396, %v2397
    %v2399 = vsel %vm1550, %v2358, 0.0
    %v2400 = vadd.f32 %v2398, %v2399
    %v2401 = vsel %vm1550, %v2359, 0.0
    %v2402 = vadd.f32 %v2400, %v2401
    %v2403 = vsel %vm1550, %v2360, 0.0
    %v2404 = vadd.f32 %v2402, %v2403
    %v2405 = vsel %vm1550, %v2361, 0.0
    %v2406 = vadd.f32 %v2404, %v2405
    %v2407 = vsel %vm1550, %v2362, 0.0
    %v2408 = vadd.f32 %v2406, %v2407
    %v2409 = vsel %vm1550, %v2363, 0.0
    %v2410 = vadd.f32 %v2408, %v2409
    %v2411 = vsel %vm1550, %v2364, 0.0
    %v2412 = vadd.f32 %v2410, %v2411
    %v2413 = vsel %vm1550, %v2365, 0.0
    %v2414 = vadd.f32 %v2412, %v2413
    %v2415 = vsel %vm1550, %v2366, 0.0
    %v2416 = vadd.f32 %v2414, %v2415
    %v2417 = vsel %vm1550, %v2367, 0.0
    %v2418 = vadd.f32 %v2416, %v2417
    %v2419 = vsel %vm1550, %v2368, 0.0
    %v2420 = vadd.f32 %v2418, %v2419
    %v2421 = vsel %vm1550, %v2369, 0.0
    %v2422 = vadd.f32 %v2420, %v2421
    %v2423 = vsel %vm1550, %v2370, 0.0
    %v2424 = vadd.f32 %v2422, %v2423
    %v2425 = vsel %vm1550, %v2371, 0.0
    %v2426 = vadd.f32 %v2424, %v2425
    %v2427 = vsel %vm1550, %v2372, 0.0
    %v2428 = vadd.f32 %v2426, %v2427
    %v2429 = vsel %vm1550, %v2373, 0.0
    %v2430 = vadd.f32 %v2428, %v2429
    %v2431 = vsel %vm1550, %v2374, 0.0
    %v2432 = vadd.f32 %v2430, %v2431
    %v2433 = vsel %vm1550, %v2375, 0.0
    %v2434 = vadd.f32 %v2432, %v2433
    %v2435 = vsel %vm1550, %v2376, 0.0
    %v2436 = vadd.f32 %v2434, %v2435
    %v2437 = vsel %vm1550, %v2377, 0.0
    %v2438 = vadd.f32 %v2436, %v2437
    %v2439 = vsel %vm1550, %v2378, 0.0
    %v2440 = vadd.f32 %v2438, %v2439
    %v2441 = vsel %vm1550, %v2379, 0.0
    %v2442 = vadd.f32 %v2440, %v2441
    %v2443 = vrot.slane %v2442, 4
    %v2444 = vadd.f32 %v2442, %v2443
    %v2445 = vrot.slane %v2444, 2
    %v2446 = vadd.f32 %v2444, %v2445
    %v2447 = vrot.slane %v2446, 1
    %v2448 = vadd.f32 %v2446, %v2447
    %vm2449 = vcmask 1040384
    %v2450 = vsel %vm2449, %v2347, %v2448
    %vm2451 = vcmask 58368
    %2452 = vst.msk [vmem:[#allocation3] sm:$0x3] %vm2451, %v2450
    %s2453 = scalar_lea.vmem %s0, 256
    %v2454 = vld [vmem:[%s2453] sm:$0xff]
    %v2455 = vld [vmem:[%s2453 + $0x8] sm:$0xff]
    %v2456 = vld [vmem:[%s2453 + $0x10] sm:$0xff]
    %v2457 = vld [vmem:[%s2453 + $0x18] sm:$0xff]
    %v2458 = vld [vmem:[%s2453 + $0x20] sm:$0xff]
    %v2459 = vld [vmem:[%s2453 + $0x28] sm:$0xff]
    %v2460 = vld [vmem:[%s2453 + $0x30] sm:$0xff]
    %v2461 = vld [vmem:[%s2453 + $0x38] sm:$0xff]
    %v2462 = vld [vmem:[%s2453 + $0x40] sm:$0xff]
    %v2463 = vld [vmem:[%s2453 + $0x48] sm:$0xff]
    %v2464 = vld [vmem:[%s2453 + $0x50] sm:$0xff]
    %v2465 = vld [vmem:[%s2453 + $0x58] sm:$0xff]
    %v2466 = vld [vmem:[%s2453 + $0x60] sm:$0xff]
    %v2467 = vld [vmem:[%s2453 + $0x68] sm:$0xff]
    %v2468 = vld [vmem:[%s2453 + $0x70] sm:$0xff]
    %v2469 = vld [vmem:[%s2453 + $0x78] sm:$0xff]
    %v2470 = vld [vmem:[%s2453 + $0x80] sm:$0xff]
    %v2471 = vld [vmem:[%s2453 + $0x88] sm:$0xff]
    %v2472 = vld [vmem:[%s2453 + $0x90] sm:$0xff]
    %v2473 = vld [vmem:[%s2453 + $0x98] sm:$0xff]
    %v2474 = vld [vmem:[%s2453 + $0xa0] sm:$0xff]
    %v2475 = vld [vmem:[%s2453 + $0xa8] sm:$0xff]
    %v2476 = vld [vmem:[%s2453 + $0xb0] sm:$0xff]
    %v2477 = vld [vmem:[%s2453 + $0xb8] sm:$0xff]
    %v2478 = vld [vmem:[%s2453 + $0xc0] sm:$0xff]
    %v2479 = vld [vmem:[%s2453 + $0xc8] sm:$0xff]
    %v2480 = vld [vmem:[%s2453 + $0xd0] sm:$0xff]
    %v2481 = vld [vmem:[%s2453 + $0xd8] sm:$0xff]
    %v2482 = vld [vmem:[%s2453 + $0xe0] sm:$0xff]
    %v2483 = vld [vmem:[%s2453 + $0xe8] sm:$0xff]
    %v2484 = vld [vmem:[%s2453 + $0xf0] sm:$0xff]
    %v2485 = vld [vmem:[%s2453 + $0xf8] sm:$0xff]
    %v2486 = vpack.c.bf16 %v2454, %v2454
    %v2487 = vpack.c.bf16 %v2455, %v2455
    %v2488 = vpack.c.bf16 %v2456, %v2456
    %v2489 = vpack.c.bf16 %v2457, %v2457
    %v2490 = vpack.c.bf16 %v2458, %v2458
    %v2491 = vpack.c.bf16 %v2459, %v2459
    %v2492 = vpack.c.bf16 %v2460, %v2460
    %v2493 = vpack.c.bf16 %v2461, %v2461
    %v2494 = vpack.c.bf16 %v2462, %v2462
    %v2495 = vpack.c.bf16 %v2463, %v2463
    %v2496 = vpack.c.bf16 %v2464, %v2464
    %v2497 = vpack.c.bf16 %v2465, %v2465
    %v2498 = vpack.c.bf16 %v2466, %v2466
    %v2499 = vpack.c.bf16 %v2467, %v2467
    %v2500 = vpack.c.bf16 %v2468, %v2468
    %v2501 = vpack.c.bf16 %v2469, %v2469
    %v2502 = vpack.c.bf16 %v2470, %v2470
    %v2503 = vpack.c.bf16 %v2471, %v2471
    %v2504 = vpack.c.bf16 %v2472, %v2472
    %v2505 = vpack.c.bf16 %v2473, %v2473
    %v2506 = vpack.c.bf16 %v2474, %v2474
    %v2507 = vpack.c.bf16 %v2475, %v2475
    %v2508 = vpack.c.bf16 %v2476, %v2476
    %v2509 = vpack.c.bf16 %v2477, %v2477
    %v2510 = vpack.c.bf16 %v2478, %v2478
    %v2511 = vpack.c.bf16 %v2479, %v2479
    %v2512 = vpack.c.bf16 %v2480, %v2480
    %v2513 = vpack.c.bf16 %v2481, %v2481
    %v2514 = vpack.c.bf16 %v2482, %v2482
    %v2515 = vpack.c.bf16 %v2483, %v2483
    %v2516 = vpack.c.bf16 %v2484, %v2484
    %v2517 = vpack.c.bf16 %v2485, %v2485
    %v2550 = vunpack.c.l.b16 %v2486
    %v2551 = vunpack.c.l.b16 %v2487
    %v2552 = vunpack.c.l.b16 %v2488
    %v2553 = vunpack.c.l.b16 %v2489
    %v2554 = vunpack.c.l.b16 %v2490
    %v2555 = vunpack.c.l.b16 %v2491
    %v2556 = vunpack.c.l.b16 %v2492
    %v2557 = vunpack.c.l.b16 %v2493
    %v2558 = vunpack.c.l.b16 %v2494
    %v2559 = vunpack.c.l.b16 %v2495
    %v2560 = vunpack.c.l.b16 %v2496
    %v2561 = vunpack.c.l.b16 %v2497
    %v2562 = vunpack.c.l.b16 %v2498
    %v2563 = vunpack.c.l.b16 %v2499
    %v2564 = vunpack.c.l.b16 %v2500
    %v2565 = vunpack.c.l.b16 %v2501
    %v2566 = vunpack.c.l.b16 %v2502
    %v2567 = vunpack.c.l.b16 %v2503
    %v2568 = vunpack.c.l.b16 %v2504
    %v2569 = vunpack.c.l.b16 %v2505
    %v2570 = vunpack.c.l.b16 %v2506
    %v2571 = vunpack.c.l.b16 %v2507
    %v2572 = vunpack.c.l.b16 %v2508
    %v2573 = vunpack.c.l.b16 %v2509
    %v2574 = vunpack.c.l.b16 %v2510
    %v2575 = vunpack.c.l.b16 %v2511
    %v2576 = vunpack.c.l.b16 %v2512
    %v2577 = vunpack.c.l.b16 %v2513
    %v2578 = vunpack.c.l.b16 %v2514
    %v2579 = vunpack.c.l.b16 %v2515
    %v2580 = vunpack.c.l.b16 %v2516
    %v2581 = vunpack.c.l.b16 %v2517
    %v2582 = vpack.c.b16 %v2551, %v2550
    %v2583 = vpack.c.b16 %v2553, %v2552
    %v2584 = vpack.c.b16 %v2555, %v2554
    %v2585 = vpack.c.b16 %v2557, %v2556
    %v2586 = vpack.c.b16 %v2559, %v2558
    %v2587 = vpack.c.b16 %v2561, %v2560
    %v2588 = vpack.c.b16 %v2563, %v2562
    %v2589 = vpack.c.b16 %v2565, %v2564
    %v2590 = vpack.c.b16 %v2567, %v2566
    %v2591 = vpack.c.b16 %v2569, %v2568
    %v2592 = vpack.c.b16 %v2571, %v2570
    %v2593 = vpack.c.b16 %v2573, %v2572
    %v2594 = vpack.c.b16 %v2575, %v2574
    %v2595 = vpack.c.b16 %v2577, %v2576
    %v2596 = vpack.c.b16 %v2579, %v2578
    %v2597 = vpack.c.b16 %v2581, %v2580
    %v2599 = vshrl.u32 %v2582, 16
    %v2601 = vrot.slane %v2599, 7
    %v2602 = vshll.u32 %v2582, 16
    %v2604 = vor.u32 %v2601, %v2602
    %v2606 = vshrl.u32 %v2583, 16
    %v2608 = vrot.slane %v2606, 7
    %v2609 = vshll.u32 %v2583, 16
    %v2611 = vor.u32 %v2608, %v2609
    %v2612 = vsel %vm648, %v2601, %v2611
    %v2614 = vshrl.u32 %v2584, 16
    %v2616 = vrot.slane %v2614, 7
    %v2617 = vshll.u32 %v2584, 16
    %v2619 = vor.u32 %v2616, %v2617
    %v2620 = vsel %vm648, %v2608, %v2619
    %v2622 = vshrl.u32 %v2585, 16
    %v2624 = vrot.slane %v2622, 7
    %v2625 = vshll.u32 %v2585, 16
    %v2627 = vor.u32 %v2624, %v2625
    %v2628 = vsel %vm648, %v2616, %v2627
    %v2630 = vshrl.u32 %v2586, 16
    %v2632 = vrot.slane %v2630, 7
    %v2633 = vshll.u32 %v2586, 16
    %v2635 = vor.u32 %v2632, %v2633
    %v2636 = vsel %vm648, %v2624, %v2635
    %v2638 = vshrl.u32 %v2587, 16
    %v2640 = vrot.slane %v2638, 7
    %v2641 = vshll.u32 %v2587, 16
    %v2643 = vor.u32 %v2640, %v2641
    %v2644 = vsel %vm648, %v2632, %v2643
    %v2646 = vshrl.u32 %v2588, 16
    %v2648 = vrot.slane %v2646, 7
    %v2649 = vshll.u32 %v2588, 16
    %v2651 = vor.u32 %v2648, %v2649
    %v2652 = vsel %vm648, %v2640, %v2651
    %v2654 = vshrl.u32 %v2589, 16
    %v2656 = vrot.slane %v2654, 7
    %v2657 = vshll.u32 %v2589, 16
    %v2659 = vor.u32 %v2656, %v2657
    %v2660 = vsel %vm648, %v2648, %v2659
    %v2662 = vshrl.u32 %v2590, 16
    %v2664 = vrot.slane %v2662, 7
    %v2665 = vshll.u32 %v2590, 16
    %v2667 = vor.u32 %v2664, %v2665
    %v2668 = vsel %vm648, %v2656, %v2667
    %v2670 = vshrl.u32 %v2591, 16
    %v2672 = vrot.slane %v2670, 7
    %v2673 = vshll.u32 %v2591, 16
    %v2675 = vor.u32 %v2672, %v2673
    %v2676 = vsel %vm648, %v2664, %v2675
    %v2678 = vshrl.u32 %v2592, 16
    %v2680 = vrot.slane %v2678, 7
    %v2681 = vshll.u32 %v2592, 16
    %v2683 = vor.u32 %v2680, %v2681
    %v2684 = vsel %vm648, %v2672, %v2683
    %v2686 = vshrl.u32 %v2593, 16
    %v2688 = vrot.slane %v2686, 7
    %v2689 = vshll.u32 %v2593, 16
    %v2691 = vor.u32 %v2688, %v2689
    %v2692 = vsel %vm648, %v2680, %v2691
    %v2694 = vshrl.u32 %v2594, 16
    %v2696 = vrot.slane %v2694, 7
    %v2697 = vshll.u32 %v2594, 16
    %v2699 = vor.u32 %v2696, %v2697
    %v2700 = vsel %vm648, %v2688, %v2699
    %v2702 = vshrl.u32 %v2595, 16
    %v2704 = vrot.slane %v2702, 7
    %v2705 = vshll.u32 %v2595, 16
    %v2707 = vor.u32 %v2704, %v2705
    %v2708 = vsel %vm648, %v2696, %v2707
    %v2710 = vshrl.u32 %v2596, 16
    %v2712 = vrot.slane %v2710, 7
    %v2713 = vshll.u32 %v2596, 16
    %v2715 = vor.u32 %v2712, %v2713
    %v2716 = vsel %vm648, %v2704, %v2715
    %v2718 = vshrl.u32 %v2597, 16
    %v2720 = vrot.slane %v2718, 7
    %v2721 = vshll.u32 %v2597, 16
    %v2723 = vor.u32 %v2720, %v2721
    %v2724 = vsel %vm648, %v2712, %v2723
    %v2741 = vsel %vm793, 0, %v2604
    %v2742 = vrot.slane %v2602, 1
    %v2743 = vor.u32 %v2599, %v2742
    %v2744 = vrot.slane %v2609, 1
    %v2745 = vsel %vm795, %v2743, %v2744
    %v2746 = vor.u32 %v2606, %v2744
    %v2747 = vrot.slane %v2617, 1
    %v2748 = vsel %vm795, %v2746, %v2747
    %v2749 = vor.u32 %v2614, %v2747
    %v2750 = vrot.slane %v2625, 1
    %v2751 = vsel %vm795, %v2749, %v2750
    %v2752 = vor.u32 %v2622, %v2750
    %v2753 = vrot.slane %v2633, 1
    %v2754 = vsel %vm795, %v2752, %v2753
    %v2755 = vor.u32 %v2630, %v2753
    %v2756 = vrot.slane %v2641, 1
    %v2757 = vsel %vm795, %v2755, %v2756
    %v2758 = vor.u32 %v2638, %v2756
    %v2759 = vrot.slane %v2649, 1
    %v2760 = vsel %vm795, %v2758, %v2759
    %v2761 = vor.u32 %v2646, %v2759
    %v2762 = vrot.slane %v2657, 1
    %v2763 = vsel %vm795, %v2761, %v2762
    %v2764 = vor.u32 %v2654, %v2762
    %v2765 = vrot.slane %v2665, 1
    %v2766 = vsel %vm795, %v2764, %v2765
    %v2767 = vor.u32 %v2662, %v2765
    %v2768 = vrot.slane %v2673, 1
    %v2769 = vsel %vm795, %v2767, %v2768
    %v2770 = vor.u32 %v2670, %v2768
    %v2771 = vrot.slane %v2681, 1
    %v2772 = vsel %vm795, %v2770, %v2771
    %v2773 = vor.u32 %v2678, %v2771
    %v2774 = vrot.slane %v2689, 1
    %v2775 = vsel %vm795, %v2773, %v2774
    %v2776 = vor.u32 %v2686, %v2774
    %v2777 = vrot.slane %v2697, 1
    %v2778 = vsel %vm795, %v2776, %v2777
    %v2779 = vor.u32 %v2694, %v2777
    %v2780 = vrot.slane %v2705, 1
    %v2781 = vsel %vm795, %v2779, %v2780
    %v2782 = vor.u32 %v2702, %v2780
    %v2783 = vrot.slane %v2713, 1
    %v2784 = vsel %vm795, %v2782, %v2783
    %v2785 = vor.u32 %v2710, %v2783
    %v2786 = vrot.slane %v2721, 1
    %v2787 = vsel %vm795, %v2785, %v2786
    %v2788 = vor.u32 %v2718, %v2786
    %v2805 = vsel %vm860, %v2788, 0
    %v2806 = vsel %vm1044, %v2741, 0
    %v2807 = vsel %vm1051, %v2612, 0
    %v2808 = vsel %vm1058, %v2620, 0
    %v2809 = vsel %vm1065, %v2628, 0
    %v2810 = vsel %vm1072, %v2636, 0
    %v2811 = vsel %vm1079, %v2644, 0
    %v2812 = vsel %vm1086, %v2652, 0
    %v2813 = vsel %vm1093, %v2660, 0
    %v2814 = vsel %vm1100, %v2668, 0
    %v2815 = vsel %vm1107, %v2676, 0
    %v2816 = vsel %vm1114, %v2684, 0
    %v2817 = vsel %vm1121, %v2692, 0
    %v2818 = vsel %vm1128, %v2700, 0
    %v2819 = vsel %vm1135, %v2708, 0
    %v2820 = vsel %vm1142, %v2716, 0
    %v2821 = vsel %vm1149, %v2724, 0
    %v2822 = vsel %vm1348, %v2745, 0
    %v2823 = vsel %vm1355, %v2748, 0
    %v2824 = vsel %vm1362, %v2751, 0
    %v2825 = vsel %vm1369, %v2754, 0
    %v2826 = vsel %vm1376, %v2757, 0
    %v2827 = vsel %vm1383, %v2760, 0
    %v2828 = vsel %vm1390, %v2763, 0
    %v2829 = vsel %vm1397, %v2766, 0
    %v2830 = vsel %vm1404, %v2769, 0
    %v2831 = vsel %vm1411, %v2772, 0
    %v2832 = vsel %vm1418, %v2775, 0
    %v2833 = vsel %vm1425, %v2778, 0
    %v2834 = vsel %vm1432, %v2781, 0
    %v2835 = vsel %vm1439, %v2784, 0
    %v2836 = vsel %vm1446, %v2787, 0
    %v2837 = vsel %vm1453, %v2805, 0
    %2838 = vrot.lane.b32.xlu0 %v2582, 8
    %v2839 = vpop.permute.xlu0 %2838
    %2840 = vrot.lane.b32.xlu0 %v2583, 8
    %v2841 = vpop.permute.xlu0 %2840
    %2842 = vrot.lane.b32.xlu0 %v2584, 8
    %v2843 = vpop.permute.xlu0 %2842
    %2844 = vrot.lane.b32.xlu0 %v2585, 8
    %v2845 = vpop.permute.xlu0 %2844
    %2846 = vrot.lane.b32.xlu0 %v2586, 8
    %v2847 = vpop.permute.xlu0 %2846
    %2848 = vrot.lane.b32.xlu0 %v2587, 8
    %v2849 = vpop.permute.xlu0 %2848
    %2850 = vrot.lane.b32.xlu0 %v2588, 8
    %v2851 = vpop.permute.xlu0 %2850
    %2852 = vrot.lane.b32.xlu0 %v2589, 8
    %v2853 = vpop.permute.xlu0 %2852
    %2854 = vrot.lane.b32.xlu0 %v2590, 8
    %v2855 = vpop.permute.xlu0 %2854
    %2856 = vrot.lane.b32.xlu0 %v2591, 8
    %v2857 = vpop.permute.xlu0 %2856
    %2858 = vrot.lane.b32.xlu0 %v2592, 8
    %v2859 = vpop.permute.xlu0 %2858
    %2860 = vrot.lane.b32.xlu0 %v2593, 8
    %v2861 = vpop.permute.xlu0 %2860
    %2862 = vrot.lane.b32.xlu0 %v2594, 8
    %v2863 = vpop.permute.xlu0 %2862
    %2864 = vrot.lane.b32.xlu0 %v2595, 8
    %v2865 = vpop.permute.xlu0 %2864
    %2866 = vrot.lane.b32.xlu0 %v2596, 8
    %v2867 = vpop.permute.xlu0 %2866
    %2868 = vrot.lane.b32.xlu0 %v2597, 8
    %v2869 = vpop.permute.xlu0 %2868
    %2886 = vrot.lane.b32.xlu0 %v2822, 16
    %v2887 = vpop.permute.xlu0 %2886
    %2888 = vrot.lane.b32.xlu0 %v2823, 16
    %v2889 = vpop.permute.xlu0 %2888
    %2890 = vrot.lane.b32.xlu0 %v2824, 16
    %v2891 = vpop.permute.xlu0 %2890
    %2892 = vrot.lane.b32.xlu0 %v2825, 16
    %v2893 = vpop.permute.xlu0 %2892
    %2894 = vrot.lane.b32.xlu0 %v2826, 16
    %v2895 = vpop.permute.xlu0 %2894
    %2896 = vrot.lane.b32.xlu0 %v2827, 16
    %v2897 = vpop.permute.xlu0 %2896
    %2898 = vrot.lane.b32.xlu0 %v2828, 16
    %v2899 = vpop.permute.xlu0 %2898
    %2900 = vrot.lane.b32.xlu0 %v2829, 16
    %v2901 = vpop.permute.xlu0 %2900
    %2902 = vrot.lane.b32.xlu0 %v2830, 16
    %v2903 = vpop.permute.xlu0 %2902
    %2904 = vrot.lane.b32.xlu0 %v2831, 16
    %v2905 = vpop.permute.xlu0 %2904
    %2906 = vrot.lane.b32.xlu0 %v2832, 16
    %v2907 = vpop.permute.xlu0 %2906
    %2908 = vrot.lane.b32.xlu0 %v2833, 16
    %v2909 = vpop.permute.xlu0 %2908
    %2910 = vrot.lane.b32.xlu0 %v2834, 16
    %v2911 = vpop.permute.xlu0 %2910
    %2912 = vrot.lane.b32.xlu0 %v2835, 16
    %v2913 = vpop.permute.xlu0 %2912
    %2914 = vrot.lane.b32.xlu0 %v2836, 16
    %v2915 = vpop.permute.xlu0 %2914
    %2916 = vrot.lane.b32.xlu0 %v2837, 16
    %v2917 = vpop.permute.xlu0 %2916
    %v2920 = vsel %vm1550, %v2806, %v2839
    %v2923 = vsel %vm1550, %v2807, %v2841
    %v2926 = vsel %vm1550, %v2808, %v2843
    %v2929 = vsel %vm1550, %v2809, %v2845
    %v2932 = vsel %vm1550, %v2810, %v2847
    %v2935 = vsel %vm1550, %v2811, %v2849
    %v2938 = vsel %vm1550, %v2812, %v2851
    %v2941 = vsel %vm1550, %v2813, %v2853
    %v2944 = vsel %vm1550, %v2814, %v2855
    %v2947 = vsel %vm1550, %v2815, %v2857
    %v2950 = vsel %vm1550, %v2816, %v2859
    %v2953 = vsel %vm1550, %v2817, %v2861
    %v2956 = vsel %vm1550, %v2818, %v2863
    %v2959 = vsel %vm1550, %v2819, %v2865
    %v2962 = vsel %vm1550, %v2820, %v2867
    %v2965 = vsel %vm1550, %v2821, %v2869
    %v2967 = vsel %vm1599, %v2920, %v2887
    %v2969 = vsel %vm1599, %v2923, %v2889
    %v2971 = vsel %vm1599, %v2926, %v2891
    %v2973 = vsel %vm1599, %v2929, %v2893
    %v2975 = vsel %vm1599, %v2932, %v2895
    %v2977 = vsel %vm1599, %v2935, %v2897
    %v2979 = vsel %vm1599, %v2938, %v2899
    %v2981 = vsel %vm1599, %v2941, %v2901
    %v2983 = vsel %vm1599, %v2944, %v2903
    %v2985 = vsel %vm1599, %v2947, %v2905
    %v2987 = vsel %vm1599, %v2950, %v2907
    %v2989 = vsel %vm1599, %v2953, %v2909
    %v2991 = vsel %vm1599, %v2956, %v2911
    %v2993 = vsel %vm1599, %v2959, %v2913
    %v2995 = vsel %vm1599, %v2962, %v2915
    %v2997 = vsel %vm1599, %v2965, %v2917
    %v2998 = vld [vmem:[%s1632] sm:$0xf]
    %v2999 = vld [vmem:[%s1632 + $0x4] sm:$0xf]
    %v3000 = vld [vmem:[%s1632 + $0x8] sm:$0xf]
    %v3004 = vunpack.c.l.b16 %v2998
    %v3005 = vunpack.c.l.b16 %v2999
    %v3006 = vunpack.c.l.b16 %v3000
    %v3007 = vpack.c.b16 %v3005, %v3004
    %v3008 = vpack.c.b16 %v3006, %v3006
    %v3010 = vsel %vm1645, %v2967, 0
    %v3012 = vsel %vm1645, %v2969, 0
    %v3014 = vsel %vm1645, %v2971, 0
    %v3016 = vsel %vm1645, %v2973, 0
    %v3018 = vsel %vm1645, %v2975, 0
    %v3020 = vsel %vm1645, %v2977, 0
    %v3022 = vsel %vm1645, %v2979, 0
    %v3024 = vsel %vm1645, %v2981, 0
    %v3026 = vsel %vm1645, %v2983, 0
    %v3028 = vsel %vm1645, %v2985, 0
    %v3030 = vsel %vm1645, %v2987, 0
    %v3032 = vsel %vm1645, %v2989, 0
    %v3034 = vsel %vm1645, %v2991, 0
    %v3036 = vsel %vm1645, %v2993, 0
    %v3038 = vsel %vm1645, %v2995, 0
    %v3040 = vsel %vm1645, %v2997, 0
    %v3043 = vsel %vm1678, %v3008, 0
    %3045 = vmatpush.bf16.msra.mxu0 0
    %3046 = vmatpush.bf16.msra.mxu0 0
    %3047 = vmatpush.bf16.msra.mxu0 0
    %3048 = vmatpush.bf16.msra.mxu0 0
    %3049 = vmatpush.bf16.msra.mxu0 0
    %3050 = vmatpush.bf16.msra.mxu0 0
    %3051 = vmatpush.bf16.msra.mxu0 %v3043
    %3052 = vmatpush.bf16.msra.mxu0 %v3007
    %3053 = vmatmul.bf16.gmra.mxu0 %v3010
    %v3054 = vpop.f32.mrf.mxu0
    %v3055 = vadd.f32 0.0, %v3054
    %v3056 = vpop.f32.mrf.mxu0
    %v3057 = vadd.f32 0.0, %v3056
    %3058 = vmatmul.bf16.gmra.mxu0 %v3012
    %v3059 = vpop.f32.mrf.mxu0
    %v3060 = vadd.f32 0.0, %v3059
    %v3061 = vpop.f32.mrf.mxu0
    %v3062 = vadd.f32 0.0, %v3061
    %3063 = vmatmul.bf16.gmra.mxu0 %v3014
    %v3064 = vpop.f32.mrf.mxu0
    %v3065 = vadd.f32 0.0, %v3064
    %v3066 = vpop.f32.mrf.mxu0
    %v3067 = vadd.f32 0.0, %v3066
    %3068 = vmatmul.bf16.gmra.mxu0 %v3016
    %v3069 = vpop.f32.mrf.mxu0
    %v3070 = vadd.f32 0.0, %v3069
    %v3071 = vpop.f32.mrf.mxu0
    %v3072 = vadd.f32 0.0, %v3071
    %3073 = vmatmul.bf16.gmra.mxu0 %v3018
    %v3074 = vpop.f32.mrf.mxu0
    %v3075 = vadd.f32 0.0, %v3074
    %v3076 = vpop.f32.mrf.mxu0
    %v3077 = vadd.f32 0.0, %v3076
    %3078 = vmatmul.bf16.gmra.mxu0 %v3020
    %v3079 = vpop.f32.mrf.mxu0
    %v3080 = vadd.f32 0.0, %v3079
    %v3081 = vpop.f32.mrf.mxu0
    %v3082 = vadd.f32 0.0, %v3081
    %3083 = vmatmul.bf16.gmra.mxu0 %v3022
    %v3084 = vpop.f32.mrf.mxu0
    %v3085 = vadd.f32 0.0, %v3084
    %v3086 = vpop.f32.mrf.mxu0
    %v3087 = vadd.f32 0.0, %v3086
    %3088 = vmatmul.bf16.gmra.mxu0 %v3024
    %v3089 = vpop.f32.mrf.mxu0
    %v3090 = vadd.f32 0.0, %v3089
    %v3091 = vpop.f32.mrf.mxu0
    %v3092 = vadd.f32 0.0, %v3091
    %3093 = vmatmul.bf16.gmra.mxu0 %v3026
    %v3094 = vpop.f32.mrf.mxu0
    %v3095 = vadd.f32 0.0, %v3094
    %v3096 = vpop.f32.mrf.mxu0
    %v3097 = vadd.f32 0.0, %v3096
    %3098 = vmatmul.bf16.gmra.mxu0 %v3028
    %v3099 = vpop.f32.mrf.mxu0
    %v3100 = vadd.f32 0.0, %v3099
    %v3101 = vpop.f32.mrf.mxu0
    %v3102 = vadd.f32 0.0, %v3101
    %3103 = vmatmul.bf16.gmra.mxu0 %v3030
    %v3104 = vpop.f32.mrf.mxu0
    %v3105 = vadd.f32 0.0, %v3104
    %v3106 = vpop.f32.mrf.mxu0
    %v3107 = vadd.f32 0.0, %v3106
    %3108 = vmatmul.bf16.gmra.mxu0 %v3032
    %v3109 = vpop.f32.mrf.mxu0
    %v3110 = vadd.f32 0.0, %v3109
    %v3111 = vpop.f32.mrf.mxu0
    %v3112 = vadd.f32 0.0, %v3111
    %3113 = vmatmul.bf16.gmra.mxu0 %v3034
    %v3114 = vpop.f32.mrf.mxu0
    %v3115 = vadd.f32 0.0, %v3114
    %v3116 = vpop.f32.mrf.mxu0
    %v3117 = vadd.f32 0.0, %v3116
    %3118 = vmatmul.bf16.gmra.mxu0 %v3036
    %v3119 = vpop.f32.mrf.mxu0
    %v3120 = vadd.f32 0.0, %v3119
    %v3121 = vpop.f32.mrf.mxu0
    %v3122 = vadd.f32 0.0, %v3121
    %3123 = vmatmul.bf16.gmra.mxu0 %v3038
    %v3124 = vpop.f32.mrf.mxu0
    %v3125 = vadd.f32 0.0, %v3124
    %v3126 = vpop.f32.mrf.mxu0
    %v3127 = vadd.f32 0.0, %v3126
    %3128 = vmatmul.bf16.gmra.mxu0 %v3040
    %v3129 = vpop.f32.mrf.mxu0
    %v3130 = vadd.f32 0.0, %v3129
    %v3131 = vpop.f32.mrf.mxu0
    %v3132 = vadd.f32 0.0, %v3131
    %3133 = vdwg.mxu0
    %3134 = vst.msk [vmem:[#allocation2] sm:$0xff] %vm1550, %v3055
    %3135 = vst.msk [vmem:[#allocation2 + $0x8] sm:$0xff] %vm1550, %v3057
    %3136 = vst.msk [vmem:[#allocation2 + $0x10] sm:$0xff] %vm1550, %v3060
    %3137 = vst.msk [vmem:[#allocation2 + $0x18] sm:$0xff] %vm1550, %v3062
    %3138 = vst.msk [vmem:[#allocation2 + $0x20] sm:$0xff] %vm1550, %v3065
    %3139 = vst.msk [vmem:[#allocation2 + $0x28] sm:$0xff] %vm1550, %v3067
    %3140 = vst.msk [vmem:[#allocation2 + $0x30] sm:$0xff] %vm1550, %v3070
    %3141 = vst.msk [vmem:[#allocation2 + $0x38] sm:$0xff] %vm1550, %v3072
    %3142 = vst.msk [vmem:[#allocation2 + $0x40] sm:$0xff] %vm1550, %v3075
    %3143 = vst.msk [vmem:[#allocation2 + $0x48] sm:$0xff] %vm1550, %v3077
    %3144 = vst.msk [vmem:[#allocation2 + $0x50] sm:$0xff] %vm1550, %v3080
    %3145 = vst.msk [vmem:[#allocation2 + $0x58] sm:$0xff] %vm1550, %v3082
    %3146 = vst.msk [vmem:[#allocation2 + $0x60] sm:$0xff] %vm1550, %v3085
    %3147 = vst.msk [vmem:[#allocation2 + $0x68] sm:$0xff] %vm1550, %v3087
    %3148 = vst.msk [vmem:[#allocation2 + $0x70] sm:$0xff] %vm1550, %v3090
    %3149 = vst.msk [vmem:[#allocation2 + $0x78] sm:$0xff] %vm1550, %v3092
    %3150 = vst.msk [vmem:[#allocation2 + $0x80] sm:$0xff] %vm1550, %v3095
    %3151 = vst.msk [vmem:[#allocation2 + $0x88] sm:$0xff] %vm1550, %v3097
    %3152 = vst.msk [vmem:[#allocation2 + $0x90] sm:$0xff] %vm1550, %v3100
    %3153 = vst.msk [vmem:[#allocation2 + $0x98] sm:$0xff] %vm1550, %v3102
    %3154 = vst.msk [vmem:[#allocation2 + $0xa0] sm:$0xff] %vm1550, %v3105
    %3155 = vst.msk [vmem:[#allocation2 + $0xa8] sm:$0xff] %vm1550, %v3107
    %3156 = vst.msk [vmem:[#allocation2 + $0xb0] sm:$0xff] %vm1550, %v3110
    %3157 = vst.msk [vmem:[#allocation2 + $0xb8] sm:$0xff] %vm1550, %v3112
    %3158 = vst.msk [vmem:[#allocation2 + $0xc0] sm:$0xff] %vm1550, %v3115
    %3159 = vst.msk [vmem:[#allocation2 + $0xc8] sm:$0xff] %vm1550, %v3117
    %3160 = vst.msk [vmem:[#allocation2 + $0xd0] sm:$0xff] %vm1550, %v3120
    %3161 = vst.msk [vmem:[#allocation2 + $0xd8] sm:$0xff] %vm1550, %v3122
    %3162 = vst.msk [vmem:[#allocation2 + $0xe0] sm:$0xff] %vm1550, %v3125
    %3163 = vst.msk [vmem:[#allocation2 + $0xe8] sm:$0xff] %vm1550, %v3127
    %3164 = vst.msk [vmem:[#allocation2 + $0xf0] sm:$0xff] %vm1550, %v3130
    %3165 = vst.msk [vmem:[#allocation2 + $0xf8] sm:$0xff] %vm1550, %v3132
    %v3166 = vld [vmem:[#allocation2 + $0x10] sm:$0xff]
    %v3167 = vld [vmem:[#allocation2 + $0x18] sm:$0xff]
    %v3168 = vld [vmem:[#allocation2 + $0x20] sm:$0xff]
    %v3169 = vld [vmem:[#allocation2 + $0x28] sm:$0xff]
    %v3170 = vld [vmem:[#allocation2 + $0x30] sm:$0xff]
    %v3171 = vld [vmem:[#allocation2 + $0x38] sm:$0xff]
    %v3172 = vld [vmem:[#allocation2 + $0x40] sm:$0xff]
    %v3173 = vld [vmem:[#allocation2 + $0x48] sm:$0xff]
    %v3174 = vld [vmem:[#allocation2 + $0x50] sm:$0xff]
    %v3175 = vld [vmem:[#allocation2 + $0x58] sm:$0xff]
    %v3176 = vld [vmem:[#allocation2 + $0x60] sm:$0xff]
    %v3177 = vld [vmem:[#allocation2 + $0x68] sm:$0xff]
    %v3178 = vld [vmem:[#allocation2 + $0x70] sm:$0xff]
    %v3179 = vld [vmem:[#allocation2 + $0x78] sm:$0xff]
    %v3180 = vld [vmem:[#allocation2 + $0x80] sm:$0xff]
    %v3181 = vld [vmem:[#allocation2 + $0x88] sm:$0xff]
    %v3182 = vld [vmem:[#allocation2 + $0x90] sm:$0xff]
    %v3183 = vld [vmem:[#allocation2 + $0x98] sm:$0xff]
    %v3184 = vld [vmem:[#allocation2 + $0xa0] sm:$0xff]
    %v3185 = vld [vmem:[#allocation2 + $0xa8] sm:$0xff]
    %v3186 = vld [vmem:[#allocation2 + $0xb0] sm:$0xff]
    %v3187 = vld [vmem:[#allocation2 + $0xb8] sm:$0xff]
    %v3188 = vld [vmem:[#allocation2 + $0xc0] sm:$0xff]
    %v3189 = vld [vmem:[#allocation2 + $0xc8] sm:$0xff]
    %v3190 = vld [vmem:[#allocation2 + $0xd0] sm:$0xff]
    %v3191 = vld [vmem:[#allocation2 + $0xd8] sm:$0xff]
    %v3192 = vld [vmem:[#allocation2 + $0xe0] sm:$0xff]
    %v3193 = vld [vmem:[#allocation2 + $0xe8] sm:$0xff]
    %v3194 = vld [vmem:[#allocation2 + $0xf0] sm:$0xff]
    %v3195 = vld [vmem:[#allocation2 + $0xf8] sm:$0xff]
    %v3196 = vld [vmem:[%s1] sm:$0xf]
    %v3197 = vld [vmem:[%s1 + $0x4] sm:$0xf]
    %v3198 = vld [vmem:[%s1 + $0x8] sm:$0xf]
    %v3202 = vunpack.c.l.b16 %v3196
    %v3203 = vunpack.c.l.b16 %v3197
    %v3204 = vunpack.c.l.b16 %v3198
    %v3205 = vpack.c.b16 %v3203, %v3202
    %v3206 = vpack.c.b16 %v3204, %v3204
    %v3209 = vsel %vm1678, %v3206, 0
    %3211 = vmatpush.bf16.msra.mxu0 0
    %3212 = vmatpush.bf16.msra.mxu0 0
    %3213 = vmatpush.bf16.msra.mxu0 0
    %3214 = vmatpush.bf16.msra.mxu0 0
    %3215 = vmatpush.bf16.msra.mxu0 0
    %3216 = vmatpush.bf16.msra.mxu0 0
    %3217 = vmatpush.bf16.msra.mxu0 %v3209
    %3218 = vmatpush.bf16.msra.mxu0 %v3205
    %3219 = vmatmul.bf16.gmra.mxu0 %v3010
    %v3220 = vpop.f32.mrf.mxu0
    %v3221 = vadd.f32 0.0, %v3220
    %v3222 = vpop.f32.mrf.mxu0
    %v3223 = vadd.f32 0.0, %v3222
    %3224 = vmatmul.bf16.gmra.mxu0 %v3012
    %v3225 = vpop.f32.mrf.mxu0
    %v3226 = vadd.f32 0.0, %v3225
    %v3227 = vpop.f32.mrf.mxu0
    %v3228 = vadd.f32 0.0, %v3227
    %3229 = vmatmul.bf16.gmra.mxu0 %v3014
    %v3230 = vpop.f32.mrf.mxu0
    %v3231 = vadd.f32 0.0, %v3230
    %v3232 = vpop.f32.mrf.mxu0
    %v3233 = vadd.f32 0.0, %v3232
    %3234 = vmatmul.bf16.gmra.mxu0 %v3016
    %v3235 = vpop.f32.mrf.mxu0
    %v3236 = vadd.f32 0.0, %v3235
    %v3237 = vpop.f32.mrf.mxu0
    %v3238 = vadd.f32 0.0, %v3237
    %3239 = vmatmul.bf16.gmra.mxu0 %v3018
    %v3240 = vpop.f32.mrf.mxu0
    %v3241 = vadd.f32 0.0, %v3240
    %v3242 = vpop.f32.mrf.mxu0
    %v3243 = vadd.f32 0.0, %v3242
    %3244 = vmatmul.bf16.gmra.mxu0 %v3020
    %v3245 = vpop.f32.mrf.mxu0
    %v3246 = vadd.f32 0.0, %v3245
    %v3247 = vpop.f32.mrf.mxu0
    %v3248 = vadd.f32 0.0, %v3247
    %3249 = vmatmul.bf16.gmra.mxu0 %v3022
    %v3250 = vpop.f32.mrf.mxu0
    %v3251 = vadd.f32 0.0, %v3250
    %v3252 = vpop.f32.mrf.mxu0
    %v3253 = vadd.f32 0.0, %v3252
    %3254 = vmatmul.bf16.gmra.mxu0 %v3024
    %v3255 = vpop.f32.mrf.mxu0
    %v3256 = vadd.f32 0.0, %v3255
    %v3257 = vpop.f32.mrf.mxu0
    %v3258 = vadd.f32 0.0, %v3257
    %3259 = vmatmul.bf16.gmra.mxu0 %v3026
    %v3260 = vpop.f32.mrf.mxu0
    %v3261 = vadd.f32 0.0, %v3260
    %v3262 = vpop.f32.mrf.mxu0
    %v3263 = vadd.f32 0.0, %v3262
    %3264 = vmatmul.bf16.gmra.mxu0 %v3028
    %v3265 = vpop.f32.mrf.mxu0
    %v3266 = vadd.f32 0.0, %v3265
    %v3267 = vpop.f32.mrf.mxu0
    %v3268 = vadd.f32 0.0, %v3267
    %3269 = vmatmul.bf16.gmra.mxu0 %v3030
    %v3270 = vpop.f32.mrf.mxu0
    %v3271 = vadd.f32 0.0, %v3270
    %v3272 = vpop.f32.mrf.mxu0
    %v3273 = vadd.f32 0.0, %v3272
    %3274 = vmatmul.bf16.gmra.mxu0 %v3032
    %v3275 = vpop.f32.mrf.mxu0
    %v3276 = vadd.f32 0.0, %v3275
    %v3277 = vpop.f32.mrf.mxu0
    %v3278 = vadd.f32 0.0, %v3277
    %3279 = vmatmul.bf16.gmra.mxu0 %v3034
    %v3280 = vpop.f32.mrf.mxu0
    %v3281 = vadd.f32 0.0, %v3280
    %v3282 = vpop.f32.mrf.mxu0
    %v3283 = vadd.f32 0.0, %v3282
    %3284 = vmatmul.bf16.gmra.mxu0 %v3036
    %v3285 = vpop.f32.mrf.mxu0
    %v3286 = vadd.f32 0.0, %v3285
    %v3287 = vpop.f32.mrf.mxu0
    %v3288 = vadd.f32 0.0, %v3287
    %3289 = vmatmul.bf16.gmra.mxu0 %v3038
    %v3290 = vpop.f32.mrf.mxu0
    %v3291 = vadd.f32 0.0, %v3290
    %v3292 = vpop.f32.mrf.mxu0
    %v3293 = vadd.f32 0.0, %v3292
    %3294 = vdwg.mxu0
    %v3295 = vadd.f32 %v3166, %v3221
    %v3296 = vadd.f32 %v3167, %v3223
    %v3297 = vadd.f32 %v3168, %v3226
    %v3298 = vadd.f32 %v3169, %v3228
    %v3299 = vadd.f32 %v3170, %v3231
    %v3300 = vadd.f32 %v3171, %v3233
    %v3301 = vadd.f32 %v3172, %v3236
    %v3302 = vadd.f32 %v3173, %v3238
    %v3303 = vadd.f32 %v3174, %v3241
    %v3304 = vadd.f32 %v3175, %v3243
    %v3305 = vadd.f32 %v3176, %v3246
    %v3306 = vadd.f32 %v3177, %v3248
    %v3307 = vadd.f32 %v3178, %v3251
    %v3308 = vadd.f32 %v3179, %v3253
    %v3309 = vadd.f32 %v3180, %v3256
    %v3310 = vadd.f32 %v3181, %v3258
    %v3311 = vadd.f32 %v3182, %v3261
    %v3312 = vadd.f32 %v3183, %v3263
    %v3313 = vadd.f32 %v3184, %v3266
    %v3314 = vadd.f32 %v3185, %v3268
    %v3315 = vadd.f32 %v3186, %v3271
    %v3316 = vadd.f32 %v3187, %v3273
    %v3317 = vadd.f32 %v3188, %v3276
    %v3318 = vadd.f32 %v3189, %v3278
    %v3319 = vadd.f32 %v3190, %v3281
    %v3320 = vadd.f32 %v3191, %v3283
    %v3321 = vadd.f32 %v3192, %v3286
    %v3322 = vadd.f32 %v3193, %v3288
    %v3323 = vadd.f32 %v3194, %v3291
    %v3324 = vadd.f32 %v3195, %v3293
    %3325 = vst.msk [vmem:[#allocation2 + $0x10] sm:$0xff] %vm1550, %v3295
    %3326 = vst.msk [vmem:[#allocation2 + $0x18] sm:$0xff] %vm1550, %v3296
    %3327 = vst.msk [vmem:[#allocation2 + $0x20] sm:$0xff] %vm1550, %v3297
    %3328 = vst.msk [vmem:[#allocation2 + $0x28] sm:$0xff] %vm1550, %v3298
    %3329 = vst.msk [vmem:[#allocation2 + $0x30] sm:$0xff] %vm1550, %v3299
    %3330 = vst.msk [vmem:[#allocation2 + $0x38] sm:$0xff] %vm1550, %v3300
    %3331 = vst.msk [vmem:[#allocation2 + $0x40] sm:$0xff] %vm1550, %v3301
    %3332 = vst.msk [vmem:[#allocation2 + $0x48] sm:$0xff] %vm1550, %v3302
    %3333 = vst.msk [vmem:[#allocation2 + $0x50] sm:$0xff] %vm1550, %v3303
    %3334 = vst.msk [vmem:[#allocation2 + $0x58] sm:$0xff] %vm1550, %v3304
    %3335 = vst.msk [vmem:[#allocation2 + $0x60] sm:$0xff] %vm1550, %v3305
    %3336 = vst.msk [vmem:[#allocation2 + $0x68] sm:$0xff] %vm1550, %v3306
    %3337 = vst.msk [vmem:[#allocation2 + $0x70] sm:$0xff] %vm1550, %v3307
    %3338 = vst.msk [vmem:[#allocation2 + $0x78] sm:$0xff] %vm1550, %v3308
    %3339 = vst.msk [vmem:[#allocation2 + $0x80] sm:$0xff] %vm1550, %v3309
    %3340 = vst.msk [vmem:[#allocation2 + $0x88] sm:$0xff] %vm1550, %v3310
    %3341 = vst.msk [vmem:[#allocation2 + $0x90] sm:$0xff] %vm1550, %v3311
    %3342 = vst.msk [vmem:[#allocation2 + $0x98] sm:$0xff] %vm1550, %v3312
    %3343 = vst.msk [vmem:[#allocation2 + $0xa0] sm:$0xff] %vm1550, %v3313
    %3344 = vst.msk [vmem:[#allocation2 + $0xa8] sm:$0xff] %vm1550, %v3314
    %3345 = vst.msk [vmem:[#allocation2 + $0xb0] sm:$0xff] %vm1550, %v3315
    %3346 = vst.msk [vmem:[#allocation2 + $0xb8] sm:$0xff] %vm1550, %v3316
    %3347 = vst.msk [vmem:[#allocation2 + $0xc0] sm:$0xff] %vm1550, %v3317
    %3348 = vst.msk [vmem:[#allocation2 + $0xc8] sm:$0xff] %vm1550, %v3318
    %3349 = vst.msk [vmem:[#allocation2 + $0xd0] sm:$0xff] %vm1550, %v3319
    %3350 = vst.msk [vmem:[#allocation2 + $0xd8] sm:$0xff] %vm1550, %v3320
    %3351 = vst.msk [vmem:[#allocation2 + $0xe0] sm:$0xff] %vm1550, %v3321
    %3352 = vst.msk [vmem:[#allocation2 + $0xe8] sm:$0xff] %vm1550, %v3322
    %3353 = vst.msk [vmem:[#allocation2 + $0xf0] sm:$0xff] %vm1550, %v3323
    %3354 = vst.msk [vmem:[#allocation2 + $0xf8] sm:$0xff] %vm1550, %v3324
    %v3355 = vld [vmem:[#allocation2] sm:$0xff]
    %v3356 = vld [vmem:[#allocation2 + $0x8] sm:$0xff]
    %v3357 = vld [vmem:[#allocation2 + $0x10] sm:$0xff]
    %v3358 = vld [vmem:[#allocation2 + $0x18] sm:$0xff]
    %v3359 = vld [vmem:[#allocation2 + $0x20] sm:$0xff]
    %v3360 = vld [vmem:[#allocation2 + $0x28] sm:$0xff]
    %v3361 = vld [vmem:[#allocation2 + $0x30] sm:$0xff]
    %v3362 = vld [vmem:[#allocation2 + $0x38] sm:$0xff]
    %v3363 = vld [vmem:[#allocation2 + $0x40] sm:$0xff]
    %v3364 = vld [vmem:[#allocation2 + $0x48] sm:$0xff]
    %v3365 = vld [vmem:[#allocation2 + $0x50] sm:$0xff]
    %v3366 = vld [vmem:[#allocation2 + $0x58] sm:$0xff]
    %v3367 = vld [vmem:[#allocation2 + $0x60] sm:$0xff]
    %v3368 = vld [vmem:[#allocation2 + $0x68] sm:$0xff]
    %v3369 = vld [vmem:[#allocation2 + $0x70] sm:$0xff]
    %v3370 = vld [vmem:[#allocation2 + $0x78] sm:$0xff]
    %v3371 = vld [vmem:[#allocation2 + $0x80] sm:$0xff]
    %v3372 = vld [vmem:[#allocation2 + $0x88] sm:$0xff]
    %v3373 = vld [vmem:[#allocation2 + $0x90] sm:$0xff]
    %v3374 = vld [vmem:[#allocation2 + $0x98] sm:$0xff]
    %v3375 = vld [vmem:[#allocation2 + $0xa0] sm:$0xff]
    %v3376 = vld [vmem:[#allocation2 + $0xa8] sm:$0xff]
    %v3377 = vld [vmem:[#allocation2 + $0xb0] sm:$0xff]
    %v3378 = vld [vmem:[#allocation2 + $0xb8] sm:$0xff]
    %v3379 = vld [vmem:[#allocation2 + $0xc0] sm:$0xff]
    %v3380 = vld [vmem:[#allocation2 + $0xc8] sm:$0xff]
    %v3381 = vld [vmem:[#allocation2 + $0xd0] sm:$0xff]
    %v3382 = vld [vmem:[#allocation2 + $0xd8] sm:$0xff]
    %v3383 = vld [vmem:[#allocation2 + $0xe0] sm:$0xff]
    %v3384 = vld [vmem:[#allocation2 + $0xe8] sm:$0xff]
    %v3385 = vld [vmem:[%s2022] sm:$0xf]
    %v3386 = vld [vmem:[%s2022 + $0x4] sm:$0xf]
    %v3387 = vld [vmem:[%s2022 + $0x8] sm:$0xf]
    %v3391 = vunpack.c.l.b16 %v3385
    %v3392 = vunpack.c.l.b16 %v3386
    %v3393 = vunpack.c.l.b16 %v3387
    %v3394 = vpack.c.b16 %v3392, %v3391
    %v3395 = vpack.c.b16 %v3393, %v3393
    %v3398 = vsel %vm1678, %v3395, 0
    %3400 = vmatpush.bf16.msra.mxu0 0
    %3401 = vmatpush.bf16.msra.mxu0 0
    %3402 = vmatpush.bf16.msra.mxu0 0
    %3403 = vmatpush.bf16.msra.mxu0 0
    %3404 = vmatpush.bf16.msra.mxu0 0
    %3405 = vmatpush.bf16.msra.mxu0 0
    %3406 = vmatpush.bf16.msra.mxu0 %v3398
    %3407 = vmatpush.bf16.msra.mxu0 %v3394
    %3408 = vmatmul.bf16.gmra.mxu0 %v3012
    %v3409 = vpop.f32.mrf.mxu0
    %v3410 = vadd.f32 0.0, %v3409
    %v3411 = vpop.f32.mrf.mxu0
    %v3412 = vadd.f32 0.0, %v3411
    %3413 = vmatmul.bf16.gmra.mxu0 %v3014
    %v3414 = vpop.f32.mrf.mxu0
    %v3415 = vadd.f32 0.0, %v3414
    %v3416 = vpop.f32.mrf.mxu0
    %v3417 = vadd.f32 0.0, %v3416
    %3418 = vmatmul.bf16.gmra.mxu0 %v3016
    %v3419 = vpop.f32.mrf.mxu0
    %v3420 = vadd.f32 0.0, %v3419
    %v3421 = vpop.f32.mrf.mxu0
    %v3422 = vadd.f32 0.0, %v3421
    %3423 = vmatmul.bf16.gmra.mxu0 %v3018
    %v3424 = vpop.f32.mrf.mxu0
    %v3425 = vadd.f32 0.0, %v3424
    %v3426 = vpop.f32.mrf.mxu0
    %v3427 = vadd.f32 0.0, %v3426
    %3428 = vmatmul.bf16.gmra.mxu0 %v3020
    %v3429 = vpop.f32.mrf.mxu0
    %v3430 = vadd.f32 0.0, %v3429
    %v3431 = vpop.f32.mrf.mxu0
    %v3432 = vadd.f32 0.0, %v3431
    %3433 = vmatmul.bf16.gmra.mxu0 %v3022
    %v3434 = vpop.f32.mrf.mxu0
    %v3435 = vadd.f32 0.0, %v3434
    %v3436 = vpop.f32.mrf.mxu0
    %v3437 = vadd.f32 0.0, %v3436
    %3438 = vmatmul.bf16.gmra.mxu0 %v3024
    %v3439 = vpop.f32.mrf.mxu0
    %v3440 = vadd.f32 0.0, %v3439
    %v3441 = vpop.f32.mrf.mxu0
    %v3442 = vadd.f32 0.0, %v3441
    %3443 = vmatmul.bf16.gmra.mxu0 %v3026
    %v3444 = vpop.f32.mrf.mxu0
    %v3445 = vadd.f32 0.0, %v3444
    %v3446 = vpop.f32.mrf.mxu0
    %v3447 = vadd.f32 0.0, %v3446
    %3448 = vmatmul.bf16.gmra.mxu0 %v3028
    %v3449 = vpop.f32.mrf.mxu0
    %v3450 = vadd.f32 0.0, %v3449
    %v3451 = vpop.f32.mrf.mxu0
    %v3452 = vadd.f32 0.0, %v3451
    %3453 = vmatmul.bf16.gmra.mxu0 %v3030
    %v3454 = vpop.f32.mrf.mxu0
    %v3455 = vadd.f32 0.0, %v3454
    %v3456 = vpop.f32.mrf.mxu0
    %v3457 = vadd.f32 0.0, %v3456
    %3458 = vmatmul.bf16.gmra.mxu0 %v3032
    %v3459 = vpop.f32.mrf.mxu0
    %v3460 = vadd.f32 0.0, %v3459
    %v3461 = vpop.f32.mrf.mxu0
    %v3462 = vadd.f32 0.0, %v3461
    %3463 = vmatmul.bf16.gmra.mxu0 %v3034
    %v3464 = vpop.f32.mrf.mxu0
    %v3465 = vadd.f32 0.0, %v3464
    %v3466 = vpop.f32.mrf.mxu0
    %v3467 = vadd.f32 0.0, %v3466
    %3468 = vmatmul.bf16.gmra.mxu0 %v3036
    %v3469 = vpop.f32.mrf.mxu0
    %v3470 = vadd.f32 0.0, %v3469
    %v3471 = vpop.f32.mrf.mxu0
    %v3472 = vadd.f32 0.0, %v3471
    %3473 = vmatmul.bf16.gmra.mxu0 %v3038
    %v3474 = vpop.f32.mrf.mxu0
    %v3475 = vadd.f32 0.0, %v3474
    %v3476 = vpop.f32.mrf.mxu0
    %v3477 = vadd.f32 0.0, %v3476
    %3478 = vmatmul.bf16.gmra.mxu0 %v3040
    %v3479 = vpop.f32.mrf.mxu0
    %v3480 = vadd.f32 0.0, %v3479
    %v3481 = vpop.f32.mrf.mxu0
    %v3482 = vadd.f32 0.0, %v3481
    %3483 = vdwg.mxu0
    %v3484 = vadd.f32 %v3355, %v3410
    %v3485 = vadd.f32 %v3356, %v3412
    %v3486 = vadd.f32 %v3357, %v3415
    %v3487 = vadd.f32 %v3358, %v3417
    %v3488 = vadd.f32 %v3359, %v3420
    %v3489 = vadd.f32 %v3360, %v3422
    %v3490 = vadd.f32 %v3361, %v3425
    %v3491 = vadd.f32 %v3362, %v3427
    %v3492 = vadd.f32 %v3363, %v3430
    %v3493 = vadd.f32 %v3364, %v3432
    %v3494 = vadd.f32 %v3365, %v3435
    %v3495 = vadd.f32 %v3366, %v3437
    %v3496 = vadd.f32 %v3367, %v3440
    %v3497 = vadd.f32 %v3368, %v3442
    %v3498 = vadd.f32 %v3369, %v3445
    %v3499 = vadd.f32 %v3370, %v3447
    %v3500 = vadd.f32 %v3371, %v3450
    %v3501 = vadd.f32 %v3372, %v3452
    %v3502 = vadd.f32 %v3373, %v3455
    %v3503 = vadd.f32 %v3374, %v3457
    %v3504 = vadd.f32 %v3375, %v3460
    %v3505 = vadd.f32 %v3376, %v3462
    %v3506 = vadd.f32 %v3377, %v3465
    %v3507 = vadd.f32 %v3378, %v3467
    %v3508 = vadd.f32 %v3379, %v3470
    %v3509 = vadd.f32 %v3380, %v3472
    %v3510 = vadd.f32 %v3381, %v3475
    %v3511 = vadd.f32 %v3382, %v3477
    %v3512 = vadd.f32 %v3383, %v3480
    %v3513 = vadd.f32 %v3384, %v3482
    %3514 = vst.msk [vmem:[#allocation2] sm:$0xff] %vm1550, %v3484
    %3515 = vst.msk [vmem:[#allocation2 + $0x8] sm:$0xff] %vm1550, %v3485
    %3516 = vst.msk [vmem:[#allocation2 + $0x10] sm:$0xff] %vm1550, %v3486
    %3517 = vst.msk [vmem:[#allocation2 + $0x18] sm:$0xff] %vm1550, %v3487
    %3518 = vst.msk [vmem:[#allocation2 + $0x20] sm:$0xff] %vm1550, %v3488
    %3519 = vst.msk [vmem:[#allocation2 + $0x28] sm:$0xff] %vm1550, %v3489
    %3520 = vst.msk [vmem:[#allocation2 + $0x30] sm:$0xff] %vm1550, %v3490
    %3521 = vst.msk [vmem:[#allocation2 + $0x38] sm:$0xff] %vm1550, %v3491
    %3522 = vst.msk [vmem:[#allocation2 + $0x40] sm:$0xff] %vm1550, %v3492
    %3523 = vst.msk [vmem:[#allocation2 + $0x48] sm:$0xff] %vm1550, %v3493
    %3524 = vst.msk [vmem:[#allocation2 + $0x50] sm:$0xff] %vm1550, %v3494
    %3525 = vst.msk [vmem:[#allocation2 + $0x58] sm:$0xff] %vm1550, %v3495
    %3526 = vst.msk [vmem:[#allocation2 + $0x60] sm:$0xff] %vm1550, %v3496
    %3527 = vst.msk [vmem:[#allocation2 + $0x68] sm:$0xff] %vm1550, %v3497
    %3528 = vst.msk [vmem:[#allocation2 + $0x70] sm:$0xff] %vm1550, %v3498
    %3529 = vst.msk [vmem:[#allocation2 + $0x78] sm:$0xff] %vm1550, %v3499
    %3530 = vst.msk [vmem:[#allocation2 + $0x80] sm:$0xff] %vm1550, %v3500
    %3531 = vst.msk [vmem:[#allocation2 + $0x88] sm:$0xff] %vm1550, %v3501
    %3532 = vst.msk [vmem:[#allocation2 + $0x90] sm:$0xff] %vm1550, %v3502
    %3533 = vst.msk [vmem:[#allocation2 + $0x98] sm:$0xff] %vm1550, %v3503
    %3534 = vst.msk [vmem:[#allocation2 + $0xa0] sm:$0xff] %vm1550, %v3504
    %3535 = vst.msk [vmem:[#allocation2 + $0xa8] sm:$0xff] %vm1550, %v3505
    %3536 = vst.msk [vmem:[#allocation2 + $0xb0] sm:$0xff] %vm1550, %v3506
    %3537 = vst.msk [vmem:[#allocation2 + $0xb8] sm:$0xff] %vm1550, %v3507
    %3538 = vst.msk [vmem:[#allocation2 + $0xc0] sm:$0xff] %vm1550, %v3508
    %3539 = vst.msk [vmem:[#allocation2 + $0xc8] sm:$0xff] %vm1550, %v3509
    %3540 = vst.msk [vmem:[#allocation2 + $0xd0] sm:$0xff] %vm1550, %v3510
    %3541 = vst.msk [vmem:[#allocation2 + $0xd8] sm:$0xff] %vm1550, %v3511
    %3542 = vst.msk [vmem:[#allocation2 + $0xe0] sm:$0xff] %vm1550, %v3512
    %3543 = vst.msk [vmem:[#allocation2 + $0xe8] sm:$0xff] %vm1550, %v3513
    %v3544 = vld [vmem:[#allocation2] sm:$0xff]
    %v3545 = vld [vmem:[#allocation2 + $0x8] sm:$0xff]
    %v3546 = vld [vmem:[#allocation2 + $0x10] sm:$0xff]
    %v3547 = vld [vmem:[#allocation2 + $0x18] sm:$0xff]
    %v3548 = vld [vmem:[#allocation2 + $0x20] sm:$0xff]
    %v3549 = vld [vmem:[#allocation2 + $0x28] sm:$0xff]
    %v3550 = vld [vmem:[#allocation2 + $0x30] sm:$0xff]
    %v3551 = vld [vmem:[#allocation2 + $0x38] sm:$0xff]
    %v3552 = vld [vmem:[#allocation2 + $0x40] sm:$0xff]
    %v3553 = vld [vmem:[#allocation2 + $0x48] sm:$0xff]
    %v3554 = vld [vmem:[#allocation2 + $0x50] sm:$0xff]
    %v3555 = vld [vmem:[#allocation2 + $0x58] sm:$0xff]
    %v3556 = vld [vmem:[#allocation2 + $0x60] sm:$0xff]
    %v3557 = vld [vmem:[#allocation2 + $0x68] sm:$0xff]
    %v3558 = vld [vmem:[#allocation2 + $0x70] sm:$0xff]
    %v3559 = vld [vmem:[#allocation2 + $0x78] sm:$0xff]
    %v3560 = vld [vmem:[#allocation2 + $0x80] sm:$0xff]
    %v3561 = vld [vmem:[#allocation2 + $0x88] sm:$0xff]
    %v3562 = vld [vmem:[#allocation2 + $0x90] sm:$0xff]
    %v3563 = vld [vmem:[#allocation2 + $0x98] sm:$0xff]
    %v3564 = vld [vmem:[#allocation2 + $0xa0] sm:$0xff]
    %v3565 = vld [vmem:[#allocation2 + $0xa8] sm:$0xff]
    %v3566 = vld [vmem:[#allocation2 + $0xb0] sm:$0xff]
    %v3567 = vld [vmem:[#allocation2 + $0xb8] sm:$0xff]
    %v3568 = vld [vmem:[#allocation2 + $0xc0] sm:$0xff]
    %v3569 = vld [vmem:[#allocation2 + $0xc8] sm:$0xff]
    %v3570 = vld [vmem:[#allocation2 + $0xd0] sm:$0xff]
    %v3571 = vld [vmem:[#allocation2 + $0xd8] sm:$0xff]
    %v3572 = vld [vmem:[#allocation2 + $0xe0] sm:$0xff]
    %v3573 = vld [vmem:[#allocation2 + $0xe8] sm:$0xff]
    %v3574 = vld [vmem:[#allocation2 + $0xf0] sm:$0xff]
    %v3575 = vld [vmem:[#allocation2 + $0xf8] sm:$0xff]
    %v3576 = vpack.c.bf16 %v3544, %v3544
    %v3577 = vpack.c.bf16 %v3545, %v3545
    %v3578 = vpack.c.bf16 %v3546, %v3546
    %v3579 = vpack.c.bf16 %v3547, %v3547
    %v3580 = vpack.c.bf16 %v3548, %v3548
    %v3581 = vpack.c.bf16 %v3549, %v3549
    %v3582 = vpack.c.bf16 %v3550, %v3550
    %v3583 = vpack.c.bf16 %v3551, %v3551
    %v3584 = vpack.c.bf16 %v3552, %v3552
    %v3585 = vpack.c.bf16 %v3553, %v3553
    %v3586 = vpack.c.bf16 %v3554, %v3554
    %v3587 = vpack.c.bf16 %v3555, %v3555
    %v3588 = vpack.c.bf16 %v3556, %v3556
    %v3589 = vpack.c.bf16 %v3557, %v3557
    %v3590 = vpack.c.bf16 %v3558, %v3558
    %v3591 = vpack.c.bf16 %v3559, %v3559
    %v3592 = vpack.c.bf16 %v3560, %v3560
    %v3593 = vpack.c.bf16 %v3561, %v3561
    %v3594 = vpack.c.bf16 %v3562, %v3562
    %v3595 = vpack.c.bf16 %v3563, %v3563
    %v3596 = vpack.c.bf16 %v3564, %v3564
    %v3597 = vpack.c.bf16 %v3565, %v3565
    %v3598 = vpack.c.bf16 %v3566, %v3566
    %v3599 = vpack.c.bf16 %v3567, %v3567
    %v3600 = vpack.c.bf16 %v3568, %v3568
    %v3601 = vpack.c.bf16 %v3569, %v3569
    %v3602 = vpack.c.bf16 %v3570, %v3570
    %v3603 = vpack.c.bf16 %v3571, %v3571
    %v3604 = vpack.c.bf16 %v3572, %v3572
    %v3605 = vpack.c.bf16 %v3573, %v3573
    %v3606 = vpack.c.bf16 %v3574, %v3574
    %v3607 = vpack.c.bf16 %v3575, %v3575
    %s3608 = scalar_lea.vmem %s4, 128
    %3609 = vst.msk [vmem:[%s3608] sm:$0xf] %vm2246, %v3576
    %3610 = vst.msk [vmem:[%s3608 + $0x4] sm:$0xf] %vm2246, %v3577
    %3611 = vst.msk [vmem:[%s3608 + $0x8] sm:$0xf] %vm2246, %v3578
    %3612 = vst.msk [vmem:[%s3608 + $0xc] sm:$0xf] %vm2246, %v3579
    %3613 = vst.msk [vmem:[%s3608 + $0x10] sm:$0xf] %vm2246, %v3580
    %3614 = vst.msk [vmem:[%s3608 + $0x14] sm:$0xf] %vm2246, %v3581
    %3615 = vst.msk [vmem:[%s3608 + $0x18] sm:$0xf] %vm2246, %v3582
    %3616 = vst.msk [vmem:[%s3608 + $0x1c] sm:$0xf] %vm2246, %v3583
    %3617 = vst.msk [vmem:[%s3608 + $0x20] sm:$0xf] %vm2246, %v3584
    %3618 = vst.msk [vmem:[%s3608 + $0x24] sm:$0xf] %vm2246, %v3585
    %3619 = vst.msk [vmem:[%s3608 + $0x28] sm:$0xf] %vm2246, %v3586
    %3620 = vst.msk [vmem:[%s3608 + $0x2c] sm:$0xf] %vm2246, %v3587
    %3621 = vst.msk [vmem:[%s3608 + $0x30] sm:$0xf] %vm2246, %v3588
    %3622 = vst.msk [vmem:[%s3608 + $0x34] sm:$0xf] %vm2246, %v3589
    %3623 = vst.msk [vmem:[%s3608 + $0x38] sm:$0xf] %vm2246, %v3590
    %3624 = vst.msk [vmem:[%s3608 + $0x3c] sm:$0xf] %vm2246, %v3591
    %3625 = vst.msk [vmem:[%s3608 + $0x40] sm:$0xf] %vm2246, %v3592
    %3626 = vst.msk [vmem:[%s3608 + $0x44] sm:$0xf] %vm2246, %v3593
    %3627 = vst.msk [vmem:[%s3608 + $0x48] sm:$0xf] %vm2246, %v3594
    %3628 = vst.msk [vmem:[%s3608 + $0x4c] sm:$0xf] %vm2246, %v3595
    %3629 = vst.msk [vmem:[%s3608 + $0x50] sm:$0xf] %vm2246, %v3596
    %3630 = vst.msk [vmem:[%s3608 + $0x54] sm:$0xf] %vm2246, %v3597
    %3631 = vst.msk [vmem:[%s3608 + $0x58] sm:$0xf] %vm2246, %v3598
    %3632 = vst.msk [vmem:[%s3608 + $0x5c] sm:$0xf] %vm2246, %v3599
    %3633 = vst.msk [vmem:[%s3608 + $0x60] sm:$0xf] %vm2246, %v3600
    %3634 = vst.msk [vmem:[%s3608 + $0x64] sm:$0xf] %vm2246, %v3601
    %3635 = vst.msk [vmem:[%s3608 + $0x68] sm:$0xf] %vm2246, %v3602
    %3636 = vst.msk [vmem:[%s3608 + $0x6c] sm:$0xf] %vm2246, %v3603
    %3637 = vst.msk [vmem:[%s3608 + $0x70] sm:$0xf] %vm2246, %v3604
    %3638 = vst.msk [vmem:[%s3608 + $0x74] sm:$0xf] %vm2246, %v3605
    %3639 = vst.msk [vmem:[%s3608 + $0x78] sm:$0xf] %vm2246, %v3606
    %3640 = vst.msk [vmem:[%s3608 + $0x7c] sm:$0xf] %vm2246, %v3607
    %v3641 = vsel %vm1550, %v3544, 0.0
    %v3642 = vsel %vm1550, %v3545, 0.0
    %v3643 = vadd.f32 %v3641, %v3642
    %v3644 = vsel %vm1550, %v3546, 0.0
    %v3645 = vadd.f32 %v3643, %v3644
    %v3646 = vsel %vm1550, %v3547, 0.0
    %v3647 = vadd.f32 %v3645, %v3646
    %v3648 = vsel %vm1550, %v3548, 0.0
    %v3649 = vadd.f32 %v3647, %v3648
    %v3650 = vsel %vm1550, %v3549, 0.0
    %v3651 = vadd.f32 %v3649, %v3650
    %v3652 = vsel %vm1550, %v3550, 0.0
    %v3653 = vadd.f32 %v3651, %v3652
    %v3654 = vsel %vm1550, %v3551, 0.0
    %v3655 = vadd.f32 %v3653, %v3654
    %v3656 = vsel %vm1550, %v3552, 0.0
    %v3657 = vadd.f32 %v3655, %v3656
    %v3658 = vsel %vm1550, %v3553, 0.0
    %v3659 = vadd.f32 %v3657, %v3658
    %v3660 = vsel %vm1550, %v3554, 0.0
    %v3661 = vadd.f32 %v3659, %v3660
    %v3662 = vsel %vm1550, %v3555, 0.0
    %v3663 = vadd.f32 %v3661, %v3662
    %v3664 = vsel %vm1550, %v3556, 0.0
    %v3665 = vadd.f32 %v3663, %v3664
    %v3666 = vsel %vm1550, %v3557, 0.0
    %v3667 = vadd.f32 %v3665, %v3666
    %v3668 = vsel %vm1550, %v3558, 0.0
    %v3669 = vadd.f32 %v3667, %v3668
    %v3670 = vsel %vm1550, %v3559, 0.0
    %v3671 = vadd.f32 %v3669, %v3670
    %v3672 = vsel %vm1550, %v3560, 0.0
    %v3673 = vadd.f32 %v3671, %v3672
    %v3674 = vsel %vm1550, %v3561, 0.0
    %v3675 = vadd.f32 %v3673, %v3674
    %v3676 = vsel %vm1550, %v3562, 0.0
    %v3677 = vadd.f32 %v3675, %v3676
    %v3678 = vsel %vm1550, %v3563, 0.0
    %v3679 = vadd.f32 %v3677, %v3678
    %v3680 = vsel %vm1550, %v3564, 0.0
    %v3681 = vadd.f32 %v3679, %v3680
    %v3682 = vsel %vm1550, %v3565, 0.0
    %v3683 = vadd.f32 %v3681, %v3682
    %v3684 = vsel %vm1550, %v3566, 0.0
    %v3685 = vadd.f32 %v3683, %v3684
    %v3686 = vsel %vm1550, %v3567, 0.0
    %v3687 = vadd.f32 %v3685, %v3686
    %v3688 = vsel %vm1550, %v3568, 0.0
    %v3689 = vadd.f32 %v3687, %v3688
    %v3690 = vsel %vm1550, %v3569, 0.0
    %v3691 = vadd.f32 %v3689, %v3690
    %v3692 = vsel %vm1550, %v3570, 0.0
    %v3693 = vadd.f32 %v3691, %v3692
    %v3694 = vsel %vm1550, %v3571, 0.0
    %v3695 = vadd.f32 %v3693, %v3694
    %v3696 = vsel %vm1550, %v3572, 0.0
    %v3697 = vadd.f32 %v3695, %v3696
    %v3698 = vsel %vm1550, %v3573, 0.0
    %v3699 = vadd.f32 %v3697, %v3698
    %v3700 = vsel %vm1550, %v3574, 0.0
    %v3701 = vadd.f32 %v3699, %v3700
    %v3702 = vsel %vm1550, %v3575, 0.0
    %v3703 = vadd.f32 %v3701, %v3702
    %v3704 = vrot.slane %v3703, 4
    %v3705 = vadd.f32 %v3703, %v3704
    %v3706 = vrot.slane %v3705, 2
    %v3707 = vadd.f32 %v3705, %v3706
    %v3708 = vrot.slane %v3707, 1
    %v3709 = vadd.f32 %v3707, %v3708
    %v3710 = vmul.f32 %v3544, %v3544
    %v3711 = vmul.f32 %v3545, %v3545
    %v3712 = vmul.f32 %v3546, %v3546
    %v3713 = vmul.f32 %v3547, %v3547
    %v3714 = vmul.f32 %v3548, %v3548
    %v3715 = vmul.f32 %v3549, %v3549
    %v3716 = vmul.f32 %v3550, %v3550
    %v3717 = vmul.f32 %v3551, %v3551
    %v3718 = vmul.f32 %v3552, %v3552
    %v3719 = vmul.f32 %v3553, %v3553
    %v3720 = vmul.f32 %v3554, %v3554
    %v3721 = vmul.f32 %v3555, %v3555
    %v3722 = vmul.f32 %v3556, %v3556
    %v3723 = vmul.f32 %v3557, %v3557
    %v3724 = vmul.f32 %v3558, %v3558
    %v3725 = vmul.f32 %v3559, %v3559
    %v3726 = vmul.f32 %v3560, %v3560
    %v3727 = vmul.f32 %v3561, %v3561
    %v3728 = vmul.f32 %v3562, %v3562
    %v3729 = vmul.f32 %v3563, %v3563
    %v3730 = vmul.f32 %v3564, %v3564
    %v3731 = vmul.f32 %v3565, %v3565
    %v3732 = vmul.f32 %v3566, %v3566
    %v3733 = vmul.f32 %v3567, %v3567
    %v3734 = vmul.f32 %v3568, %v3568
    %v3735 = vmul.f32 %v3569, %v3569
    %v3736 = vmul.f32 %v3570, %v3570
    %v3737 = vmul.f32 %v3571, %v3571
    %v3738 = vmul.f32 %v3572, %v3572
    %v3739 = vmul.f32 %v3573, %v3573
    %v3740 = vmul.f32 %v3574, %v3574
    %v3741 = vmul.f32 %v3575, %v3575
    %v3742 = vsel %vm1550, %v3710, 0.0
    %v3743 = vsel %vm1550, %v3711, 0.0
    %v3744 = vadd.f32 %v3742, %v3743
    %v3745 = vsel %vm1550, %v3712, 0.0
    %v3746 = vadd.f32 %v3744, %v3745
    %v3747 = vsel %vm1550, %v3713, 0.0
    %v3748 = vadd.f32 %v3746, %v3747
    %v3749 = vsel %vm1550, %v3714, 0.0
    %v3750 = vadd.f32 %v3748, %v3749
    %v3751 = vsel %vm1550, %v3715, 0.0
    %v3752 = vadd.f32 %v3750, %v3751
    %v3753 = vsel %vm1550, %v3716, 0.0
    %v3754 = vadd.f32 %v3752, %v3753
    %v3755 = vsel %vm1550, %v3717, 0.0
    %v3756 = vadd.f32 %v3754, %v3755
    %v3757 = vsel %vm1550, %v3718, 0.0
    %v3758 = vadd.f32 %v3756, %v3757
    %v3759 = vsel %vm1550, %v3719, 0.0
    %v3760 = vadd.f32 %v3758, %v3759
    %v3761 = vsel %vm1550, %v3720, 0.0
    %v3762 = vadd.f32 %v3760, %v3761
    %v3763 = vsel %vm1550, %v3721, 0.0
    %v3764 = vadd.f32 %v3762, %v3763
    %v3765 = vsel %vm1550, %v3722, 0.0
    %v3766 = vadd.f32 %v3764, %v3765
    %v3767 = vsel %vm1550, %v3723, 0.0
    %v3768 = vadd.f32 %v3766, %v3767
    %v3769 = vsel %vm1550, %v3724, 0.0
    %v3770 = vadd.f32 %v3768, %v3769
    %v3771 = vsel %vm1550, %v3725, 0.0
    %v3772 = vadd.f32 %v3770, %v3771
    %v3773 = vsel %vm1550, %v3726, 0.0
    %v3774 = vadd.f32 %v3772, %v3773
    %v3775 = vsel %vm1550, %v3727, 0.0
    %v3776 = vadd.f32 %v3774, %v3775
    %v3777 = vsel %vm1550, %v3728, 0.0
    %v3778 = vadd.f32 %v3776, %v3777
    %v3779 = vsel %vm1550, %v3729, 0.0
    %v3780 = vadd.f32 %v3778, %v3779
    %v3781 = vsel %vm1550, %v3730, 0.0
    %v3782 = vadd.f32 %v3780, %v3781
    %v3783 = vsel %vm1550, %v3731, 0.0
    %v3784 = vadd.f32 %v3782, %v3783
    %v3785 = vsel %vm1550, %v3732, 0.0
    %v3786 = vadd.f32 %v3784, %v3785
    %v3787 = vsel %vm1550, %v3733, 0.0
    %v3788 = vadd.f32 %v3786, %v3787
    %v3789 = vsel %vm1550, %v3734, 0.0
    %v3790 = vadd.f32 %v3788, %v3789
    %v3791 = vsel %vm1550, %v3735, 0.0
    %v3792 = vadd.f32 %v3790, %v3791
    %v3793 = vsel %vm1550, %v3736, 0.0
    %v3794 = vadd.f32 %v3792, %v3793
    %v3795 = vsel %vm1550, %v3737, 0.0
    %v3796 = vadd.f32 %v3794, %v3795
    %v3797 = vsel %vm1550, %v3738, 0.0
    %v3798 = vadd.f32 %v3796, %v3797
    %v3799 = vsel %vm1550, %v3739, 0.0
    %v3800 = vadd.f32 %v3798, %v3799
    %v3801 = vsel %vm1550, %v3740, 0.0
    %v3802 = vadd.f32 %v3800, %v3801
    %v3803 = vsel %vm1550, %v3741, 0.0
    %v3804 = vadd.f32 %v3802, %v3803
    %v3805 = vrot.slane %v3804, 4
    %v3806 = vadd.f32 %v3804, %v3805
    %v3807 = vrot.slane %v3806, 2
    %v3808 = vadd.f32 %v3806, %v3807
    %v3809 = vrot.slane %v3808, 1
    %v3810 = vadd.f32 %v3808, %v3809
    %v3811 = vsel %vm2449, %v3709, %v3810
    %s3812 = scalar_lea.vmem [#allocation3], 2
    %3813 = vst.msk [vmem:[%s3812] sm:$0x3] %vm2451, %v3811
    // Predicated region
    $region18: #{tpu_custom_call.1} parent=1 // pred_check
      _
    $region19: #{tpu_custom_call.1} parent=1 // pred_check_branch
      %3815 = sbr.rel (0) target = $region21
    $region20: #{tpu_custom_call.1} parent=1 // pred_region
      _
    $region21: #{tpu_custom_call.1} parent=1 // pred_fallthru
      _
    // Predicated region
    $region22: #{tpu_custom_call.1} parent=1 // pred_check
      _
    $region23: #{tpu_custom_call.1} parent=1 // pred_check_branch
      %3817 = sbr.rel (0) target = $region25
    $region24: #{tpu_custom_call.1} parent=1 // pred_region
      %3819 = vsyncadd [#allocation4], 0
      %s3820 = sshll.u32 [#allocation3], 4
      %s3821 = int_to_ptr.vmem [resolvable:$true] %s3820
      %s3822 = sshll.u32 %s5, 4
      %s3823 = int_to_ptr.hbm [resolvable:$true] %s3822
      %3828 = dma.vmem_to_hbm [thread:$0]  %s3821, 64, %s3823, [#allocation4], 32, 32, 2
    $region25: #{tpu_custom_call.1} parent=1 // pred_fallthru
      _
    // Predicated region
    $region26: #{tpu_custom_call.1} parent=1 // pred_check
      _
    $region27: #{tpu_custom_call.1} parent=1 // pred_check_branch
      %3830 = sbr.rel (0) target = $region29
    $region28: #{tpu_custom_call.1} parent=1 // pred_region
      _
    $region29: #{tpu_custom_call.1} parent=1 // pred_fallthru
      _
    // Predicated region
    $region30: #{tpu_custom_call.1} parent=1 // pred_check
      _
    $region31: #{tpu_custom_call.1} parent=1 // pred_check_branch
      %3832 = sbr.rel (0) target = $region33
    $region32: #{tpu_custom_call.1} parent=1 // pred_region
      %3834 = dma.done [#allocation4], 64
    $region33: #{tpu_custom_call.1} parent=1 // pred_fallthru
      _
    %3835 = vsyncpa [#allocation4], 1

</llo_original>
